<compile_context>
chip_gen: v6e
topology: v6e:2x2x1
jax: 0.10.0
libtpu: 0.0.40
codegen_flags: <defaults>
</compile_context>

<pallas_src>
import math
import functools

import jax
import jax.numpy as jnp
from jax.experimental import pallas as pl
from jax.experimental.pallas import tpu as pltpu

_LN_EPS = 1e-5


# --------------------------------------------------------------------------
# tile-size helpers
# --------------------------------------------------------------------------
def _sublane_tile(dim, target=128):
    """Largest multiple of 8 <= target dividing dim, else dim itself."""
    if dim <= target:
        return dim
    t = (target // 8) * 8
    while t >= 8:
        if dim % t == 0:
            return t
        t -= 8
    return dim


def _lane_tile(dim, target=512):
    """Largest multiple of 128 <= target dividing dim, else dim itself."""
    if dim <= target:
        return dim
    t = (target // 128) * 128
    while t >= 128:
        if dim % t == 0:
            return t
        t -= 128
    return dim


# --------------------------------------------------------------------------
# Kernel 1: LayerNorm -> AugMSA (flash-style) -> +value residual
# --------------------------------------------------------------------------
def attention_block(query, key_in, value, ln_gamma, ln_beta, p, num_heads,
                    *, q_tile=128, kv_tile=128):
    B, S, E = query.shape
    assert E % num_heads == 0
    Dh = E // num_heads
    scale = 1.0 / math.sqrt(Dh)

    TQ = _sublane_tile(S, q_tile)
    TK = _sublane_tile(S, kv_tile)
    n_q = S // TQ
    n_kv = S // TK

    def kernel(q_ref, k_ref, v_ref, vres_ref,
               g_ref, beta_ref,
               wq_ref, bq_ref, wk_ref, bk_ref, wv_ref, bv_ref,
               wo_ref, bo_ref, wt_ref,
               o_ref,
               qln_s, qproj_s, m_s, l_s, acc_s):
        ki = pl.program_id(2)

        # ---- prologue (once per (b, q-tile)): fused LayerNorm + Q projection
        @pl.when(ki == 0)
        def _init():
            x = q_ref[...].astype(jnp.float32)                        # (TQ, E)
            mu = jnp.mean(x, axis=-1, keepdims=True)
            var = jnp.mean((x - mu) ** 2, axis=-1, keepdims=True)
            qln = (x - mu) * jax.lax.rsqrt(var + _LN_EPS)
            qln = qln * g_ref[...] + beta_ref[...]
            qln_s[...] = qln
            qproj_s[...] = (jnp.dot(qln, wq_ref[...],
                                    preferred_element_type=jnp.float32)
                            + bq_ref[...])
            m_s[...] = jnp.full_like(m_s, -jnp.inf)
            l_s[...] = jnp.zeros_like(l_s)
            acc_s[...] = jnp.zeros_like(acc_s)

        # ---- per KV-tile: project K/V tile, online-softmax update per head
        K = (jnp.dot(k_ref[...].astype(jnp.float32), wk_ref[...],
                     preferred_element_type=jnp.float32) + bk_ref[...])  # (TK, E)
        V = (jnp.dot(v_ref[...].astype(jnp.float32), wv_ref[...],
                     preferred_element_type=jnp.float32) + bv_ref[...])  # (TK, E)
        Q = qproj_s[...]                                                 # (TQ, E)

        for h in range(num_heads):                 # static loop over heads
            s0 = h * Dh
            Qh = Q[:, s0:s0 + Dh]
            Kh = K[:, s0:s0 + Dh]
            Vh = V[:, s0:s0 + Dh]
            s = jax.lax.dot_general(
                Qh, Kh, (((1,), (1,)), ((), ())),
                preferred_element_type=jnp.float32) * scale              # (TQ, TK)
            m_prev = m_s[h]                                              # (TQ, 1)
            m_new = jnp.maximum(m_prev, jnp.max(s, axis=-1, keepdims=True))
            alpha = jnp.exp(m_prev - m_new)
            pexp = jnp.exp(s - m_new)
            l_s[h] = alpha * l_s[h] + jnp.sum(pexp, axis=-1, keepdims=True)
            acc_s[h] = alpha * acc_s[h] + jnp.dot(
                pexp, Vh, preferred_element_type=jnp.float32)
            m_s[h] = m_new

        # ---- epilogue: output proj + augmented shortcut + residual (no concat)
        @pl.when(ki == pl.num_programs(2) - 1)
        def _finalize():
            out = jnp.dot(qln_s[...], wt_ref[...],
                          preferred_element_type=jnp.float32)            # shortcut
            for h in range(num_heads):
                s0 = h * Dh
                oh = acc_s[h] * pl.reciprocal(l_s[h], approx=True)       # (TQ, Dh)
                out = out + jnp.dot(oh, wo_ref[s0:s0 + Dh, :],
                                    preferred_element_type=jnp.float32)
            out = out + bo_ref[...] + vres_ref[...].astype(jnp.float32)
            o_ref[...] = out.astype(o_ref.dtype)

    seq_q_spec = pl.BlockSpec((None, TQ, E), lambda b, qi, ki: (b, qi, 0))
    seq_kv_spec = pl.BlockSpec((None, TK, E), lambda b, qi, ki: (b, ki, 0))
    mat_spec = lambda shape: pl.BlockSpec(shape, lambda b, qi, ki: (0, 0))

    return pl.pallas_call(
        kernel,
        out_shape=jax.ShapeDtypeStruct((B, S, E), query.dtype),
        grid=(B, n_q, n_kv),
        in_specs=[
            seq_q_spec,            # query  (q-tile)
            seq_kv_spec,           # key    (kv-tile)
            seq_kv_spec,           # value  (kv-tile)  -> attention V
            seq_q_spec,            # value  (q-tile)   -> residual
            mat_spec((1, E)), mat_spec((1, E)),                     # ln gamma/beta
            mat_spec((E, E)), mat_spec((1, E)),                     # wq, bq
            mat_spec((E, E)), mat_spec((1, E)),                     # wk, bk
            mat_spec((E, E)), mat_spec((1, E)),                     # wv, bv
            mat_spec((E, E)), mat_spec((1, E)),                     # wo, bo
            mat_spec((E, E)),                                       # wtheta
        ],
        out_specs=seq_q_spec,
        scratch_shapes=[
            pltpu.VMEM((TQ, E), jnp.float32),              # q_ln
            pltpu.VMEM((TQ, E), jnp.float32),              # projected Q
            pltpu.VMEM((num_heads, TQ, 1), jnp.float32),   # m (running max)
            pltpu.VMEM((num_heads, TQ, 1), jnp.float32),   # l (running sum)
            pltpu.VMEM((num_heads, TQ, Dh), jnp.float32),  # acc (running PV)
        ],
        compiler_params=pltpu.CompilerParams(
            dimension_semantics=("parallel", "parallel", "arbitrary")),
    )(query, key_in, value, value,
      ln_gamma, ln_beta,
      p["wq"], p["bq"], p["wk"], p["bk"], p["wv"], p["bv"],
      p["wo"], p["bo"], p["wtheta"])


# --------------------------------------------------------------------------
# Kernel 2: SIFA_MLP (hidden-dim tiled) -> +value residual -> final LayerNorm
# --------------------------------------------------------------------------
def mlp_block(x, value, ln_gamma, ln_beta, p, sifa_a, sifa_b,
              *, s_tile=256, h_tile=512):
    B, S, E = x.shape
    H = p["w1"].shape[1]

    TS = _sublane_tile(S, s_tile)
    TH = _lane_tile(H, h_tile)
    n_s = S // TS
    n_h = H // TH

    def kernel(x_ref, v_ref, g_ref, beta_ref,
               w1_ref, b1_ref, w2_ref, b2_ref,
               o_ref, acc_s):
        hi = pl.program_id(2)

        @pl.when(hi == 0)
        def _init():
            acc_s[...] = jnp.zeros_like(acc_s)

        # partial hidden block: Linear1 + series-informed activation + Linear2
        h = (jnp.dot(x_ref[...].astype(jnp.float32), w1_ref[...],
                     preferred_element_type=jnp.float32) + b1_ref[...])   # (TS, TH)
        act = jnp.zeros_like(h)
        for a_i, b_i in zip(sifa_a, sifa_b):          # static small series
            act = act + a_i * jnp.maximum(h + b_i, 0.0)
        acc_s[...] += jnp.dot(act, w2_ref[...],
                              preferred_element_type=jnp.float32)         # (TS, E)

        # epilogue: bias + residual + final LayerNorm (biases added once)
        @pl.when(hi == pl.num_programs(2) - 1)
        def _finalize():
            y = acc_s[...] + b2_ref[...] + v_ref[...].astype(jnp.float32)
            mu = jnp.mean(y, axis=-1, keepdims=True)
            var = jnp.mean((y - mu) ** 2, axis=-1, keepdims=True)
            yn = (y - mu) * jax.lax.rsqrt(var + _LN_EPS)
            o_ref[...] = (yn * g_ref[...] + beta_ref[...]).astype(o_ref.dtype)

    seq_spec = pl.BlockSpec((None, TS, E), lambda b, si, hi: (b, si, 0))

    return pl.pallas_call(
        kernel,
        out_shape=jax.ShapeDtypeStruct((B, S, E), x.dtype),
        grid=(B, n_s, n_h),
        in_specs=[
            seq_spec,                                                   # x
            seq_spec,                                                   # value
            pl.BlockSpec((1, E), lambda b, si, hi: (0, 0)),             # gamma
            pl.BlockSpec((1, E), lambda b, si, hi: (0, 0)),             # beta
            pl.BlockSpec((E, TH), lambda b, si, hi: (0, hi)),           # w1
            pl.BlockSpec((1, TH), lambda b, si, hi: (0, hi)),           # b1
            pl.BlockSpec((TH, E), lambda b, si, hi: (hi, 0)),           # w2
            pl.BlockSpec((1, E), lambda b, si, hi: (0, 0)),             # b2
        ],
        out_specs=seq_spec,
        scratch_shapes=[pltpu.VMEM((TS, E), jnp.float32)],
        compiler_params=pltpu.CompilerParams(
            dimension_semantics=("parallel", "parallel", "arbitrary")),
    )(x, value, ln_gamma, ln_beta, p["w1"], p["b1"], p["w2"], p["b2"])


# --------------------------------------------------------------------------
# full encoder layer
# --------------------------------------------------------------------------
def pangu_encoder_layer(query, key_in, value, params, num_heads):
    # LayerNorm + AugMSA + dropout(identity) + residual  (one fused kernel)
    x = attention_block(query, key_in, value,
                        params["ln_gamma"], params["ln_beta"],
                        params["augmsa"], num_heads)
    # SIFA_MLP + dropout(identity) + residual + final LayerNorm (one fused kernel)
    return mlp_block(x, value, params["ln_gamma"], params["ln_beta"],
                     params["mlp"], params["sifa_a"], params["sifa_b"])


# --------------------------------------------------------------------------
# pure-JAX reference (for a loose sanity check)
# --------------------------------------------------------------------------
def reference(query, key_in, value, params, num_heads):
    g, b = params["ln_gamma"], params["ln_beta"]

    def ln(x):
        mu = x.mean(-1, keepdims=True)
        var = ((x - mu) ** 2).mean(-1, keepdims=True)
        return (x - mu) / jnp.sqrt(var + _LN_EPS) * g + b

    a = params["augmsa"]
    B, S, E = query.shape
    Dh = E // num_heads
    q = ln(query)
    Q = q @ a["wq"] + a["bq"]
    K = key_in @ a["wk"] + a["bk"]
    V = value @ a["wv"] + a["bv"]
    Qh = Q.reshape(B, S, num_heads, Dh).transpose(0, 2, 1, 3)
    Kh = K.reshape(B, S, num_heads, Dh).transpose(0, 2, 1, 3)
    Vh = V.reshape(B, S, num_heads, Dh).transpose(0, 2, 1, 3)
    sc = jnp.einsum("bhqd,bhkd->bhqk", Qh, Kh) / math.sqrt(Dh)
    pr = jax.nn.softmax(sc, axis=-1)
    attn = jnp.einsum("bhqk,bhkd->bhqd", pr, Vh).transpose(0, 2, 1, 3).reshape(B, S, E)
    x = attn @ a["wo"] + a["bo"] + q @ a["wtheta"] + value

    m = params["mlp"]
    h = x @ m["w1"] + m["b1"]
    act = sum(ai * jnp.maximum(h + bi, 0.0)
              for ai, bi in zip(params["sifa_a"], params["sifa_b"]))
    y = act @ m["w2"] + m["b2"] + value
    return ln(y)


# --------------------------------------------------------------------------
# params
# --------------------------------------------------------------------------
def init_params(rng, emb_size, mlp_hidden):
    ks = jax.random.split(rng, 8)
    std = 0.02
    E, H = emb_size, mlp_hidden
    return {
        "ln_gamma": jnp.ones((1, E), jnp.float32),
        "ln_beta": jnp.zeros((1, E), jnp.float32),
        "augmsa": {
            "wq": std * jax.random.normal(ks[0], (E, E), jnp.float32),
            "bq": jnp.zeros((1, E), jnp.float32),
            "wk": std * jax.random.normal(ks[1], (E, E), jnp.float32),
            "bk": jnp.zeros((1, E), jnp.float32),
            "wv": std * jax.random.normal(ks[2], (E, E), jnp.float32),
            "bv": jnp.zeros((1, E), jnp.float32),
            "wo": std * jax.random.normal(ks[3], (E, E), jnp.float32),
            "bo": jnp.zeros((1, E), jnp.float32),
            "wtheta": std * jax.random.normal(ks[4], (E, E), jnp.float32),
        },
        "mlp": {
            "w1": std * jax.random.normal(ks[5], (E, H), jnp.float32),
            "b1": jnp.zeros((1, H), jnp.float32),
            "w2": std * jax.random.normal(ks[6], (H, E), jnp.float32),
            "b2": jnp.zeros((1, E), jnp.float32),
        },
        # series-informed activation coefficients (3-term series), static scalars
        "sifa_a": (1.0, 0.25, 0.25),
        "sifa_b": (0.0, 1.0, -1.0),
    }


if __name__ == "__main__":
    B, S, E = 2, 8, 32          # batch, seq, emb_size
    NUM_HEADS = 8               # AugMSA_nums
    MLP_HIDDEN = 4 * E

    root = jax.random.PRNGKey(0)
    k_q, k_k, k_v, k_p = jax.random.split(root, 4)

    query = jax.random.normal(k_q, (B, S, E), jnp.float32)
    key_in = jax.random.normal(k_k, (B, S, E), jnp.float32)
    value = jax.random.normal(k_v, (B, S, E), jnp.float32)

    params = init_params(k_p, E, MLP_HIDDEN)

    fwd = functools.partial(pangu_encoder_layer, num_heads=NUM_HEADS)
    out = fwd(query, key_in, value, params)
    jax.block_until_ready(out)

    assert out.shape == (B, S, E) and out.dtype == jnp.float32

    # loose sanity check vs. pure-JAX reference (approx reciprocal in kernel)
    ref = reference(query, key_in, value, params, NUM_HEADS)
    max_err = float(jnp.max(jnp.abs(out - ref)))
    assert max_err < 2e-2, f"max abs error too large: {max_err}"

    print("KERNEL_OK")
</pallas_src>

<mosaic_0001>
module attributes {stable_mosaic.version = 11 : i64} {
  func.func @kernel(%arg0: i32, %arg1: i32, %arg2: i32, %arg3: memref<1x8x32xf32, #tpu.memory_space<vmem>>, %arg4: memref<1x8x32xf32, #tpu.memory_space<vmem>>, %arg5: memref<1x8x32xf32, #tpu.memory_space<vmem>>, %arg6: memref<1x8x32xf32, #tpu.memory_space<vmem>>, %arg7: memref<1x32xf32, #tpu.memory_space<vmem>>, %arg8: memref<1x32xf32, #tpu.memory_space<vmem>>, %arg9: memref<32x32xf32, #tpu.memory_space<vmem>>, %arg10: memref<1x32xf32, #tpu.memory_space<vmem>>, %arg11: memref<32x32xf32, #tpu.memory_space<vmem>>, %arg12: memref<1x32xf32, #tpu.memory_space<vmem>>, %arg13: memref<32x32xf32, #tpu.memory_space<vmem>>, %arg14: memref<1x32xf32, #tpu.memory_space<vmem>>, %arg15: memref<32x32xf32, #tpu.memory_space<vmem>>, %arg16: memref<1x32xf32, #tpu.memory_space<vmem>>, %arg17: memref<32x32xf32, #tpu.memory_space<vmem>>, %arg18: memref<1x8x32xf32, #tpu.memory_space<vmem>>, %arg19: memref<8x32xf32, #tpu.memory_space<vmem>>, %arg20: memref<8x32xf32, #tpu.memory_space<vmem>>, %arg21: memref<8x8x1xf32, #tpu.memory_space<vmem>>, %arg22: memref<8x8x1xf32, #tpu.memory_space<vmem>>, %arg23: memref<8x8x4xf32, #tpu.memory_space<vmem>>) attributes {dimension_semantics = [#tpu.dimension_semantics<parallel>, #tpu.dimension_semantics<parallel>, #tpu.dimension_semantics<arbitrary>], iteration_bounds = array<i64: 2, 1, 1>, scalar_prefetch = 0 : i64, scratch_operands = 5 : i64, tpu.core_type = #tpu.core_type<tc>, window_params = [{transform_indices = @transform_0, window_bounds = array<i64: 1, 8, 32>}, {transform_indices = @transform_1, window_bounds = array<i64: 1, 8, 32>}, {transform_indices = @transform_2, window_bounds = array<i64: 1, 8, 32>}, {transform_indices = @transform_3, window_bounds = array<i64: 1, 8, 32>}, {pipeline_mode = #tpu.pipeline_mode<synchronous>, transform_indices = @transform_4, window_bounds = array<i64: 1, 32>}, {pipeline_mode = #tpu.pipeline_mode<synchronous>, transform_indices = @transform_5, window_bounds = array<i64: 1, 32>}, {pipeline_mode = #tpu.pipeline_mode<synchronous>, transform_indices = @transform_6, window_bounds = array<i64: 32, 32>}, {pipeline_mode = #tpu.pipeline_mode<synchronous>, transform_indices = @transform_7, window_bounds = array<i64: 1, 32>}, {pipeline_mode = #tpu.pipeline_mode<synchronous>, transform_indices = @transform_8, window_bounds = array<i64: 32, 32>}, {pipeline_mode = #tpu.pipeline_mode<synchronous>, transform_indices = @transform_9, window_bounds = array<i64: 1, 32>}, {pipeline_mode = #tpu.pipeline_mode<synchronous>, transform_indices = @transform_10, window_bounds = array<i64: 32, 32>}, {pipeline_mode = #tpu.pipeline_mode<synchronous>, transform_indices = @transform_11, window_bounds = array<i64: 1, 32>}, {pipeline_mode = #tpu.pipeline_mode<synchronous>, transform_indices = @transform_12, window_bounds = array<i64: 32, 32>}, {pipeline_mode = #tpu.pipeline_mode<synchronous>, transform_indices = @transform_13, window_bounds = array<i64: 1, 32>}, {pipeline_mode = #tpu.pipeline_mode<synchronous>, transform_indices = @transform_14, window_bounds = array<i64: 32, 32>}, {transform_indices = @transform_15, window_bounds = array<i64: 1, 8, 32>}]} {
    %c0_i32 = arith.constant 0 : i32
    %0 = arith.cmpi eq, %arg2, %c0_i32 : i32
    %1 = arith.extui %0 : i1 to i32
    %c0_i32_0 = arith.constant 0 : i32
    %2 = arith.cmpi ne, %1, %c0_i32_0 : i32
    scf.if %2 {
      %c0_196 = arith.constant 0 : index
      %c0_197 = arith.constant 0 : index
      %c0_198 = arith.constant 0 : index
      %317 = vector.load %arg3[%c0_196, %c0_197, %c0_198] : memref<1x8x32xf32, #tpu.memory_space<vmem>>, vector<1x8x32xf32>
      %318 = vector.shape_cast %317 : vector<1x8x32xf32> to vector<8x32xf32>
      %cst_199 = arith.constant dense<0.000000e+00> : vector<8xf32>
      %319 = vector.multi_reduction <add>, %318, %cst_199 [1] : vector<8x32xf32> to vector<8xf32>
      %320 = vector.shape_cast %319 : vector<8xf32> to vector<8x1xf32>
      %cst_200 = arith.constant 3.200000e+01 : f32
      %321 = vector.broadcast %cst_200 : f32 to vector<8x1xf32>
      %322 = arith.divf %320, %321 : vector<8x1xf32>
      %323 = vector.broadcast %322 : vector<8x1xf32> to vector<8x32xf32>
      %324 = arith.subf %318, %323 : vector<8x32xf32>
      %325 = arith.mulf %324, %324 : vector<8x32xf32>
      %cst_201 = arith.constant dense<0.000000e+00> : vector<8xf32>
      %326 = vector.multi_reduction <add>, %325, %cst_201 [1] : vector<8x32xf32> to vector<8xf32>
      %327 = vector.shape_cast %326 : vector<8xf32> to vector<8x1xf32>
      %cst_202 = arith.constant 3.200000e+01 : f32
      %328 = vector.broadcast %cst_202 : f32 to vector<8x1xf32>
      %329 = arith.divf %327, %328 : vector<8x1xf32>
      %330 = vector.broadcast %322 : vector<8x1xf32> to vector<8x32xf32>
      %331 = arith.subf %318, %330 : vector<8x32xf32>
      %cst_203 = arith.constant 9.99999974E-6 : f32
      %332 = vector.broadcast %cst_203 : f32 to vector<8x1xf32>
      %333 = arith.addf %329, %332 : vector<8x1xf32>
      %334 = math.rsqrt %333 : vector<8x1xf32>
      %335 = vector.broadcast %334 : vector<8x1xf32> to vector<8x32xf32>
      %336 = arith.mulf %331, %335 : vector<8x32xf32>
      %c0_204 = arith.constant 0 : index
      %c0_205 = arith.constant 0 : index
      %337 = vector.load %arg7[%c0_204, %c0_205] : memref<1x32xf32, #tpu.memory_space<vmem>>, vector<1x32xf32>
      %338 = vector.broadcast %337 : vector<1x32xf32> to vector<8x32xf32>
      %339 = arith.mulf %336, %338 : vector<8x32xf32>
      %c0_206 = arith.constant 0 : index
      %c0_207 = arith.constant 0 : index
      %340 = vector.load %arg8[%c0_206, %c0_207] : memref<1x32xf32, #tpu.memory_space<vmem>>, vector<1x32xf32>
      %341 = vector.broadcast %340 : vector<1x32xf32> to vector<8x32xf32>
      %342 = arith.addf %339, %341 : vector<8x32xf32>
      %c0_208 = arith.constant 0 : index
      %c0_209 = arith.constant 0 : index
      %343 = vector.load %arg19[%c0_208, %c0_209] : memref<8x32xf32, #tpu.memory_space<vmem>>, vector<8x32xf32>
      tpu.vector_store %arg19[%c0_208, %c0_209], %342 {strides = array<i32>} : memref<8x32xf32, #tpu.memory_space<vmem>>, vector<8x32xf32>,
      %c0_210 = arith.constant 0 : index
      %c0_211 = arith.constant 0 : index
      %344 = vector.load %arg9[%c0_210, %c0_211] : memref<32x32xf32, #tpu.memory_space<vmem>>, vector<32x32xf32>
      %cst_212 = arith.constant dense<0.000000e+00> : vector<8x32xf32>
      %345 = tpu.matmul %342, %344, %cst_212 {dimension_numbers = #tpu.dot_dimension_numbers<[1], [0], [0], [1], [0, 0, 1, 1], [], []>} : vector<8x32xf32>, vector<32x32xf32>, vector<8x32xf32> -> vector<8x32xf32>
      %c0_213 = arith.constant 0 : index
      %c0_214 = arith.constant 0 : index
      %346 = vector.load %arg10[%c0_213, %c0_214] : memref<1x32xf32, #tpu.memory_space<vmem>>, vector<1x32xf32>
      %347 = vector.broadcast %346 : vector<1x32xf32> to vector<8x32xf32>
      %348 = arith.addf %345, %347 : vector<8x32xf32>
      %c0_215 = arith.constant 0 : index
      %c0_216 = arith.constant 0 : index
      %349 = vector.load %arg20[%c0_215, %c0_216] : memref<8x32xf32, #tpu.memory_space<vmem>>, vector<8x32xf32>
      tpu.vector_store %arg20[%c0_215, %c0_216], %348 {strides = array<i32>} : memref<8x32xf32, #tpu.memory_space<vmem>>, vector<8x32xf32>,
      %cst_217 = arith.constant 0xFF800000 : f32
      %350 = vector.broadcast %cst_217 : f32 to vector<8x8x1xf32>
      %c0_218 = arith.constant 0 : index
      %c0_219 = arith.constant 0 : index
      %c0_220 = arith.constant 0 : index
      %351 = vector.load %arg21[%c0_218, %c0_219, %c0_220] : memref<8x8x1xf32, #tpu.memory_space<vmem>>, vector<8x8x1xf32>
      tpu.vector_store %arg21[%c0_218, %c0_219, %c0_220], %350 {strides = array<i32>} : memref<8x8x1xf32, #tpu.memory_space<vmem>>, vector<8x8x1xf32>,
      %cst_221 = arith.constant 0.000000e+00 : f32
      %352 = vector.broadcast %cst_221 : f32 to vector<8x8x1xf32>
      %c0_222 = arith.constant 0 : index
      %c0_223 = arith.constant 0 : index
      %c0_224 = arith.constant 0 : index
      %353 = vector.load %arg22[%c0_222, %c0_223, %c0_224] : memref<8x8x1xf32, #tpu.memory_space<vmem>>, vector<8x8x1xf32>
      tpu.vector_store %arg22[%c0_222, %c0_223, %c0_224], %352 {strides = array<i32>} : memref<8x8x1xf32, #tpu.memory_space<vmem>>, vector<8x8x1xf32>,
      %cst_225 = arith.constant 0.000000e+00 : f32
      %354 = vector.broadcast %cst_225 : f32 to vector<8x8x4xf32>
      %c0_226 = arith.constant 0 : index
      %c0_227 = arith.constant 0 : index
      %c0_228 = arith.constant 0 : index
      %355 = vector.load %arg23[%c0_226, %c0_227, %c0_228] : memref<8x8x4xf32, #tpu.memory_space<vmem>>, vector<8x8x4xf32>
      tpu.vector_store %arg23[%c0_226, %c0_227, %c0_228], %354 {strides = array<i32>} : memref<8x8x4xf32, #tpu.memory_space<vmem>>, vector<8x8x4xf32>,
    } else {
    }
    %c0 = arith.constant 0 : index
    %c0_1 = arith.constant 0 : index
    %c0_2 = arith.constant 0 : index
    %3 = vector.load %arg4[%c0, %c0_1, %c0_2] : memref<1x8x32xf32, #tpu.memory_space<vmem>>, vector<1x8x32xf32>
    %4 = vector.shape_cast %3 : vector<1x8x32xf32> to vector<8x32xf32>
    %c0_3 = arith.constant 0 : index
    %c0_4 = arith.constant 0 : index
    %5 = vector.load %arg11[%c0_3, %c0_4] : memref<32x32xf32, #tpu.memory_space<vmem>>, vector<32x32xf32>
    %cst = arith.constant dense<0.000000e+00> : vector<8x32xf32>
    %6 = tpu.matmul %4, %5, %cst {dimension_numbers = #tpu.dot_dimension_numbers<[1], [0], [0], [1], [0, 0, 1, 1], [], []>} : vector<8x32xf32>, vector<32x32xf32>, vector<8x32xf32> -> vector<8x32xf32>
    %c0_5 = arith.constant 0 : index
    %c0_6 = arith.constant 0 : index
    %7 = vector.load %arg12[%c0_5, %c0_6] : memref<1x32xf32, #tpu.memory_space<vmem>>, vector<1x32xf32>
    %8 = vector.broadcast %7 : vector<1x32xf32> to vector<8x32xf32>
    %9 = arith.addf %6, %8 : vector<8x32xf32>
    %c0_7 = arith.constant 0 : index
    %c0_8 = arith.constant 0 : index
    %c0_9 = arith.constant 0 : index
    %10 = vector.load %arg5[%c0_7, %c0_8, %c0_9] : memref<1x8x32xf32, #tpu.memory_space<vmem>>, vector<1x8x32xf32>
    %11 = vector.shape_cast %10 : vector<1x8x32xf32> to vector<8x32xf32>
    %c0_10 = arith.constant 0 : index
    %c0_11 = arith.constant 0 : index
    %12 = vector.load %arg13[%c0_10, %c0_11] : memref<32x32xf32, #tpu.memory_space<vmem>>, vector<32x32xf32>
    %cst_12 = arith.constant dense<0.000000e+00> : vector<8x32xf32>
    %13 = tpu.matmul %11, %12, %cst_12 {dimension_numbers = #tpu.dot_dimension_numbers<[1], [0], [0], [1], [0, 0, 1, 1], [], []>} : vector<8x32xf32>, vector<32x32xf32>, vector<8x32xf32> -> vector<8x32xf32>
    %c0_13 = arith.constant 0 : index
    %c0_14 = arith.constant 0 : index
    %14 = vector.load %arg14[%c0_13, %c0_14] : memref<1x32xf32, #tpu.memory_space<vmem>>, vector<1x32xf32>
    %15 = vector.broadcast %14 : vector<1x32xf32> to vector<8x32xf32>
    %16 = arith.addf %13, %15 : vector<8x32xf32>
    %c0_15 = arith.constant 0 : index
    %c0_16 = arith.constant 0 : index
    %17 = vector.load %arg20[%c0_15, %c0_16] : memref<8x32xf32, #tpu.memory_space<vmem>>, vector<8x32xf32>
    %18 = vector.extract_strided_slice %17 {offsets = [0, 0], sizes = [8, 4], strides = [1, 1]} : vector<8x32xf32> to vector<8x4xf32>
    %19 = vector.extract_strided_slice %9 {offsets = [0, 0], sizes = [8, 4], strides = [1, 1]} : vector<8x32xf32> to vector<8x4xf32>
    %20 = vector.extract_strided_slice %16 {offsets = [0, 0], sizes = [8, 4], strides = [1, 1]} : vector<8x32xf32> to vector<8x4xf32>
    %cst_17 = arith.constant dense<0.000000e+00> : vector<8x8xf32>
    %21 = tpu.matmul %18, %19, %cst_17 {dimension_numbers = #tpu.dot_dimension_numbers<[1], [1], [0], [0], [0, 0, 1, 0], [], []>} : vector<8x4xf32>, vector<8x4xf32>, vector<8x8xf32> -> vector<8x8xf32>
    %cst_18 = arith.constant 5.000000e-01 : f32
    %22 = vector.broadcast %cst_18 : f32 to vector<8x8xf32>
    %23 = arith.mulf %21, %22 : vector<8x8xf32>
    %c0_19 = arith.constant 0 : index
    %c0_20 = arith.constant 0 : index
    %c0_21 = arith.constant 0 : index
    %24 = vector.load %arg21[%c0_19, %c0_20, %c0_21] : memref<8x8x1xf32, #tpu.memory_space<vmem>>, vector<1x8x1xf32>
    %25 = vector.shape_cast %24 : vector<1x8x1xf32> to vector<8x1xf32>
    %cst_22 = arith.constant dense<0xFF800000> : vector<8xf32>
    %26 = vector.multi_reduction <maximumf>, %23, %cst_22 [1] : vector<8x8xf32> to vector<8xf32>
    %27 = vector.shape_cast %26 : vector<8xf32> to vector<8x1xf32>
    %28 = arith.maximumf %25, %27 : vector<8x1xf32>
    %29 = arith.subf %25, %28 : vector<8x1xf32>
    %30 = math.exp %29 : vector<8x1xf32>
    %31 = vector.broadcast %28 : vector<8x1xf32> to vector<8x8xf32>
    %32 = arith.subf %23, %31 : vector<8x8xf32>
    %33 = math.exp %32 : vector<8x8xf32>
    %c0_23 = arith.constant 0 : index
    %c0_24 = arith.constant 0 : index
    %c0_25 = arith.constant 0 : index
    %34 = vector.load %arg22[%c0_23, %c0_24, %c0_25] : memref<8x8x1xf32, #tpu.memory_space<vmem>>, vector<1x8x1xf32>
    %35 = vector.shape_cast %34 : vector<1x8x1xf32> to vector<8x1xf32>
    %36 = arith.mulf %30, %35 : vector<8x1xf32>
    %cst_26 = arith.constant dense<0.000000e+00> : vector<8xf32>
    %37 = vector.multi_reduction <add>, %33, %cst_26 [1] : vector<8x8xf32> to vector<8xf32>
    %38 = vector.shape_cast %37 : vector<8xf32> to vector<8x1xf32>
    %39 = arith.addf %36, %38 : vector<8x1xf32>
    %c0_27 = arith.constant 0 : index
    %c0_28 = arith.constant 0 : index
    %c0_29 = arith.constant 0 : index
    %40 = vector.load %arg22[%c0_27, %c0_28, %c0_29] : memref<8x8x1xf32, #tpu.memory_space<vmem>>, vector<1x8x1xf32>
    %41 = vector.shape_cast %40 : vector<1x8x1xf32> to vector<8x1xf32>
    %42 = vector.shape_cast %39 : vector<8x1xf32> to vector<1x8x1xf32>
    tpu.vector_store %arg22[%c0_27, %c0_28, %c0_29], %42 {strides = array<i32>} : memref<8x8x1xf32, #tpu.memory_space<vmem>>, vector<1x8x1xf32>,
    %c0_30 = arith.constant 0 : index
    %c0_31 = arith.constant 0 : index
    %c0_32 = arith.constant 0 : index
    %43 = vector.load %arg23[%c0_30, %c0_31, %c0_32] : memref<8x8x4xf32, #tpu.memory_space<vmem>>, vector<1x8x4xf32>
    %44 = vector.shape_cast %43 : vector<1x8x4xf32> to vector<8x4xf32>
    %45 = vector.broadcast %30 : vector<8x1xf32> to vector<8x4xf32>
    %46 = arith.mulf %45, %44 : vector<8x4xf32>
    %cst_33 = arith.constant dense<0.000000e+00> : vector<8x4xf32>
    %47 = tpu.matmul %33, %20, %cst_33 {dimension_numbers = #tpu.dot_dimension_numbers<[1], [0], [0], [1], [0, 0, 1, 1], [], []>} : vector<8x8xf32>, vector<8x4xf32>, vector<8x4xf32> -> vector<8x4xf32>
    %48 = arith.addf %46, %47 : vector<8x4xf32>
    %c0_34 = arith.constant 0 : index
    %c0_35 = arith.constant 0 : index
    %c0_36 = arith.constant 0 : index
    %49 = vector.load %arg23[%c0_34, %c0_35, %c0_36] : memref<8x8x4xf32, #tpu.memory_space<vmem>>, vector<1x8x4xf32>
    %50 = vector.shape_cast %49 : vector<1x8x4xf32> to vector<8x4xf32>
    %51 = vector.shape_cast %48 : vector<8x4xf32> to vector<1x8x4xf32>
    tpu.vector_store %arg23[%c0_34, %c0_35, %c0_36], %51 {strides = array<i32>} : memref<8x8x4xf32, #tpu.memory_space<vmem>>, vector<1x8x4xf32>,
    %c0_37 = arith.constant 0 : index
    %c0_38 = arith.constant 0 : index
    %c0_39 = arith.constant 0 : index
    %52 = vector.load %arg21[%c0_37, %c0_38, %c0_39] : memref<8x8x1xf32, #tpu.memory_space<vmem>>, vector<1x8x1xf32>
    %53 = vector.shape_cast %52 : vector<1x8x1xf32> to vector<8x1xf32>
    %54 = vector.shape_cast %28 : vector<8x1xf32> to vector<1x8x1xf32>
    tpu.vector_store %arg21[%c0_37, %c0_38, %c0_39], %54 {strides = array<i32>} : memref<8x8x1xf32, #tpu.memory_space<vmem>>, vector<1x8x1xf32>,
    %55 = vector.extract_strided_slice %17 {offsets = [0, 4], sizes = [8, 4], strides = [1, 1]} : vector<8x32xf32> to vector<8x4xf32>
    %56 = vector.extract_strided_slice %9 {offsets = [0, 4], sizes = [8, 4], strides = [1, 1]} : vector<8x32xf32> to vector<8x4xf32>
    %57 = vector.extract_strided_slice %16 {offsets = [0, 4], sizes = [8, 4], strides = [1, 1]} : vector<8x32xf32> to vector<8x4xf32>
    %cst_40 = arith.constant dense<0.000000e+00> : vector<8x8xf32>
    %58 = tpu.matmul %55, %56, %cst_40 {dimension_numbers = #tpu.dot_dimension_numbers<[1], [1], [0], [0], [0, 0, 1, 0], [], []>} : vector<8x4xf32>, vector<8x4xf32>, vector<8x8xf32> -> vector<8x8xf32>
    %cst_41 = arith.constant 5.000000e-01 : f32
    %59 = vector.broadcast %cst_41 : f32 to vector<8x8xf32>
    %60 = arith.mulf %58, %59 : vector<8x8xf32>
    %c1 = arith.constant 1 : index
    %c0_42 = arith.constant 0 : index
    %c0_43 = arith.constant 0 : index
    %61 = vector.load %arg21[%c1, %c0_42, %c0_43] : memref<8x8x1xf32, #tpu.memory_space<vmem>>, vector<1x8x1xf32>
    %62 = vector.shape_cast %61 : vector<1x8x1xf32> to vector<8x1xf32>
    %cst_44 = arith.constant dense<0xFF800000> : vector<8xf32>
    %63 = vector.multi_reduction <maximumf>, %60, %cst_44 [1] : vector<8x8xf32> to vector<8xf32>
    %64 = vector.shape_cast %63 : vector<8xf32> to vector<8x1xf32>
    %65 = arith.maximumf %62, %64 : vector<8x1xf32>
    %66 = arith.subf %62, %65 : vector<8x1xf32>
    %67 = math.exp %66 : vector<8x1xf32>
    %68 = vector.broadcast %65 : vector<8x1xf32> to vector<8x8xf32>
    %69 = arith.subf %60, %68 : vector<8x8xf32>
    %70 = math.exp %69 : vector<8x8xf32>
    %c1_45 = arith.constant 1 : index
    %c0_46 = arith.constant 0 : index
    %c0_47 = arith.constant 0 : index
    %71 = vector.load %arg22[%c1_45, %c0_46, %c0_47] : memref<8x8x1xf32, #tpu.memory_space<vmem>>, vector<1x8x1xf32>
    %72 = vector.shape_cast %71 : vector<1x8x1xf32> to vector<8x1xf32>
    %73 = arith.mulf %67, %72 : vector<8x1xf32>
    %cst_48 = arith.constant dense<0.000000e+00> : vector<8xf32>
    %74 = vector.multi_reduction <add>, %70, %cst_48 [1] : vector<8x8xf32> to vector<8xf32>
    %75 = vector.shape_cast %74 : vector<8xf32> to vector<8x1xf32>
    %76 = arith.addf %73, %75 : vector<8x1xf32>
    %c1_49 = arith.constant 1 : index
    %c0_50 = arith.constant 0 : index
    %c0_51 = arith.constant 0 : index
    %77 = vector.load %arg22[%c1_49, %c0_50, %c0_51] : memref<8x8x1xf32, #tpu.memory_space<vmem>>, vector<1x8x1xf32>
    %78 = vector.shape_cast %77 : vector<1x8x1xf32> to vector<8x1xf32>
    %79 = vector.shape_cast %76 : vector<8x1xf32> to vector<1x8x1xf32>
    tpu.vector_store %arg22[%c1_49, %c0_50, %c0_51], %79 {strides = array<i32>} : memref<8x8x1xf32, #tpu.memory_space<vmem>>, vector<1x8x1xf32>,
    %c1_52 = arith.constant 1 : index
    %c0_53 = arith.constant 0 : index
    %c0_54 = arith.constant 0 : index
    %80 = vector.load %arg23[%c1_52, %c0_53, %c0_54] : memref<8x8x4xf32, #tpu.memory_space<vmem>>, vector<1x8x4xf32>
    %81 = vector.shape_cast %80 : vector<1x8x4xf32> to vector<8x4xf32>
    %82 = vector.broadcast %67 : vector<8x1xf32> to vector<8x4xf32>
    %83 = arith.mulf %82, %81 : vector<8x4xf32>
    %cst_55 = arith.constant dense<0.000000e+00> : vector<8x4xf32>
    %84 = tpu.matmul %70, %57, %cst_55 {dimension_numbers = #tpu.dot_dimension_numbers<[1], [0], [0], [1], [0, 0, 1, 1], [], []>} : vector<8x8xf32>, vector<8x4xf32>, vector<8x4xf32> -> vector<8x4xf32>
    %85 = arith.addf %83, %84 : vector<8x4xf32>
    %c1_56 = arith.constant 1 : index
    %c0_57 = arith.constant 0 : index
    %c0_58 = arith.constant 0 : index
    %86 = vector.load %arg23[%c1_56, %c0_57, %c0_58] : memref<8x8x4xf32, #tpu.memory_space<vmem>>, vector<1x8x4xf32>
    %87 = vector.shape_cast %86 : vector<1x8x4xf32> to vector<8x4xf32>
    %88 = vector.shape_cast %85 : vector<8x4xf32> to vector<1x8x4xf32>
    tpu.vector_store %arg23[%c1_56, %c0_57, %c0_58], %88 {strides = array<i32>} : memref<8x8x4xf32, #tpu.memory_space<vmem>>, vector<1x8x4xf32>,
    %c1_59 = arith.constant 1 : index
    %c0_60 = arith.constant 0 : index
    %c0_61 = arith.constant 0 : index
    %89 = vector.load %arg21[%c1_59, %c0_60, %c0_61] : memref<8x8x1xf32, #tpu.memory_space<vmem>>, vector<1x8x1xf32>
    %90 = vector.shape_cast %89 : vector<1x8x1xf32> to vector<8x1xf32>
    %91 = vector.shape_cast %65 : vector<8x1xf32> to vector<1x8x1xf32>
    tpu.vector_store %arg21[%c1_59, %c0_60, %c0_61], %91 {strides = array<i32>} : memref<8x8x1xf32, #tpu.memory_space<vmem>>, vector<1x8x1xf32>,
    %92 = vector.extract_strided_slice %17 {offsets = [0, 8], sizes = [8, 4], strides = [1, 1]} : vector<8x32xf32> to vector<8x4xf32>
    %93 = vector.extract_strided_slice %9 {offsets = [0, 8], sizes = [8, 4], strides = [1, 1]} : vector<8x32xf32> to vector<8x4xf32>
    %94 = vector.extract_strided_slice %16 {offsets = [0, 8], sizes = [8, 4], strides = [1, 1]} : vector<8x32xf32> to vector<8x4xf32>
    %cst_62 = arith.constant dense<0.000000e+00> : vector<8x8xf32>
    %95 = tpu.matmul %92, %93, %cst_62 {dimension_numbers = #tpu.dot_dimension_numbers<[1], [1], [0], [0], [0, 0, 1, 0], [], []>} : vector<8x4xf32>, vector<8x4xf32>, vector<8x8xf32> -> vector<8x8xf32>
    %cst_63 = arith.constant 5.000000e-01 : f32
    %96 = vector.broadcast %cst_63 : f32 to vector<8x8xf32>
    %97 = arith.mulf %95, %96 : vector<8x8xf32>
    %c2 = arith.constant 2 : index
    %c0_64 = arith.constant 0 : index
    %c0_65 = arith.constant 0 : index
    %98 = vector.load %arg21[%c2, %c0_64, %c0_65] : memref<8x8x1xf32, #tpu.memory_space<vmem>>, vector<1x8x1xf32>
    %99 = vector.shape_cast %98 : vector<1x8x1xf32> to vector<8x1xf32>
    %cst_66 = arith.constant dense<0xFF800000> : vector<8xf32>
    %100 = vector.multi_reduction <maximumf>, %97, %cst_66 [1] : vector<8x8xf32> to vector<8xf32>
    %101 = vector.shape_cast %100 : vector<8xf32> to vector<8x1xf32>
    %102 = arith.maximumf %99, %101 : vector<8x1xf32>
    %103 = arith.subf %99, %102 : vector<8x1xf32>
    %104 = math.exp %103 : vector<8x1xf32>
    %105 = vector.broadcast %102 : vector<8x1xf32> to vector<8x8xf32>
    %106 = arith.subf %97, %105 : vector<8x8xf32>
    %107 = math.exp %106 : vector<8x8xf32>
    %c2_67 = arith.constant 2 : index
    %c0_68 = arith.constant 0 : index
    %c0_69 = arith.constant 0 : index
    %108 = vector.load %arg22[%c2_67, %c0_68, %c0_69] : memref<8x8x1xf32, #tpu.memory_space<vmem>>, vector<1x8x1xf32>
    %109 = vector.shape_cast %108 : vector<1x8x1xf32> to vector<8x1xf32>
    %110 = arith.mulf %104, %109 : vector<8x1xf32>
    %cst_70 = arith.constant dense<0.000000e+00> : vector<8xf32>
    %111 = vector.multi_reduction <add>, %107, %cst_70 [1] : vector<8x8xf32> to vector<8xf32>
    %112 = vector.shape_cast %111 : vector<8xf32> to vector<8x1xf32>
    %113 = arith.addf %110, %112 : vector<8x1xf32>
    %c2_71 = arith.constant 2 : index
    %c0_72 = arith.constant 0 : index
    %c0_73 = arith.constant 0 : index
    %114 = vector.load %arg22[%c2_71, %c0_72, %c0_73] : memref<8x8x1xf32, #tpu.memory_space<vmem>>, vector<1x8x1xf32>
    %115 = vector.shape_cast %114 : vector<1x8x1xf32> to vector<8x1xf32>
    %116 = vector.shape_cast %113 : vector<8x1xf32> to vector<1x8x1xf32>
    tpu.vector_store %arg22[%c2_71, %c0_72, %c0_73], %116 {strides = array<i32>} : memref<8x8x1xf32, #tpu.memory_space<vmem>>, vector<1x8x1xf32>,
    %c2_74 = arith.constant 2 : index
    %c0_75 = arith.constant 0 : index
    %c0_76 = arith.constant 0 : index
    %117 = vector.load %arg23[%c2_74, %c0_75, %c0_76] : memref<8x8x4xf32, #tpu.memory_space<vmem>>, vector<1x8x4xf32>
    %118 = vector.shape_cast %117 : vector<1x8x4xf32> to vector<8x4xf32>
    %119 = vector.broadcast %104 : vector<8x1xf32> to vector<8x4xf32>
    %120 = arith.mulf %119, %118 : vector<8x4xf32>
    %cst_77 = arith.constant dense<0.000000e+00> : vector<8x4xf32>
    %121 = tpu.matmul %107, %94, %cst_77 {dimension_numbers = #tpu.dot_dimension_numbers<[1], [0], [0], [1], [0, 0, 1, 1], [], []>} : vector<8x8xf32>, vector<8x4xf32>, vector<8x4xf32> -> vector<8x4xf32>
    %122 = arith.addf %120, %121 : vector<8x4xf32>
    %c2_78 = arith.constant 2 : index
    %c0_79 = arith.constant 0 : index
    %c0_80 = arith.constant 0 : index
    %123 = vector.load %arg23[%c2_78, %c0_79, %c0_80] : memref<8x8x4xf32, #tpu.memory_space<vmem>>, vector<1x8x4xf32>
    %124 = vector.shape_cast %123 : vector<1x8x4xf32> to vector<8x4xf32>
    %125 = vector.shape_cast %122 : vector<8x4xf32> to vector<1x8x4xf32>
    tpu.vector_store %arg23[%c2_78, %c0_79, %c0_80], %125 {strides = array<i32>} : memref<8x8x4xf32, #tpu.memory_space<vmem>>, vector<1x8x4xf32>,
    %c2_81 = arith.constant 2 : index
    %c0_82 = arith.constant 0 : index
    %c0_83 = arith.constant 0 : index
    %126 = vector.load %arg21[%c2_81, %c0_82, %c0_83] : memref<8x8x1xf32, #tpu.memory_space<vmem>>, vector<1x8x1xf32>
    %127 = vector.shape_cast %126 : vector<1x8x1xf32> to vector<8x1xf32>
    %128 = vector.shape_cast %102 : vector<8x1xf32> to vector<1x8x1xf32>
    tpu.vector_store %arg21[%c2_81, %c0_82, %c0_83], %128 {strides = array<i32>} : memref<8x8x1xf32, #tpu.memory_space<vmem>>, vector<1x8x1xf32>,
    %129 = vector.extract_strided_slice %17 {offsets = [0, 12], sizes = [8, 4], strides = [1, 1]} : vector<8x32xf32> to vector<8x4xf32>
    %130 = vector.extract_strided_slice %9 {offsets = [0, 12], sizes = [8, 4], strides = [1, 1]} : vector<8x32xf32> to vector<8x4xf32>
    %131 = vector.extract_strided_slice %16 {offsets = [0, 12], sizes = [8, 4], strides = [1, 1]} : vector<8x32xf32> to vector<8x4xf32>
    %cst_84 = arith.constant dense<0.000000e+00> : vector<8x8xf32>
    %132 = tpu.matmul %129, %130, %cst_84 {dimension_numbers = #tpu.dot_dimension_numbers<[1], [1], [0], [0], [0, 0, 1, 0], [], []>} : vector<8x4xf32>, vector<8x4xf32>, vector<8x8xf32> -> vector<8x8xf32>
    %cst_85 = arith.constant 5.000000e-01 : f32
    %133 = vector.broadcast %cst_85 : f32 to vector<8x8xf32>
    %134 = arith.mulf %132, %133 : vector<8x8xf32>
    %c3 = arith.constant 3 : index
    %c0_86 = arith.constant 0 : index
    %c0_87 = arith.constant 0 : index
    %135 = vector.load %arg21[%c3, %c0_86, %c0_87] : memref<8x8x1xf32, #tpu.memory_space<vmem>>, vector<1x8x1xf32>
    %136 = vector.shape_cast %135 : vector<1x8x1xf32> to vector<8x1xf32>
    %cst_88 = arith.constant dense<0xFF800000> : vector<8xf32>
    %137 = vector.multi_reduction <maximumf>, %134, %cst_88 [1] : vector<8x8xf32> to vector<8xf32>
    %138 = vector.shape_cast %137 : vector<8xf32> to vector<8x1xf32>
    %139 = arith.maximumf %136, %138 : vector<8x1xf32>
    %140 = arith.subf %136, %139 : vector<8x1xf32>
    %141 = math.exp %140 : vector<8x1xf32>
    %142 = vector.broadcast %139 : vector<8x1xf32> to vector<8x8xf32>
    %143 = arith.subf %134, %142 : vector<8x8xf32>
    %144 = math.exp %143 : vector<8x8xf32>
    %c3_89 = arith.constant 3 : index
    %c0_90 = arith.constant 0 : index
    %c0_91 = arith.constant 0 : index
    %145 = vector.load %arg22[%c3_89, %c0_90, %c0_91] : memref<8x8x1xf32, #tpu.memory_space<vmem>>, vector<1x8x1xf32>
    %146 = vector.shape_cast %145 : vector<1x8x1xf32> to vector<8x1xf32>
    %147 = arith.mulf %141, %146 : vector<8x1xf32>
    %cst_92 = arith.constant dense<0.000000e+00> : vector<8xf32>
    %148 = vector.multi_reduction <add>, %144, %cst_92 [1] : vector<8x8xf32> to vector<8xf32>
    %149 = vector.shape_cast %148 : vector<8xf32> to vector<8x1xf32>
    %150 = arith.addf %147, %149 : vector<8x1xf32>
    %c3_93 = arith.constant 3 : index
    %c0_94 = arith.constant 0 : index
    %c0_95 = arith.constant 0 : index
    %151 = vector.load %arg22[%c3_93, %c0_94, %c0_95] : memref<8x8x1xf32, #tpu.memory_space<vmem>>, vector<1x8x1xf32>
    %152 = vector.shape_cast %151 : vector<1x8x1xf32> to vector<8x1xf32>
    %153 = vector.shape_cast %150 : vector<8x1xf32> to vector<1x8x1xf32>
    tpu.vector_store %arg22[%c3_93, %c0_94, %c0_95], %153 {strides = array<i32>} : memref<8x8x1xf32, #tpu.memory_space<vmem>>, vector<1x8x1xf32>,
    %c3_96 = arith.constant 3 : index
    %c0_97 = arith.constant 0 : index
    %c0_98 = arith.constant 0 : index
    %154 = vector.load %arg23[%c3_96, %c0_97, %c0_98] : memref<8x8x4xf32, #tpu.memory_space<vmem>>, vector<1x8x4xf32>
    %155 = vector.shape_cast %154 : vector<1x8x4xf32> to vector<8x4xf32>
    %156 = vector.broadcast %141 : vector<8x1xf32> to vector<8x4xf32>
    %157 = arith.mulf %156, %155 : vector<8x4xf32>
    %cst_99 = arith.constant dense<0.000000e+00> : vector<8x4xf32>
    %158 = tpu.matmul %144, %131, %cst_99 {dimension_numbers = #tpu.dot_dimension_numbers<[1], [0], [0], [1], [0, 0, 1, 1], [], []>} : vector<8x8xf32>, vector<8x4xf32>, vector<8x4xf32> -> vector<8x4xf32>
    %159 = arith.addf %157, %158 : vector<8x4xf32>
    %c3_100 = arith.constant 3 : index
    %c0_101 = arith.constant 0 : index
    %c0_102 = arith.constant 0 : index
    %160 = vector.load %arg23[%c3_100, %c0_101, %c0_102] : memref<8x8x4xf32, #tpu.memory_space<vmem>>, vector<1x8x4xf32>
    %161 = vector.shape_cast %160 : vector<1x8x4xf32> to vector<8x4xf32>
    %162 = vector.shape_cast %159 : vector<8x4xf32> to vector<1x8x4xf32>
    tpu.vector_store %arg23[%c3_100, %c0_101, %c0_102], %162 {strides = array<i32>} : memref<8x8x4xf32, #tpu.memory_space<vmem>>, vector<1x8x4xf32>,
    %c3_103 = arith.constant 3 : index
    %c0_104 = arith.constant 0 : index
    %c0_105 = arith.constant 0 : index
    %163 = vector.load %arg21[%c3_103, %c0_104, %c0_105] : memref<8x8x1xf32, #tpu.memory_space<vmem>>, vector<1x8x1xf32>
    %164 = vector.shape_cast %163 : vector<1x8x1xf32> to vector<8x1xf32>
    %165 = vector.shape_cast %139 : vector<8x1xf32> to vector<1x8x1xf32>
    tpu.vector_store %arg21[%c3_103, %c0_104, %c0_105], %165 {strides = array<i32>} : memref<8x8x1xf32, #tpu.memory_space<vmem>>, vector<1x8x1xf32>,
    %166 = vector.extract_strided_slice %17 {offsets = [0, 16], sizes = [8, 4], strides = [1, 1]} : vector<8x32xf32> to vector<8x4xf32>
    %167 = vector.extract_strided_slice %9 {offsets = [0, 16], sizes = [8, 4], strides = [1, 1]} : vector<8x32xf32> to vector<8x4xf32>
    %168 = vector.extract_strided_slice %16 {offsets = [0, 16], sizes = [8, 4], strides = [1, 1]} : vector<8x32xf32> to vector<8x4xf32>
    %cst_106 = arith.constant dense<0.000000e+00> : vector<8x8xf32>
    %169 = tpu.matmul %166, %167, %cst_106 {dimension_numbers = #tpu.dot_dimension_numbers<[1], [1], [0], [0], [0, 0, 1, 0], [], []>} : vector<8x4xf32>, vector<8x4xf32>, vector<8x8xf32> -> vector<8x8xf32>
    %cst_107 = arith.constant 5.000000e-01 : f32
    %170 = vector.broadcast %cst_107 : f32 to vector<8x8xf32>
    %171 = arith.mulf %169, %170 : vector<8x8xf32>
    %c4 = arith.constant 4 : index
    %c0_108 = arith.constant 0 : index
    %c0_109 = arith.constant 0 : index
    %172 = vector.load %arg21[%c4, %c0_108, %c0_109] : memref<8x8x1xf32, #tpu.memory_space<vmem>>, vector<1x8x1xf32>
    %173 = vector.shape_cast %172 : vector<1x8x1xf32> to vector<8x1xf32>
    %cst_110 = arith.constant dense<0xFF800000> : vector<8xf32>
    %174 = vector.multi_reduction <maximumf>, %171, %cst_110 [1] : vector<8x8xf32> to vector<8xf32>
    %175 = vector.shape_cast %174 : vector<8xf32> to vector<8x1xf32>
    %176 = arith.maximumf %173, %175 : vector<8x1xf32>
    %177 = arith.subf %173, %176 : vector<8x1xf32>
    %178 = math.exp %177 : vector<8x1xf32>
    %179 = vector.broadcast %176 : vector<8x1xf32> to vector<8x8xf32>
    %180 = arith.subf %171, %179 : vector<8x8xf32>
    %181 = math.exp %180 : vector<8x8xf32>
    %c4_111 = arith.constant 4 : index
    %c0_112 = arith.constant 0 : index
    %c0_113 = arith.constant 0 : index
    %182 = vector.load %arg22[%c4_111, %c0_112, %c0_113] : memref<8x8x1xf32, #tpu.memory_space<vmem>>, vector<1x8x1xf32>
    %183 = vector.shape_cast %182 : vector<1x8x1xf32> to vector<8x1xf32>
    %184 = arith.mulf %178, %183 : vector<8x1xf32>
    %cst_114 = arith.constant dense<0.000000e+00> : vector<8xf32>
    %185 = vector.multi_reduction <add>, %181, %cst_114 [1] : vector<8x8xf32> to vector<8xf32>
    %186 = vector.shape_cast %185 : vector<8xf32> to vector<8x1xf32>
    %187 = arith.addf %184, %186 : vector<8x1xf32>
    %c4_115 = arith.constant 4 : index
    %c0_116 = arith.constant 0 : index
    %c0_117 = arith.constant 0 : index
    %188 = vector.load %arg22[%c4_115, %c0_116, %c0_117] : memref<8x8x1xf32, #tpu.memory_space<vmem>>, vector<1x8x1xf32>
    %189 = vector.shape_cast %188 : vector<1x8x1xf32> to vector<8x1xf32>
    %190 = vector.shape_cast %187 : vector<8x1xf32> to vector<1x8x1xf32>
    tpu.vector_store %arg22[%c4_115, %c0_116, %c0_117], %190 {strides = array<i32>} : memref<8x8x1xf32, #tpu.memory_space<vmem>>, vector<1x8x1xf32>,
    %c4_118 = arith.constant 4 : index
    %c0_119 = arith.constant 0 : index
    %c0_120 = arith.constant 0 : index
    %191 = vector.load %arg23[%c4_118, %c0_119, %c0_120] : memref<8x8x4xf32, #tpu.memory_space<vmem>>, vector<1x8x4xf32>
    %192 = vector.shape_cast %191 : vector<1x8x4xf32> to vector<8x4xf32>
    %193 = vector.broadcast %178 : vector<8x1xf32> to vector<8x4xf32>
    %194 = arith.mulf %193, %192 : vector<8x4xf32>
    %cst_121 = arith.constant dense<0.000000e+00> : vector<8x4xf32>
    %195 = tpu.matmul %181, %168, %cst_121 {dimension_numbers = #tpu.dot_dimension_numbers<[1], [0], [0], [1], [0, 0, 1, 1], [], []>} : vector<8x8xf32>, vector<8x4xf32>, vector<8x4xf32> -> vector<8x4xf32>
    %196 = arith.addf %194, %195 : vector<8x4xf32>
    %c4_122 = arith.constant 4 : index
    %c0_123 = arith.constant 0 : index
    %c0_124 = arith.constant 0 : index
    %197 = vector.load %arg23[%c4_122, %c0_123, %c0_124] : memref<8x8x4xf32, #tpu.memory_space<vmem>>, vector<1x8x4xf32>
    %198 = vector.shape_cast %197 : vector<1x8x4xf32> to vector<8x4xf32>
    %199 = vector.shape_cast %196 : vector<8x4xf32> to vector<1x8x4xf32>
    tpu.vector_store %arg23[%c4_122, %c0_123, %c0_124], %199 {strides = array<i32>} : memref<8x8x4xf32, #tpu.memory_space<vmem>>, vector<1x8x4xf32>,
    %c4_125 = arith.constant 4 : index
    %c0_126 = arith.constant 0 : index
    %c0_127 = arith.constant 0 : index
    %200 = vector.load %arg21[%c4_125, %c0_126, %c0_127] : memref<8x8x1xf32, #tpu.memory_space<vmem>>, vector<1x8x1xf32>
    %201 = vector.shape_cast %200 : vector<1x8x1xf32> to vector<8x1xf32>
    %202 = vector.shape_cast %176 : vector<8x1xf32> to vector<1x8x1xf32>
    tpu.vector_store %arg21[%c4_125, %c0_126, %c0_127], %202 {strides = array<i32>} : memref<8x8x1xf32, #tpu.memory_space<vmem>>, vector<1x8x1xf32>,
    %203 = vector.extract_strided_slice %17 {offsets = [0, 20], sizes = [8, 4], strides = [1, 1]} : vector<8x32xf32> to vector<8x4xf32>
    %204 = vector.extract_strided_slice %9 {offsets = [0, 20], sizes = [8, 4], strides = [1, 1]} : vector<8x32xf32> to vector<8x4xf32>
    %205 = vector.extract_strided_slice %16 {offsets = [0, 20], sizes = [8, 4], strides = [1, 1]} : vector<8x32xf32> to vector<8x4xf32>
    %cst_128 = arith.constant dense<0.000000e+00> : vector<8x8xf32>
    %206 = tpu.matmul %203, %204, %cst_128 {dimension_numbers = #tpu.dot_dimension_numbers<[1], [1], [0], [0], [0, 0, 1, 0], [], []>} : vector<8x4xf32>, vector<8x4xf32>, vector<8x8xf32> -> vector<8x8xf32>
    %cst_129 = arith.constant 5.000000e-01 : f32
    %207 = vector.broadcast %cst_129 : f32 to vector<8x8xf32>
    %208 = arith.mulf %206, %207 : vector<8x8xf32>
    %c5 = arith.constant 5 : index
    %c0_130 = arith.constant 0 : index
    %c0_131 = arith.constant 0 : index
    %209 = vector.load %arg21[%c5, %c0_130, %c0_131] : memref<8x8x1xf32, #tpu.memory_space<vmem>>, vector<1x8x1xf32>
    %210 = vector.shape_cast %209 : vector<1x8x1xf32> to vector<8x1xf32>
    %cst_132 = arith.constant dense<0xFF800000> : vector<8xf32>
    %211 = vector.multi_reduction <maximumf>, %208, %cst_132 [1] : vector<8x8xf32> to vector<8xf32>
    %212 = vector.shape_cast %211 : vector<8xf32> to vector<8x1xf32>
    %213 = arith.maximumf %210, %212 : vector<8x1xf32>
    %214 = arith.subf %210, %213 : vector<8x1xf32>
    %215 = math.exp %214 : vector<8x1xf32>
    %216 = vector.broadcast %213 : vector<8x1xf32> to vector<8x8xf32>
    %217 = arith.subf %208, %216 : vector<8x8xf32>
    %218 = math.exp %217 : vector<8x8xf32>
    %c5_133 = arith.constant 5 : index
    %c0_134 = arith.constant 0 : index
    %c0_135 = arith.constant 0 : index
    %219 = vector.load %arg22[%c5_133, %c0_134, %c0_135] : memref<8x8x1xf32, #tpu.memory_space<vmem>>, vector<1x8x1xf32>
    %220 = vector.shape_cast %219 : vector<1x8x1xf32> to vector<8x1xf32>
    %221 = arith.mulf %215, %220 : vector<8x1xf32>
    %cst_136 = arith.constant dense<0.000000e+00> : vector<8xf32>
    %222 = vector.multi_reduction <add>, %218, %cst_136 [1] : vector<8x8xf32> to vector<8xf32>
    %223 = vector.shape_cast %222 : vector<8xf32> to vector<8x1xf32>
    %224 = arith.addf %221, %223 : vector<8x1xf32>
    %c5_137 = arith.constant 5 : index
    %c0_138 = arith.constant 0 : index
    %c0_139 = arith.constant 0 : index
    %225 = vector.load %arg22[%c5_137, %c0_138, %c0_139] : memref<8x8x1xf32, #tpu.memory_space<vmem>>, vector<1x8x1xf32>
    %226 = vector.shape_cast %225 : vector<1x8x1xf32> to vector<8x1xf32>
    %227 = vector.shape_cast %224 : vector<8x1xf32> to vector<1x8x1xf32>
    tpu.vector_store %arg22[%c5_137, %c0_138, %c0_139], %227 {strides = array<i32>} : memref<8x8x1xf32, #tpu.memory_space<vmem>>, vector<1x8x1xf32>,
    %c5_140 = arith.constant 5 : index
    %c0_141 = arith.constant 0 : index
    %c0_142 = arith.constant 0 : index
    %228 = vector.load %arg23[%c5_140, %c0_141, %c0_142] : memref<8x8x4xf32, #tpu.memory_space<vmem>>, vector<1x8x4xf32>
    %229 = vector.shape_cast %228 : vector<1x8x4xf32> to vector<8x4xf32>
    %230 = vector.broadcast %215 : vector<8x1xf32> to vector<8x4xf32>
    %231 = arith.mulf %230, %229 : vector<8x4xf32>
    %cst_143 = arith.constant dense<0.000000e+00> : vector<8x4xf32>
    %232 = tpu.matmul %218, %205, %cst_143 {dimension_numbers = #tpu.dot_dimension_numbers<[1], [0], [0], [1], [0, 0, 1, 1], [], []>} : vector<8x8xf32>, vector<8x4xf32>, vector<8x4xf32> -> vector<8x4xf32>
    %233 = arith.addf %231, %232 : vector<8x4xf32>
    %c5_144 = arith.constant 5 : index
    %c0_145 = arith.constant 0 : index
    %c0_146 = arith.constant 0 : index
    %234 = vector.load %arg23[%c5_144, %c0_145, %c0_146] : memref<8x8x4xf32, #tpu.memory_space<vmem>>, vector<1x8x4xf32>
    %235 = vector.shape_cast %234 : vector<1x8x4xf32> to vector<8x4xf32>
    %236 = vector.shape_cast %233 : vector<8x4xf32> to vector<1x8x4xf32>
    tpu.vector_store %arg23[%c5_144, %c0_145, %c0_146], %236 {strides = array<i32>} : memref<8x8x4xf32, #tpu.memory_space<vmem>>, vector<1x8x4xf32>,
    %c5_147 = arith.constant 5 : index
    %c0_148 = arith.constant 0 : index
    %c0_149 = arith.constant 0 : index
    %237 = vector.load %arg21[%c5_147, %c0_148, %c0_149] : memref<8x8x1xf32, #tpu.memory_space<vmem>>, vector<1x8x1xf32>
    %238 = vector.shape_cast %237 : vector<1x8x1xf32> to vector<8x1xf32>
    %239 = vector.shape_cast %213 : vector<8x1xf32> to vector<1x8x1xf32>
    tpu.vector_store %arg21[%c5_147, %c0_148, %c0_149], %239 {strides = array<i32>} : memref<8x8x1xf32, #tpu.memory_space<vmem>>, vector<1x8x1xf32>,
    %240 = vector.extract_strided_slice %17 {offsets = [0, 24], sizes = [8, 4], strides = [1, 1]} : vector<8x32xf32> to vector<8x4xf32>
    %241 = vector.extract_strided_slice %9 {offsets = [0, 24], sizes = [8, 4], strides = [1, 1]} : vector<8x32xf32> to vector<8x4xf32>
    %242 = vector.extract_strided_slice %16 {offsets = [0, 24], sizes = [8, 4], strides = [1, 1]} : vector<8x32xf32> to vector<8x4xf32>
    %cst_150 = arith.constant dense<0.000000e+00> : vector<8x8xf32>
    %243 = tpu.matmul %240, %241, %cst_150 {dimension_numbers = #tpu.dot_dimension_numbers<[1], [1], [0], [0], [0, 0, 1, 0], [], []>} : vector<8x4xf32>, vector<8x4xf32>, vector<8x8xf32> -> vector<8x8xf32>
    %cst_151 = arith.constant 5.000000e-01 : f32
    %244 = vector.broadcast %cst_151 : f32 to vector<8x8xf32>
    %245 = arith.mulf %243, %244 : vector<8x8xf32>
    %c6 = arith.constant 6 : index
    %c0_152 = arith.constant 0 : index
    %c0_153 = arith.constant 0 : index
    %246 = vector.load %arg21[%c6, %c0_152, %c0_153] : memref<8x8x1xf32, #tpu.memory_space<vmem>>, vector<1x8x1xf32>
    %247 = vector.shape_cast %246 : vector<1x8x1xf32> to vector<8x1xf32>
    %cst_154 = arith.constant dense<0xFF800000> : vector<8xf32>
    %248 = vector.multi_reduction <maximumf>, %245, %cst_154 [1] : vector<8x8xf32> to vector<8xf32>
    %249 = vector.shape_cast %248 : vector<8xf32> to vector<8x1xf32>
    %250 = arith.maximumf %247, %249 : vector<8x1xf32>
    %251 = arith.subf %247, %250 : vector<8x1xf32>
    %252 = math.exp %251 : vector<8x1xf32>
    %253 = vector.broadcast %250 : vector<8x1xf32> to vector<8x8xf32>
    %254 = arith.subf %245, %253 : vector<8x8xf32>
    %255 = math.exp %254 : vector<8x8xf32>
    %c6_155 = arith.constant 6 : index
    %c0_156 = arith.constant 0 : index
    %c0_157 = arith.constant 0 : index
    %256 = vector.load %arg22[%c6_155, %c0_156, %c0_157] : memref<8x8x1xf32, #tpu.memory_space<vmem>>, vector<1x8x1xf32>
    %257 = vector.shape_cast %256 : vector<1x8x1xf32> to vector<8x1xf32>
    %258 = arith.mulf %252, %257 : vector<8x1xf32>
    %cst_158 = arith.constant dense<0.000000e+00> : vector<8xf32>
    %259 = vector.multi_reduction <add>, %255, %cst_158 [1] : vector<8x8xf32> to vector<8xf32>
    %260 = vector.shape_cast %259 : vector<8xf32> to vector<8x1xf32>
    %261 = arith.addf %258, %260 : vector<8x1xf32>
    %c6_159 = arith.constant 6 : index
    %c0_160 = arith.constant 0 : index
    %c0_161 = arith.constant 0 : index
    %262 = vector.load %arg22[%c6_159, %c0_160, %c0_161] : memref<8x8x1xf32, #tpu.memory_space<vmem>>, vector<1x8x1xf32>
    %263 = vector.shape_cast %262 : vector<1x8x1xf32> to vector<8x1xf32>
    %264 = vector.shape_cast %261 : vector<8x1xf32> to vector<1x8x1xf32>
    tpu.vector_store %arg22[%c6_159, %c0_160, %c0_161], %264 {strides = array<i32>} : memref<8x8x1xf32, #tpu.memory_space<vmem>>, vector<1x8x1xf32>,
    %c6_162 = arith.constant 6 : index
    %c0_163 = arith.constant 0 : index
    %c0_164 = arith.constant 0 : index
    %265 = vector.load %arg23[%c6_162, %c0_163, %c0_164] : memref<8x8x4xf32, #tpu.memory_space<vmem>>, vector<1x8x4xf32>
    %266 = vector.shape_cast %265 : vector<1x8x4xf32> to vector<8x4xf32>
    %267 = vector.broadcast %252 : vector<8x1xf32> to vector<8x4xf32>
    %268 = arith.mulf %267, %266 : vector<8x4xf32>
    %cst_165 = arith.constant dense<0.000000e+00> : vector<8x4xf32>
    %269 = tpu.matmul %255, %242, %cst_165 {dimension_numbers = #tpu.dot_dimension_numbers<[1], [0], [0], [1], [0, 0, 1, 1], [], []>} : vector<8x8xf32>, vector<8x4xf32>, vector<8x4xf32> -> vector<8x4xf32>
    %270 = arith.addf %268, %269 : vector<8x4xf32>
    %c6_166 = arith.constant 6 : index
    %c0_167 = arith.constant 0 : index
    %c0_168 = arith.constant 0 : index
    %271 = vector.load %arg23[%c6_166, %c0_167, %c0_168] : memref<8x8x4xf32, #tpu.memory_space<vmem>>, vector<1x8x4xf32>
    %272 = vector.shape_cast %271 : vector<1x8x4xf32> to vector<8x4xf32>
    %273 = vector.shape_cast %270 : vector<8x4xf32> to vector<1x8x4xf32>
    tpu.vector_store %arg23[%c6_166, %c0_167, %c0_168], %273 {strides = array<i32>} : memref<8x8x4xf32, #tpu.memory_space<vmem>>, vector<1x8x4xf32>,
    %c6_169 = arith.constant 6 : index
    %c0_170 = arith.constant 0 : index
    %c0_171 = arith.constant 0 : index
    %274 = vector.load %arg21[%c6_169, %c0_170, %c0_171] : memref<8x8x1xf32, #tpu.memory_space<vmem>>, vector<1x8x1xf32>
    %275 = vector.shape_cast %274 : vector<1x8x1xf32> to vector<8x1xf32>
    %276 = vector.shape_cast %250 : vector<8x1xf32> to vector<1x8x1xf32>
    tpu.vector_store %arg21[%c6_169, %c0_170, %c0_171], %276 {strides = array<i32>} : memref<8x8x1xf32, #tpu.memory_space<vmem>>, vector<1x8x1xf32>,
    %277 = vector.extract_strided_slice %17 {offsets = [0, 28], sizes = [8, 4], strides = [1, 1]} : vector<8x32xf32> to vector<8x4xf32>
    %278 = vector.extract_strided_slice %9 {offsets = [0, 28], sizes = [8, 4], strides = [1, 1]} : vector<8x32xf32> to vector<8x4xf32>
    %279 = vector.extract_strided_slice %16 {offsets = [0, 28], sizes = [8, 4], strides = [1, 1]} : vector<8x32xf32> to vector<8x4xf32>
    %cst_172 = arith.constant dense<0.000000e+00> : vector<8x8xf32>
    %280 = tpu.matmul %277, %278, %cst_172 {dimension_numbers = #tpu.dot_dimension_numbers<[1], [1], [0], [0], [0, 0, 1, 0], [], []>} : vector<8x4xf32>, vector<8x4xf32>, vector<8x8xf32> -> vector<8x8xf32>
    %cst_173 = arith.constant 5.000000e-01 : f32
    %281 = vector.broadcast %cst_173 : f32 to vector<8x8xf32>
    %282 = arith.mulf %280, %281 : vector<8x8xf32>
    %c7 = arith.constant 7 : index
    %c0_174 = arith.constant 0 : index
    %c0_175 = arith.constant 0 : index
    %283 = vector.load %arg21[%c7, %c0_174, %c0_175] : memref<8x8x1xf32, #tpu.memory_space<vmem>>, vector<1x8x1xf32>
    %284 = vector.shape_cast %283 : vector<1x8x1xf32> to vector<8x1xf32>
    %cst_176 = arith.constant dense<0xFF800000> : vector<8xf32>
    %285 = vector.multi_reduction <maximumf>, %282, %cst_176 [1] : vector<8x8xf32> to vector<8xf32>
    %286 = vector.shape_cast %285 : vector<8xf32> to vector<8x1xf32>
    %287 = arith.maximumf %284, %286 : vector<8x1xf32>
    %288 = arith.subf %284, %287 : vector<8x1xf32>
    %289 = math.exp %288 : vector<8x1xf32>
    %290 = vector.broadcast %287 : vector<8x1xf32> to vector<8x8xf32>
    %291 = arith.subf %282, %290 : vector<8x8xf32>
    %292 = math.exp %291 : vector<8x8xf32>
    %c7_177 = arith.constant 7 : index
    %c0_178 = arith.constant 0 : index
    %c0_179 = arith.constant 0 : index
    %293 = vector.load %arg22[%c7_177, %c0_178, %c0_179] : memref<8x8x1xf32, #tpu.memory_space<vmem>>, vector<1x8x1xf32>
    %294 = vector.shape_cast %293 : vector<1x8x1xf32> to vector<8x1xf32>
    %295 = arith.mulf %289, %294 : vector<8x1xf32>
    %cst_180 = arith.constant dense<0.000000e+00> : vector<8xf32>
    %296 = vector.multi_reduction <add>, %292, %cst_180 [1] : vector<8x8xf32> to vector<8xf32>
    %297 = vector.shape_cast %296 : vector<8xf32> to vector<8x1xf32>
    %298 = arith.addf %295, %297 : vector<8x1xf32>
    %c7_181 = arith.constant 7 : index
    %c0_182 = arith.constant 0 : index
    %c0_183 = arith.constant 0 : index
    %299 = vector.load %arg22[%c7_181, %c0_182, %c0_183] : memref<8x8x1xf32, #tpu.memory_space<vmem>>, vector<1x8x1xf32>
    %300 = vector.shape_cast %299 : vector<1x8x1xf32> to vector<8x1xf32>
    %301 = vector.shape_cast %298 : vector<8x1xf32> to vector<1x8x1xf32>
    tpu.vector_store %arg22[%c7_181, %c0_182, %c0_183], %301 {strides = array<i32>} : memref<8x8x1xf32, #tpu.memory_space<vmem>>, vector<1x8x1xf32>,
    %c7_184 = arith.constant 7 : index
    %c0_185 = arith.constant 0 : index
    %c0_186 = arith.constant 0 : index
    %302 = vector.load %arg23[%c7_184, %c0_185, %c0_186] : memref<8x8x4xf32, #tpu.memory_space<vmem>>, vector<1x8x4xf32>
    %303 = vector.shape_cast %302 : vector<1x8x4xf32> to vector<8x4xf32>
    %304 = vector.broadcast %289 : vector<8x1xf32> to vector<8x4xf32>
    %305 = arith.mulf %304, %303 : vector<8x4xf32>
    %cst_187 = arith.constant dense<0.000000e+00> : vector<8x4xf32>
    %306 = tpu.matmul %292, %279, %cst_187 {dimension_numbers = #tpu.dot_dimension_numbers<[1], [0], [0], [1], [0, 0, 1, 1], [], []>} : vector<8x8xf32>, vector<8x4xf32>, vector<8x4xf32> -> vector<8x4xf32>
    %307 = arith.addf %305, %306 : vector<8x4xf32>
    %c7_188 = arith.constant 7 : index
    %c0_189 = arith.constant 0 : index
    %c0_190 = arith.constant 0 : index
    %308 = vector.load %arg23[%c7_188, %c0_189, %c0_190] : memref<8x8x4xf32, #tpu.memory_space<vmem>>, vector<1x8x4xf32>
    %309 = vector.shape_cast %308 : vector<1x8x4xf32> to vector<8x4xf32>
    %310 = vector.shape_cast %307 : vector<8x4xf32> to vector<1x8x4xf32>
    tpu.vector_store %arg23[%c7_188, %c0_189, %c0_190], %310 {strides = array<i32>} : memref<8x8x4xf32, #tpu.memory_space<vmem>>, vector<1x8x4xf32>,
    %c7_191 = arith.constant 7 : index
    %c0_192 = arith.constant 0 : index
    %c0_193 = arith.constant 0 : index
    %311 = vector.load %arg21[%c7_191, %c0_192, %c0_193] : memref<8x8x1xf32, #tpu.memory_space<vmem>>, vector<1x8x1xf32>
    %312 = vector.shape_cast %311 : vector<1x8x1xf32> to vector<8x1xf32>
    %313 = vector.shape_cast %287 : vector<8x1xf32> to vector<1x8x1xf32>
    tpu.vector_store %arg21[%c7_191, %c0_192, %c0_193], %313 {strides = array<i32>} : memref<8x8x1xf32, #tpu.memory_space<vmem>>, vector<1x8x1xf32>,
    %c0_i32_194 = arith.constant 0 : i32
    %314 = arith.cmpi eq, %arg2, %c0_i32_194 : i32
    %315 = arith.extui %314 : i1 to i32
    %c0_i32_195 = arith.constant 0 : i32
    %316 = arith.cmpi ne, %315, %c0_i32_195 : i32
    scf.if %316 {
      %c0_196 = arith.constant 0 : index
      %c0_197 = arith.constant 0 : index
      %317 = vector.load %arg19[%c0_196, %c0_197] : memref<8x32xf32, #tpu.memory_space<vmem>>, vector<8x32xf32>
      %c0_198 = arith.constant 0 : index
      %c0_199 = arith.constant 0 : index
      %318 = vector.load %arg17[%c0_198, %c0_199] : memref<32x32xf32, #tpu.memory_space<vmem>>, vector<32x32xf32>
      %cst_200 = arith.constant dense<0.000000e+00> : vector<8x32xf32>
      %319 = tpu.matmul %317, %318, %cst_200 {dimension_numbers = #tpu.dot_dimension_numbers<[1], [0], [0], [1], [0, 0, 1, 1], [], []>} : vector<8x32xf32>, vector<32x32xf32>, vector<8x32xf32> -> vector<8x32xf32>
      %c0_201 = arith.constant 0 : index
      %c0_202 = arith.constant 0 : index
      %c0_203 = arith.constant 0 : index
      %320 = vector.load %arg23[%c0_201, %c0_202, %c0_203] : memref<8x8x4xf32, #tpu.memory_space<vmem>>, vector<1x8x4xf32>
      %321 = vector.shape_cast %320 : vector<1x8x4xf32> to vector<8x4xf32>
      %c0_204 = arith.constant 0 : index
      %c0_205 = arith.constant 0 : index
      %c0_206 = arith.constant 0 : index
      %322 = vector.load %arg22[%c0_204, %c0_205, %c0_206] : memref<8x8x1xf32, #tpu.memory_space<vmem>>, vector<1x8x1xf32>
      %323 = vector.shape_cast %322 : vector<1x8x1xf32> to vector<8x1xf32>
      %324 = tpu.reciprocal %323 {approx = true} : vector<8x1xf32> -> vector<8x1xf32>
      %325 = vector.broadcast %324 : vector<8x1xf32> to vector<8x4xf32>
      %326 = arith.mulf %321, %325 : vector<8x4xf32>
      %c0_207 = arith.constant 0 : index
      %c0_208 = arith.constant 0 : index
      %327 = vector.load %arg15[%c0_207, %c0_208] : memref<32x32xf32, #tpu.memory_space<vmem>>, vector<4x32xf32>
      %cst_209 = arith.constant dense<0.000000e+00> : vector<8x32xf32>
      %328 = tpu.matmul %326, %327, %cst_209 {dimension_numbers = #tpu.dot_dimension_numbers<[1], [0], [0], [1], [0, 0, 1, 1], [], []>} : vector<8x4xf32>, vector<4x32xf32>, vector<8x32xf32> -> vector<8x32xf32>
      %329 = arith.addf %319, %328 : vector<8x32xf32>
      %c1_210 = arith.constant 1 : index
      %c0_211 = arith.constant 0 : index
      %c0_212 = arith.constant 0 : index
      %330 = vector.load %arg23[%c1_210, %c0_211, %c0_212] : memref<8x8x4xf32, #tpu.memory_space<vmem>>, vector<1x8x4xf32>
      %331 = vector.shape_cast %330 : vector<1x8x4xf32> to vector<8x4xf32>
      %c1_213 = arith.constant 1 : index
      %c0_214 = arith.constant 0 : index
      %c0_215 = arith.constant 0 : index
      %332 = vector.load %arg22[%c1_213, %c0_214, %c0_215] : memref<8x8x1xf32, #tpu.memory_space<vmem>>, vector<1x8x1xf32>
      %333 = vector.shape_cast %332 : vector<1x8x1xf32> to vector<8x1xf32>
      %334 = tpu.reciprocal %333 {approx = true} : vector<8x1xf32> -> vector<8x1xf32>
      %335 = vector.broadcast %334 : vector<8x1xf32> to vector<8x4xf32>
      %336 = arith.mulf %331, %335 : vector<8x4xf32>
      %c4_216 = arith.constant 4 : index
      %c0_217 = arith.constant 0 : index
      %337 = vector.load %arg15[%c4_216, %c0_217] : memref<32x32xf32, #tpu.memory_space<vmem>>, vector<4x32xf32>
      %cst_218 = arith.constant dense<0.000000e+00> : vector<8x32xf32>
      %338 = tpu.matmul %336, %337, %cst_218 {dimension_numbers = #tpu.dot_dimension_numbers<[1], [0], [0], [1], [0, 0, 1, 1], [], []>} : vector<8x4xf32>, vector<4x32xf32>, vector<8x32xf32> -> vector<8x32xf32>
      %339 = arith.addf %329, %338 : vector<8x32xf32>
      %c2_219 = arith.constant 2 : index
      %c0_220 = arith.constant 0 : index
      %c0_221 = arith.constant 0 : index
      %340 = vector.load %arg23[%c2_219, %c0_220, %c0_221] : memref<8x8x4xf32, #tpu.memory_space<vmem>>, vector<1x8x4xf32>
      %341 = vector.shape_cast %340 : vector<1x8x4xf32> to vector<8x4xf32>
      %c2_222 = arith.constant 2 : index
      %c0_223 = arith.constant 0 : index
      %c0_224 = arith.constant 0 : index
      %342 = vector.load %arg22[%c2_222, %c0_223, %c0_224] : memref<8x8x1xf32, #tpu.memory_space<vmem>>, vector<1x8x1xf32>
      %343 = vector.shape_cast %342 : vector<1x8x1xf32> to vector<8x1xf32>
      %344 = tpu.reciprocal %343 {approx = true} : vector<8x1xf32> -> vector<8x1xf32>
      %345 = vector.broadcast %344 : vector<8x1xf32> to vector<8x4xf32>
      %346 = arith.mulf %341, %345 : vector<8x4xf32>
      %c8 = arith.constant 8 : index
      %c0_225 = arith.constant 0 : index
      %347 = vector.load %arg15[%c8, %c0_225] : memref<32x32xf32, #tpu.memory_space<vmem>>, vector<4x32xf32>
      %cst_226 = arith.constant dense<0.000000e+00> : vector<8x32xf32>
      %348 = tpu.matmul %346, %347, %cst_226 {dimension_numbers = #tpu.dot_dimension_numbers<[1], [0], [0], [1], [0, 0, 1, 1], [], []>} : vector<8x4xf32>, vector<4x32xf32>, vector<8x32xf32> -> vector<8x32xf32>
      %349 = arith.addf %339, %348 : vector<8x32xf32>
      %c3_227 = arith.constant 3 : index
      %c0_228 = arith.constant 0 : index
      %c0_229 = arith.constant 0 : index
      %350 = vector.load %arg23[%c3_227, %c0_228, %c0_229] : memref<8x8x4xf32, #tpu.memory_space<vmem>>, vector<1x8x4xf32>
      %351 = vector.shape_cast %350 : vector<1x8x4xf32> to vector<8x4xf32>
      %c3_230 = arith.constant 3 : index
      %c0_231 = arith.constant 0 : index
      %c0_232 = arith.constant 0 : index
      %352 = vector.load %arg22[%c3_230, %c0_231, %c0_232] : memref<8x8x1xf32, #tpu.memory_space<vmem>>, vector<1x8x1xf32>
      %353 = vector.shape_cast %352 : vector<1x8x1xf32> to vector<8x1xf32>
      %354 = tpu.reciprocal %353 {approx = true} : vector<8x1xf32> -> vector<8x1xf32>
      %355 = vector.broadcast %354 : vector<8x1xf32> to vector<8x4xf32>
      %356 = arith.mulf %351, %355 : vector<8x4xf32>
      %c12 = arith.constant 12 : index
      %c0_233 = arith.constant 0 : index
      %357 = vector.load %arg15[%c12, %c0_233] : memref<32x32xf32, #tpu.memory_space<vmem>>, vector<4x32xf32>
      %cst_234 = arith.constant dense<0.000000e+00> : vector<8x32xf32>
      %358 = tpu.matmul %356, %357, %cst_234 {dimension_numbers = #tpu.dot_dimension_numbers<[1], [0], [0], [1], [0, 0, 1, 1], [], []>} : vector<8x4xf32>, vector<4x32xf32>, vector<8x32xf32> -> vector<8x32xf32>
      %359 = arith.addf %349, %358 : vector<8x32xf32>
      %c4_235 = arith.constant 4 : index
      %c0_236 = arith.constant 0 : index
      %c0_237 = arith.constant 0 : index
      %360 = vector.load %arg23[%c4_235, %c0_236, %c0_237] : memref<8x8x4xf32, #tpu.memory_space<vmem>>, vector<1x8x4xf32>
      %361 = vector.shape_cast %360 : vector<1x8x4xf32> to vector<8x4xf32>
      %c4_238 = arith.constant 4 : index
      %c0_239 = arith.constant 0 : index
      %c0_240 = arith.constant 0 : index
      %362 = vector.load %arg22[%c4_238, %c0_239, %c0_240] : memref<8x8x1xf32, #tpu.memory_space<vmem>>, vector<1x8x1xf32>
      %363 = vector.shape_cast %362 : vector<1x8x1xf32> to vector<8x1xf32>
      %364 = tpu.reciprocal %363 {approx = true} : vector<8x1xf32> -> vector<8x1xf32>
      %365 = vector.broadcast %364 : vector<8x1xf32> to vector<8x4xf32>
      %366 = arith.mulf %361, %365 : vector<8x4xf32>
      %c16 = arith.constant 16 : index
      %c0_241 = arith.constant 0 : index
      %367 = vector.load %arg15[%c16, %c0_241] : memref<32x32xf32, #tpu.memory_space<vmem>>, vector<4x32xf32>
      %cst_242 = arith.constant dense<0.000000e+00> : vector<8x32xf32>
      %368 = tpu.matmul %366, %367, %cst_242 {dimension_numbers = #tpu.dot_dimension_numbers<[1], [0], [0], [1], [0, 0, 1, 1], [], []>} : vector<8x4xf32>, vector<4x32xf32>, vector<8x32xf32> -> vector<8x32xf32>
      %369 = arith.addf %359, %368 : vector<8x32xf32>
      %c5_243 = arith.constant 5 : index
      %c0_244 = arith.constant 0 : index
      %c0_245 = arith.constant 0 : index
      %370 = vector.load %arg23[%c5_243, %c0_244, %c0_245] : memref<8x8x4xf32, #tpu.memory_space<vmem>>, vector<1x8x4xf32>
      %371 = vector.shape_cast %370 : vector<1x8x4xf32> to vector<8x4xf32>
      %c5_246 = arith.constant 5 : index
      %c0_247 = arith.constant 0 : index
      %c0_248 = arith.constant 0 : index
      %372 = vector.load %arg22[%c5_246, %c0_247, %c0_248] : memref<8x8x1xf32, #tpu.memory_space<vmem>>, vector<1x8x1xf32>
      %373 = vector.shape_cast %372 : vector<1x8x1xf32> to vector<8x1xf32>
      %374 = tpu.reciprocal %373 {approx = true} : vector<8x1xf32> -> vector<8x1xf32>
      %375 = vector.broadcast %374 : vector<8x1xf32> to vector<8x4xf32>
      %376 = arith.mulf %371, %375 : vector<8x4xf32>
      %c20 = arith.constant 20 : index
      %c0_249 = arith.constant 0 : index
      %377 = vector.load %arg15[%c20, %c0_249] : memref<32x32xf32, #tpu.memory_space<vmem>>, vector<4x32xf32>
      %cst_250 = arith.constant dense<0.000000e+00> : vector<8x32xf32>
      %378 = tpu.matmul %376, %377, %cst_250 {dimension_numbers = #tpu.dot_dimension_numbers<[1], [0], [0], [1], [0, 0, 1, 1], [], []>} : vector<8x4xf32>, vector<4x32xf32>, vector<8x32xf32> -> vector<8x32xf32>
      %379 = arith.addf %369, %378 : vector<8x32xf32>
      %c6_251 = arith.constant 6 : index
      %c0_252 = arith.constant 0 : index
      %c0_253 = arith.constant 0 : index
      %380 = vector.load %arg23[%c6_251, %c0_252, %c0_253] : memref<8x8x4xf32, #tpu.memory_space<vmem>>, vector<1x8x4xf32>
      %381 = vector.shape_cast %380 : vector<1x8x4xf32> to vector<8x4xf32>
      %c6_254 = arith.constant 6 : index
      %c0_255 = arith.constant 0 : index
      %c0_256 = arith.constant 0 : index
      %382 = vector.load %arg22[%c6_254, %c0_255, %c0_256] : memref<8x8x1xf32, #tpu.memory_space<vmem>>, vector<1x8x1xf32>
      %383 = vector.shape_cast %382 : vector<1x8x1xf32> to vector<8x1xf32>
      %384 = tpu.reciprocal %383 {approx = true} : vector<8x1xf32> -> vector<8x1xf32>
      %385 = vector.broadcast %384 : vector<8x1xf32> to vector<8x4xf32>
      %386 = arith.mulf %381, %385 : vector<8x4xf32>
      %c24 = arith.constant 24 : index
      %c0_257 = arith.constant 0 : index
      %387 = vector.load %arg15[%c24, %c0_257] : memref<32x32xf32, #tpu.memory_space<vmem>>, vector<4x32xf32>
      %cst_258 = arith.constant dense<0.000000e+00> : vector<8x32xf32>
      %388 = tpu.matmul %386, %387, %cst_258 {dimension_numbers = #tpu.dot_dimension_numbers<[1], [0], [0], [1], [0, 0, 1, 1], [], []>} : vector<8x4xf32>, vector<4x32xf32>, vector<8x32xf32> -> vector<8x32xf32>
      %389 = arith.addf %379, %388 : vector<8x32xf32>
      %c7_259 = arith.constant 7 : index
      %c0_260 = arith.constant 0 : index
      %c0_261 = arith.constant 0 : index
      %390 = vector.load %arg23[%c7_259, %c0_260, %c0_261] : memref<8x8x4xf32, #tpu.memory_space<vmem>>, vector<1x8x4xf32>
      %391 = vector.shape_cast %390 : vector<1x8x4xf32> to vector<8x4xf32>
      %c7_262 = arith.constant 7 : index
      %c0_263 = arith.constant 0 : index
      %c0_264 = arith.constant 0 : index
      %392 = vector.load %arg22[%c7_262, %c0_263, %c0_264] : memref<8x8x1xf32, #tpu.memory_space<vmem>>, vector<1x8x1xf32>
      %393 = vector.shape_cast %392 : vector<1x8x1xf32> to vector<8x1xf32>
      %394 = tpu.reciprocal %393 {approx = true} : vector<8x1xf32> -> vector<8x1xf32>
      %395 = vector.broadcast %394 : vector<8x1xf32> to vector<8x4xf32>
      %396 = arith.mulf %391, %395 : vector<8x4xf32>
      %c28 = arith.constant 28 : index
      %c0_265 = arith.constant 0 : index
      %397 = vector.load %arg15[%c28, %c0_265] : memref<32x32xf32, #tpu.memory_space<vmem>>, vector<4x32xf32>
      %cst_266 = arith.constant dense<0.000000e+00> : vector<8x32xf32>
      %398 = tpu.matmul %396, %397, %cst_266 {dimension_numbers = #tpu.dot_dimension_numbers<[1], [0], [0], [1], [0, 0, 1, 1], [], []>} : vector<8x4xf32>, vector<4x32xf32>, vector<8x32xf32> -> vector<8x32xf32>
      %399 = arith.addf %389, %398 : vector<8x32xf32>
      %c0_267 = arith.constant 0 : index
      %c0_268 = arith.constant 0 : index
      %400 = vector.load %arg16[%c0_267, %c0_268] : memref<1x32xf32, #tpu.memory_space<vmem>>, vector<1x32xf32>
      %401 = vector.broadcast %400 : vector<1x32xf32> to vector<8x32xf32>
      %402 = arith.addf %399, %401 : vector<8x32xf32>
      %c0_269 = arith.constant 0 : index
      %c0_270 = arith.constant 0 : index
      %c0_271 = arith.constant 0 : index
      %403 = vector.load %arg6[%c0_269, %c0_270, %c0_271] : memref<1x8x32xf32, #tpu.memory_space<vmem>>, vector<1x8x32xf32>
      %404 = vector.shape_cast %403 : vector<1x8x32xf32> to vector<8x32xf32>
      %405 = arith.addf %402, %404 : vector<8x32xf32>
      %c0_272 = arith.constant 0 : index
      %c0_273 = arith.constant 0 : index
      %c0_274 = arith.constant 0 : index
      %406 = vector.load %arg18[%c0_272, %c0_273, %c0_274] : memref<1x8x32xf32, #tpu.memory_space<vmem>>, vector<1x8x32xf32>
      %407 = vector.shape_cast %406 : vector<1x8x32xf32> to vector<8x32xf32>
      %408 = vector.shape_cast %405 : vector<8x32xf32> to vector<1x8x32xf32>
      tpu.vector_store %arg18[%c0_272, %c0_273, %c0_274], %408 {strides = array<i32>} : memref<1x8x32xf32, #tpu.memory_space<vmem>>, vector<1x8x32xf32>,
    } else {
    }
    return
  }
  func.func @transform_0(%arg0: i32, %arg1: i32, %arg2: i32) -> (i32, i32, i32) {
    %c0_i32 = arith.constant 0 : i32
    %c0_i32_0 = arith.constant 0 : i32
    return %arg0, %arg1, %c0_i32 : i32, i32, i32
  }
  func.func @transform_1(%arg0: i32, %arg1: i32, %arg2: i32) -> (i32, i32, i32) {
    %c0_i32 = arith.constant 0 : i32
    %c0_i32_0 = arith.constant 0 : i32
    return %arg0, %arg2, %c0_i32 : i32, i32, i32
  }
  func.func @transform_2(%arg0: i32, %arg1: i32, %arg2: i32) -> (i32, i32, i32) {
    %c0_i32 = arith.constant 0 : i32
    %c0_i32_0 = arith.constant 0 : i32
    return %arg0, %arg2, %c0_i32 : i32, i32, i32
  }
  func.func @transform_3(%arg0: i32, %arg1: i32, %arg2: i32) -> (i32, i32, i32) {
    %c0_i32 = arith.constant 0 : i32
    %c0_i32_0 = arith.constant 0 : i32
    return %arg0, %arg1, %c0_i32 : i32, i32, i32
  }
  func.func @transform_4(%arg0: i32, %arg1: i32, %arg2: i32) -> (i32, i32) {
    %c0_i32 = arith.constant 0 : i32
    %c0_i32_0 = arith.constant 0 : i32
    %c0_i32_1 = arith.constant 0 : i32
    return %c0_i32, %c0_i32_0 : i32, i32
  }
  func.func @transform_5(%arg0: i32, %arg1: i32, %arg2: i32) -> (i32, i32) {
    %c0_i32 = arith.constant 0 : i32
    %c0_i32_0 = arith.constant 0 : i32
    %c0_i32_1 = arith.constant 0 : i32
    return %c0_i32, %c0_i32_0 : i32, i32
  }
  func.func @transform_6(%arg0: i32, %arg1: i32, %arg2: i32) -> (i32, i32) {
    %c0_i32 = arith.constant 0 : i32
    %c0_i32_0 = arith.constant 0 : i32
    %c0_i32_1 = arith.constant 0 : i32
    return %c0_i32, %c0_i32_0 : i32, i32
  }
  func.func @transform_7(%arg0: i32, %arg1: i32, %arg2: i32) -> (i32, i32) {
    %c0_i32 = arith.constant 0 : i32
    %c0_i32_0 = arith.constant 0 : i32
    %c0_i32_1 = arith.constant 0 : i32
    return %c0_i32, %c0_i32_0 : i32, i32
  }
  func.func @transform_8(%arg0: i32, %arg1: i32, %arg2: i32) -> (i32, i32) {
    %c0_i32 = arith.constant 0 : i32
    %c0_i32_0 = arith.constant 0 : i32
    %c0_i32_1 = arith.constant 0 : i32
    return %c0_i32, %c0_i32_0 : i32, i32
  }
  func.func @transform_9(%arg0: i32, %arg1: i32, %arg2: i32) -> (i32, i32) {
    %c0_i32 = arith.constant 0 : i32
    %c0_i32_0 = arith.constant 0 : i32
    %c0_i32_1 = arith.constant 0 : i32
    return %c0_i32, %c0_i32_0 : i32, i32
  }
  func.func @transform_10(%arg0: i32, %arg1: i32, %arg2: i32) -> (i32, i32) {
    %c0_i32 = arith.constant 0 : i32
    %c0_i32_0 = arith.constant 0 : i32
    %c0_i32_1 = arith.constant 0 : i32
    return %c0_i32, %c0_i32_0 : i32, i32
  }
  func.func @transform_11(%arg0: i32, %arg1: i32, %arg2: i32) -> (i32, i32) {
    %c0_i32 = arith.constant 0 : i32
    %c0_i32_0 = arith.constant 0 : i32
    %c0_i32_1 = arith.constant 0 : i32
    return %c0_i32, %c0_i32_0 : i32, i32
  }
  func.func @transform_12(%arg0: i32, %arg1: i32, %arg2: i32) -> (i32, i32) {
    %c0_i32 = arith.constant 0 : i32
    %c0_i32_0 = arith.constant 0 : i32
    %c0_i32_1 = arith.constant 0 : i32
    return %c0_i32, %c0_i32_0 : i32, i32
  }
  func.func @transform_13(%arg0: i32, %arg1: i32, %arg2: i32) -> (i32, i32) {
    %c0_i32 = arith.constant 0 : i32
    %c0_i32_0 = arith.constant 0 : i32
    %c0_i32_1 = arith.constant 0 : i32
    return %c0_i32, %c0_i32_0 : i32, i32
  }
  func.func @transform_14(%arg0: i32, %arg1: i32, %arg2: i32) -> (i32, i32) {
    %c0_i32 = arith.constant 0 : i32
    %c0_i32_0 = arith.constant 0 : i32
    %c0_i32_1 = arith.constant 0 : i32
    return %c0_i32, %c0_i32_0 : i32, i32
  }
  func.func @transform_15(%arg0: i32, %arg1: i32, %arg2: i32) -> (i32, i32, i32) {
    %c0_i32 = arith.constant 0 : i32
    %c0_i32_0 = arith.constant 0 : i32
    return %arg0, %arg1, %c0_i32 : i32, i32, i32
  }
}

</mosaic_0001>

<llo_original>
// kernel: tpu_custom_call.1
$region0: #{tpu_custom_call.1}
  #allocation0 [shape = 'u32[]', space=smem, size = 0x4, offset = 0x4, fixed_abs, tag = 'smem constant byte address 0x4 - core index']
  #allocation1 [shape = 'u32[144,128]{1,0:T(1,128)}', space=vmem, size = 0x12000, scoped, tag = 'internal scratch']
  #allocation2 [shape = 'f32[8,32]{1,0:T(8,128)}', space=vmem, size = 0x1000, scoped, tag = 'scratch operand']
  #allocation3 [shape = 'f32[8,32]{1,0:T(8,128)}', space=vmem, size = 0x1000, scoped, tag = 'scratch operand']
  #allocation4 [shape = 'f32[8,8,1]{2,1,0:T(8,128)}', space=vmem, size = 0x8000, scoped, tag = 'scratch operand']
  #allocation5 [shape = 'f32[8,8,1]{2,1,0:T(8,128)}', space=vmem, size = 0x8000, scoped, tag = 'scratch operand']
  #allocation6 [shape = 'f32[8,8,4]{2,1,0:T(8,128)}', space=vmem, size = 0x8000, scoped, tag = 'scratch operand']
  %s0 = inlined_call_operand.hbm [shape: f32[2,8,32], index: 0, kind: input, shape index: {}]
  %s1 = inlined_call_operand.hbm [shape: f32[2,8,32], index: 1, kind: input, shape index: {}]
  %s2 = inlined_call_operand.hbm [shape: f32[2,8,32], index: 2, kind: input, shape index: {}]
  %s3 = inlined_call_operand.hbm [shape: f32[2,8,32], index: 3, kind: input, shape index: {}]
  %s4 = inlined_call_operand.vmem [shape: f32[1,32], index: 4, kind: input, shape index: {}]
  %s5 = inlined_call_operand.vmem [shape: f32[1,32], index: 5, kind: input, shape index: {}]
  %s6 = inlined_call_operand.hbm [shape: f32[32,32], index: 6, kind: input, shape index: {}]
  %s7 = inlined_call_operand.vmem [shape: f32[1,32], index: 7, kind: input, shape index: {}]
  %s8 = inlined_call_operand.hbm [shape: f32[32,32], index: 8, kind: input, shape index: {}]
  %s9 = inlined_call_operand.vmem [shape: f32[1,32], index: 9, kind: input, shape index: {}]
  %s10 = inlined_call_operand.hbm [shape: f32[32,32], index: 10, kind: input, shape index: {}]
  %s11 = inlined_call_operand.vmem [shape: f32[1,32], index: 11, kind: input, shape index: {}]
  %s12 = inlined_call_operand.hbm [shape: f32[32,32], index: 12, kind: input, shape index: {}]
  %s13 = inlined_call_operand.vmem [shape: f32[1,32], index: 13, kind: input, shape index: {}]
  %s14 = inlined_call_operand.hbm [shape: f32[32,32], index: 14, kind: input, shape index: {}]
  %s15 = inlined_call_operand.hbm [shape: f32[2,8,32], index: 15, kind: output, shape index: {}]
  %s16 = sld [smem:[#allocation0]]
  $region137: #{tpu_custom_call.1} parent=0
    _
  %s18 = ssub.s32 1, %s16
  %s19 = scalar_select 0, %s18, %s16
  $region1: #{tpu_custom_call.1} parent=0
    #allocation7 [shape = 'u8[8192]{0}', space=vmem, size = 0x2000, scoped, tag = 'input window, operand 0']
    #allocation8 [shape = 's32[2]{0}', space=sflag, size = 0x8, scoped, tag = 'scoped memory for tpu_custom_call.1']
    #allocation9 [shape = 's32[2]{0}', space=sflag, size = 0x8, scoped, tag = 'scoped memory for tpu_custom_call.1']
    #allocation10 [shape = 'u8[8192]{0}', space=vmem, size = 0x2000, scoped, tag = 'input window, operand 1']
    #allocation11 [shape = 's32[2]{0}', space=sflag, size = 0x8, scoped, tag = 'scoped memory for tpu_custom_call.1']
    #allocation12 [shape = 'u8[8192]{0}', space=vmem, size = 0x2000, scoped, tag = 'input window, operand 2']
    #allocation13 [shape = 'u8[8192]{0}', space=vmem, size = 0x2000, scoped, tag = 'input window, operand 3']
    #allocation14 [shape = 's32[2]{0}', space=sflag, size = 0x8, scoped, tag = 'scoped memory for tpu_custom_call.1']
    #allocation15 [shape = 'u8[16384]{0}', space=vmem, size = 0x4000, scoped, tag = 'input window, operand 6, single buffered']
    #allocation16 [shape = 'u8[16384]{0}', space=vmem, size = 0x4000, scoped, tag = 'input window, operand 8, single buffered']
    #allocation17 [shape = 's32[1]{0}', space=sflag, size = 0x4, scoped, tag = 'scoped memory for tpu_custom_call.1']
    #allocation18 [shape = 'u8[16384]{0}', space=vmem, size = 0x4000, scoped, tag = 'input window, operand 10, single buffered']
    #allocation19 [shape = 'u8[16384]{0}', space=vmem, size = 0x4000, scoped, tag = 'input window, operand 12, single buffered']
    #allocation20 [shape = 's32[1]{0}', space=sflag, size = 0x4, scoped, tag = 'scoped memory for tpu_custom_call.1']
    #allocation21 [shape = 'u8[16384]{0}', space=vmem, size = 0x4000, scoped, tag = 'input window, operand 14, single buffered']
    #allocation22 [shape = 'u8[8192]{0}', space=vmem, size = 0x2000, scoped, tag = 'output window, operand 0']
    %20 = vsyncpa [#allocation8], 0
    %s21 = scalar_lea.sflag [#allocation8], 1
    %22 = vsyncpa %s21, 0
    %23 = vsyncpa [#allocation11], 0
    %s24 = scalar_lea.sflag [#allocation11], 1
    %25 = vsyncpa %s24, 0
    %26 = vsyncpa [#allocation14], 0
    %s27 = scalar_lea.sflag [#allocation14], 1
    %28 = vsyncpa %s27, 0
    %29 = vsyncpa [#allocation17], 0
    %30 = vsyncpa [#allocation20], 0
    %31 = vsyncpa [#allocation9], 0
    %s32 = scalar_lea.sflag [#allocation9], 1
    %33 = vsyncpa %s32, 0
    loop: start=0, step=1, limit=4
    $region2: #{tpu_custom_call.1} parent=1 // loop_pre_header
      _
    $region3: #{tpu_custom_call.1} parent=1 // loop_header
      %s35 = sphi 0, %s39
      %p36 = scmp.ge.s32.totalorder %s35, 4
      %s42 = sphi 0, %s61
      %s43 = sphi 0, %s57
      %s44 = sphi 0, %s53
      %s45 = sphi 0, %s42
      %s46 = sphi 0, %s43
      %s47 = sphi 0, %s44
      %s48 = sphi 0, %s45
      %s49 = sphi 0, %s46
      %s50 = sphi 0, %s47
      %s66 = sphi 0, %s68
      %s69 = sphi 0, %s66
      %s70 = sphi 0, %s69
      %s86 = sphi 0, %s70
      %s94 = sphi 0, %s96
      %s97 = sphi 0, %s94
      %s98 = sphi 0, %s97
      %s114 = sphi 0, %s98
      %s122 = sphi 0, %s124
      %s125 = sphi 0, %s122
      %s126 = sphi 0, %s125
      %s142 = sphi 0, %s126
      %s150 = sphi 0, %s152
      %s153 = sphi 0, %s150
      %s154 = sphi 0, %s153
      %s170 = sphi 0, %s154
      %s174 = sphi 0, %s174
      %s176 = sphi 0, %s174
      %s177 = sphi 0, %s176
      %s191 = sphi 0, %s177
      %s195 = sphi 0, %s195
      %s197 = sphi 0, %s195
      %s198 = sphi 0, %s197
      %s212 = sphi 0, %s198
      %s216 = sphi 0, %s216
      %s218 = sphi 0, %s216
      %s219 = sphi 0, %s218
      %s233 = sphi 0, %s219
      %s237 = sphi 0, %s237
      %s239 = sphi 0, %s237
      %s240 = sphi 0, %s239
      %s254 = sphi 0, %s240
      %s258 = sphi 0, %s258
      %s260 = sphi 0, %s258
      %s261 = sphi 0, %s260
      %s275 = sphi 0, %s261
      %s279 = sphi 0, %s279
      %s281 = sphi 0, %s279
      %s282 = sphi 0, %s281
      %s296 = sphi 0, %s282
      %s300 = sphi 0, %s300
      %s302 = sphi 0, %s300
      %s303 = sphi 0, %s302
      %s317 = sphi 0, %s303
      %s321 = sphi 0, %s321
      %s323 = sphi 0, %s321
      %s324 = sphi 0, %s323
      %s338 = sphi 0, %s324
      %s342 = sphi 0, %s342
      %s344 = sphi 0, %s342
      %s345 = sphi 0, %s344
      %s359 = sphi 0, %s345
      %s363 = sphi 0, %s363
      %s365 = sphi 0, %s363
      %s366 = sphi 0, %s365
      %s380 = sphi 0, %s366
      %s384 = sphi 0, %s384
      %s386 = sphi 0, %s384
      %s387 = sphi 0, %s386
      %s401 = sphi 0, %s387
      %s409 = sphi 0, %s411
      %s412 = sphi 0, %s409
      %s413 = sphi 0, %s412
      %s429 = sphi 0, %s413
    $region4: #{tpu_custom_call.1} parent=1 // loop_header_branch
      %38 = sbr.rel (%p36) target = $region8
    $region5: #{tpu_custom_call.1} parent=1 // loop_body
      %s40 = ssub.s32 %s35, 1
      %s41 = ssub.s32 %s35, 2
      %s51 = sadd.s32 1, %s44
      %p52 = scmp.ge.s32.totalorder %s51, 1
      %s53 = scalar_select %p52, 0, %s51
      %s54 = sadd.s32 1, %s43
      %s55 = scalar_select %p52, %s54, %s43
      %p56 = scmp.ge.s32.totalorder %s55, 1
      %s57 = scalar_select %p56, 0, %s55
      %s58 = sadd.s32 1, %s42
      %s59 = scalar_select %p56, %s58, %s42
      %p60 = scmp.ge.s32.totalorder %s59, 2
      %s61 = scalar_select %p60, 0, %s59
      %s62 = ssub.s32 %s42, %s61
      %s63 = ssub.s32 %s43, %s57
      %s64 = sor.u32 %s62, %s63
      %p65 = scmp.eq.s32.totalorder %s64, 0
      %s67 = sadd.s32 %s66, 1
      %s68 = scalar_select %p65, %s66, %s67
      %p71 = pneg %p65
      %p72 = scmp.eq.s32.totalorder %s35, 1
      %p73 = por %p71, %p72
      %p74 = scmp.ne.s32.totalorder %s66, %s69
      %p75 = scmp.eq.s32.totalorder %s35, 0
      %p76 = por %p74, %p75
      %p77 = scmp.ne.s32.totalorder %s66, %s69
      %p78 = scmp.eq.s32.totalorder %s40, 1
      %p79 = por %p77, %p78
      %p80 = scmp.ne.s32.totalorder %s69, %s70
      %p81 = scmp.eq.s32.totalorder %s40, 0
      %p82 = por %p80, %p81
      %p83 = scmp.ne.s32.totalorder %s69, %s70
      %p84 = scmp.eq.s32.totalorder %s41, 1
      %p85 = por %p83, %p84
      %p87 = scmp.ne.s32.totalorder %s70, %s86
      %p88 = scmp.eq.s32.totalorder %s41, 0
      %p89 = por %p87, %p88
      %s90 = ssub.s32 %s42, %s61
      %s91 = ssub.s32 %s44, %s53
      %s92 = sor.u32 %s90, %s91
      %p93 = scmp.eq.s32.totalorder %s92, 0
      %s95 = sadd.s32 %s94, 1
      %s96 = scalar_select %p93, %s94, %s95
      %p99 = pneg %p93
      %p100 = scmp.eq.s32.totalorder %s35, 1
      %p101 = por %p99, %p100
      %p102 = scmp.ne.s32.totalorder %s94, %s97
      %p103 = scmp.eq.s32.totalorder %s35, 0
      %p104 = por %p102, %p103
      %p105 = scmp.ne.s32.totalorder %s94, %s97
      %p106 = scmp.eq.s32.totalorder %s40, 1
      %p107 = por %p105, %p106
      %p108 = scmp.ne.s32.totalorder %s97, %s98
      %p109 = scmp.eq.s32.totalorder %s40, 0
      %p110 = por %p108, %p109
      %p111 = scmp.ne.s32.totalorder %s97, %s98
      %p112 = scmp.eq.s32.totalorder %s41, 1
      %p113 = por %p111, %p112
      %p115 = scmp.ne.s32.totalorder %s98, %s114
      %p116 = scmp.eq.s32.totalorder %s41, 0
      %p117 = por %p115, %p116
      %s118 = ssub.s32 %s42, %s61
      %s119 = ssub.s32 %s44, %s53
      %s120 = sor.u32 %s118, %s119
      %p121 = scmp.eq.s32.totalorder %s120, 0
      %s123 = sadd.s32 %s122, 1
      %s124 = scalar_select %p121, %s122, %s123
      %p127 = pneg %p121
      %p128 = scmp.eq.s32.totalorder %s35, 1
      %p129 = por %p127, %p128
      %p130 = scmp.ne.s32.totalorder %s122, %s125
      %p131 = scmp.eq.s32.totalorder %s35, 0
      %p132 = por %p130, %p131
      %p133 = scmp.ne.s32.totalorder %s122, %s125
      %p134 = scmp.eq.s32.totalorder %s40, 1
      %p135 = por %p133, %p134
      %p136 = scmp.ne.s32.totalorder %s125, %s126
      %p137 = scmp.eq.s32.totalorder %s40, 0
      %p138 = por %p136, %p137
      %p139 = scmp.ne.s32.totalorder %s125, %s126
      %p140 = scmp.eq.s32.totalorder %s41, 1
      %p141 = por %p139, %p140
      %p143 = scmp.ne.s32.totalorder %s126, %s142
      %p144 = scmp.eq.s32.totalorder %s41, 0
      %p145 = por %p143, %p144
      %s146 = ssub.s32 %s42, %s61
      %s147 = ssub.s32 %s43, %s57
      %s148 = sor.u32 %s146, %s147
      %p149 = scmp.eq.s32.totalorder %s148, 0
      %s151 = sadd.s32 %s150, 1
      %s152 = scalar_select %p149, %s150, %s151
      %p155 = pneg %p149
      %p156 = scmp.eq.s32.totalorder %s35, 1
      %p157 = por %p155, %p156
      %p158 = scmp.ne.s32.totalorder %s150, %s153
      %p159 = scmp.eq.s32.totalorder %s35, 0
      %p160 = por %p158, %p159
      %p161 = scmp.ne.s32.totalorder %s150, %s153
      %p162 = scmp.eq.s32.totalorder %s40, 1
      %p163 = por %p161, %p162
      %p164 = scmp.ne.s32.totalorder %s153, %s154
      %p165 = scmp.eq.s32.totalorder %s40, 0
      %p166 = por %p164, %p165
      %p167 = scmp.ne.s32.totalorder %s153, %s154
      %p168 = scmp.eq.s32.totalorder %s41, 1
      %p169 = por %p167, %p168
      %p171 = scmp.ne.s32.totalorder %s154, %s170
      %p172 = scmp.eq.s32.totalorder %s41, 0
      %p173 = por %p171, %p172
      %s175 = sadd.s32 %s174, 1
      %p178 = scmp.eq.s32.totalorder %s35, 1
      %p179 = scmp.ne.s32.totalorder %s174, %s176
      %p180 = scmp.eq.s32.totalorder %s35, 0
      %p181 = por %p179, %p180
      %p182 = scmp.ne.s32.totalorder %s174, %s176
      %p183 = scmp.eq.s32.totalorder %s40, 1
      %p184 = por %p182, %p183
      %p185 = scmp.ne.s32.totalorder %s176, %s177
      %p186 = scmp.eq.s32.totalorder %s40, 0
      %p187 = por %p185, %p186
      %p188 = scmp.ne.s32.totalorder %s176, %s177
      %p189 = scmp.eq.s32.totalorder %s41, 1
      %p190 = por %p188, %p189
      %p192 = scmp.ne.s32.totalorder %s177, %s191
      %p193 = scmp.eq.s32.totalorder %s41, 0
      %p194 = por %p192, %p193
      %s196 = sadd.s32 %s195, 1
      %p199 = scmp.eq.s32.totalorder %s35, 1
      %p200 = scmp.ne.s32.totalorder %s195, %s197
      %p201 = scmp.eq.s32.totalorder %s35, 0
      %p202 = por %p200, %p201
      %p203 = scmp.ne.s32.totalorder %s195, %s197
      %p204 = scmp.eq.s32.totalorder %s40, 1
      %p205 = por %p203, %p204
      %p206 = scmp.ne.s32.totalorder %s197, %s198
      %p207 = scmp.eq.s32.totalorder %s40, 0
      %p208 = por %p206, %p207
      %p209 = scmp.ne.s32.totalorder %s197, %s198
      %p210 = scmp.eq.s32.totalorder %s41, 1
      %p211 = por %p209, %p210
      %p213 = scmp.ne.s32.totalorder %s198, %s212
      %p214 = scmp.eq.s32.totalorder %s41, 0
      %p215 = por %p213, %p214
      %s217 = sadd.s32 %s216, 1
      %p220 = scmp.eq.s32.totalorder %s35, 1
      %p221 = scmp.ne.s32.totalorder %s216, %s218
      %p222 = scmp.eq.s32.totalorder %s35, 0
      %p223 = por %p221, %p222
      %p224 = scmp.ne.s32.totalorder %s216, %s218
      %p225 = scmp.eq.s32.totalorder %s40, 1
      %p226 = por %p224, %p225
      %p227 = scmp.ne.s32.totalorder %s218, %s219
      %p228 = scmp.eq.s32.totalorder %s40, 0
      %p229 = por %p227, %p228
      %p230 = scmp.ne.s32.totalorder %s218, %s219
      %p231 = scmp.eq.s32.totalorder %s41, 1
      %p232 = por %p230, %p231
      %p234 = scmp.ne.s32.totalorder %s219, %s233
      %p235 = scmp.eq.s32.totalorder %s41, 0
      %p236 = por %p234, %p235
      %s238 = sadd.s32 %s237, 1
      %p241 = scmp.eq.s32.totalorder %s35, 1
      %p242 = scmp.ne.s32.totalorder %s237, %s239
      %p243 = scmp.eq.s32.totalorder %s35, 0
      %p244 = por %p242, %p243
      %p245 = scmp.ne.s32.totalorder %s237, %s239
      %p246 = scmp.eq.s32.totalorder %s40, 1
      %p247 = por %p245, %p246
      %p248 = scmp.ne.s32.totalorder %s239, %s240
      %p249 = scmp.eq.s32.totalorder %s40, 0
      %p250 = por %p248, %p249
      %p251 = scmp.ne.s32.totalorder %s239, %s240
      %p252 = scmp.eq.s32.totalorder %s41, 1
      %p253 = por %p251, %p252
      %p255 = scmp.ne.s32.totalorder %s240, %s254
      %p256 = scmp.eq.s32.totalorder %s41, 0
      %p257 = por %p255, %p256
      %s259 = sadd.s32 %s258, 1
      %p262 = scmp.eq.s32.totalorder %s35, 1
      %p263 = scmp.ne.s32.totalorder %s258, %s260
      %p264 = scmp.eq.s32.totalorder %s35, 0
      %p265 = por %p263, %p264
      %p266 = scmp.ne.s32.totalorder %s258, %s260
      %p267 = scmp.eq.s32.totalorder %s40, 1
      %p268 = por %p266, %p267
      %p269 = scmp.ne.s32.totalorder %s260, %s261
      %p270 = scmp.eq.s32.totalorder %s40, 0
      %p271 = por %p269, %p270
      %p272 = scmp.ne.s32.totalorder %s260, %s261
      %p273 = scmp.eq.s32.totalorder %s41, 1
      %p274 = por %p272, %p273
      %p276 = scmp.ne.s32.totalorder %s261, %s275
      %p277 = scmp.eq.s32.totalorder %s41, 0
      %p278 = por %p276, %p277
      %s280 = sadd.s32 %s279, 1
      %p283 = scmp.eq.s32.totalorder %s35, 1
      %p284 = scmp.ne.s32.totalorder %s279, %s281
      %p285 = scmp.eq.s32.totalorder %s35, 0
      %p286 = por %p284, %p285
      %p287 = scmp.ne.s32.totalorder %s279, %s281
      %p288 = scmp.eq.s32.totalorder %s40, 1
      %p289 = por %p287, %p288
      %p290 = scmp.ne.s32.totalorder %s281, %s282
      %p291 = scmp.eq.s32.totalorder %s40, 0
      %p292 = por %p290, %p291
      %p293 = scmp.ne.s32.totalorder %s281, %s282
      %p294 = scmp.eq.s32.totalorder %s41, 1
      %p295 = por %p293, %p294
      %p297 = scmp.ne.s32.totalorder %s282, %s296
      %p298 = scmp.eq.s32.totalorder %s41, 0
      %p299 = por %p297, %p298
      %s301 = sadd.s32 %s300, 1
      %p304 = scmp.eq.s32.totalorder %s35, 1
      %p305 = scmp.ne.s32.totalorder %s300, %s302
      %p306 = scmp.eq.s32.totalorder %s35, 0
      %p307 = por %p305, %p306
      %p308 = scmp.ne.s32.totalorder %s300, %s302
      %p309 = scmp.eq.s32.totalorder %s40, 1
      %p310 = por %p308, %p309
      %p311 = scmp.ne.s32.totalorder %s302, %s303
      %p312 = scmp.eq.s32.totalorder %s40, 0
      %p313 = por %p311, %p312
      %p314 = scmp.ne.s32.totalorder %s302, %s303
      %p315 = scmp.eq.s32.totalorder %s41, 1
      %p316 = por %p314, %p315
      %p318 = scmp.ne.s32.totalorder %s303, %s317
      %p319 = scmp.eq.s32.totalorder %s41, 0
      %p320 = por %p318, %p319
      %s322 = sadd.s32 %s321, 1
      %p325 = scmp.eq.s32.totalorder %s35, 1
      %p326 = scmp.ne.s32.totalorder %s321, %s323
      %p327 = scmp.eq.s32.totalorder %s35, 0
      %p328 = por %p326, %p327
      %p329 = scmp.ne.s32.totalorder %s321, %s323
      %p330 = scmp.eq.s32.totalorder %s40, 1
      %p331 = por %p329, %p330
      %p332 = scmp.ne.s32.totalorder %s323, %s324
      %p333 = scmp.eq.s32.totalorder %s40, 0
      %p334 = por %p332, %p333
      %p335 = scmp.ne.s32.totalorder %s323, %s324
      %p336 = scmp.eq.s32.totalorder %s41, 1
      %p337 = por %p335, %p336
      %p339 = scmp.ne.s32.totalorder %s324, %s338
      %p340 = scmp.eq.s32.totalorder %s41, 0
      %p341 = por %p339, %p340
      %s343 = sadd.s32 %s342, 1
      %p346 = scmp.eq.s32.totalorder %s35, 1
      %p347 = scmp.ne.s32.totalorder %s342, %s344
      %p348 = scmp.eq.s32.totalorder %s35, 0
      %p349 = por %p347, %p348
      %p350 = scmp.ne.s32.totalorder %s342, %s344
      %p351 = scmp.eq.s32.totalorder %s40, 1
      %p352 = por %p350, %p351
      %p353 = scmp.ne.s32.totalorder %s344, %s345
      %p354 = scmp.eq.s32.totalorder %s40, 0
      %p355 = por %p353, %p354
      %p356 = scmp.ne.s32.totalorder %s344, %s345
      %p357 = scmp.eq.s32.totalorder %s41, 1
      %p358 = por %p356, %p357
      %p360 = scmp.ne.s32.totalorder %s345, %s359
      %p361 = scmp.eq.s32.totalorder %s41, 0
      %p362 = por %p360, %p361
      %s364 = sadd.s32 %s363, 1
      %p367 = scmp.eq.s32.totalorder %s35, 1
      %p368 = scmp.ne.s32.totalorder %s363, %s365
      %p369 = scmp.eq.s32.totalorder %s35, 0
      %p370 = por %p368, %p369
      %p371 = scmp.ne.s32.totalorder %s363, %s365
      %p372 = scmp.eq.s32.totalorder %s40, 1
      %p373 = por %p371, %p372
      %p374 = scmp.ne.s32.totalorder %s365, %s366
      %p375 = scmp.eq.s32.totalorder %s40, 0
      %p376 = por %p374, %p375
      %p377 = scmp.ne.s32.totalorder %s365, %s366
      %p378 = scmp.eq.s32.totalorder %s41, 1
      %p379 = por %p377, %p378
      %p381 = scmp.ne.s32.totalorder %s366, %s380
      %p382 = scmp.eq.s32.totalorder %s41, 0
      %p383 = por %p381, %p382
      %s385 = sadd.s32 %s384, 1
      %p388 = scmp.eq.s32.totalorder %s35, 1
      %p389 = scmp.ne.s32.totalorder %s384, %s386
      %p390 = scmp.eq.s32.totalorder %s35, 0
      %p391 = por %p389, %p390
      %p392 = scmp.ne.s32.totalorder %s384, %s386
      %p393 = scmp.eq.s32.totalorder %s40, 1
      %p394 = por %p392, %p393
      %p395 = scmp.ne.s32.totalorder %s386, %s387
      %p396 = scmp.eq.s32.totalorder %s40, 0
      %p397 = por %p395, %p396
      %p398 = scmp.ne.s32.totalorder %s386, %s387
      %p399 = scmp.eq.s32.totalorder %s41, 1
      %p400 = por %p398, %p399
      %p402 = scmp.ne.s32.totalorder %s387, %s401
      %p403 = scmp.eq.s32.totalorder %s41, 0
      %p404 = por %p402, %p403
      %s405 = ssub.s32 %s42, %s61
      %s406 = ssub.s32 %s43, %s57
      %s407 = sor.u32 %s405, %s406
      %p408 = scmp.eq.s32.totalorder %s407, 0
      %s410 = sadd.s32 %s409, 1
      %s411 = scalar_select %p408, %s409, %s410
      %p414 = pneg %p408
      %p415 = scmp.eq.s32.totalorder %s35, 1
      %p416 = por %p414, %p415
      %p417 = scmp.ne.s32.totalorder %s409, %s412
      %p418 = scmp.eq.s32.totalorder %s35, 0
      %p419 = por %p417, %p418
      %p420 = scmp.ne.s32.totalorder %s409, %s412
      %p421 = scmp.eq.s32.totalorder %s40, 1
      %p422 = por %p420, %p421
      %p423 = scmp.ne.s32.totalorder %s412, %s413
      %p424 = scmp.eq.s32.totalorder %s40, 0
      %p425 = por %p423, %p424
      %p426 = scmp.ne.s32.totalorder %s412, %s413
      %p427 = scmp.eq.s32.totalorder %s41, 1
      %p428 = por %p426, %p427
      %p430 = scmp.ne.s32.totalorder %s413, %s429
      %p431 = scmp.eq.s32.totalorder %s41, 0
      %p432 = por %p430, %p431
      %p433 = scmp.le.s32.totalorder 1, %s35
      %p434 = scmp.lt.s32.totalorder %s35, 3
      %p435 = pnand %p433, %p434
      %p436 = pneg %p435
      // Predicated region
      $region9: #{tpu_custom_call.1} parent=5 // pred_check
        _
      $region10: #{tpu_custom_call.1} parent=5 // pred_check_branch
        %438 = sbr.rel (%p435) target = $region12
      $region11: #{tpu_custom_call.1} parent=5 // pred_region
        %s439 = ssub.s32 %s35, 1
        // Predicated region
        $region13: #{tpu_custom_call.1} parent=11 // pred_check
          %p440 = pneg %p187
        $region14: #{tpu_custom_call.1} parent=11 // pred_check_branch
          %442 = sbr.rel (%p440) target = $region16
        $region15: #{tpu_custom_call.1} parent=11 // pred_region
          _
        $region16: #{tpu_custom_call.1} parent=11 // pred_fallthru
          _
        // Predicated region
        $region17: #{tpu_custom_call.1} parent=11 // pred_check
          %p443 = pneg %p208
        $region18: #{tpu_custom_call.1} parent=11 // pred_check_branch
          %445 = sbr.rel (%p443) target = $region20
        $region19: #{tpu_custom_call.1} parent=11 // pred_region
          _
        $region20: #{tpu_custom_call.1} parent=11 // pred_fallthru
          _
        // Predicated region
        $region21: #{tpu_custom_call.1} parent=11 // pred_check
          %p446 = pneg %p229
        $region22: #{tpu_custom_call.1} parent=11 // pred_check_branch
          %448 = sbr.rel (%p446) target = $region24
        $region23: #{tpu_custom_call.1} parent=11 // pred_region
          %s450 = ssub.s32 512, 512
          %451 = vsyncadd [#allocation14], %s450
          %s452 = sshll.u32 [#allocation15], 4
          %s453 = int_to_ptr.vmem [resolvable:$true] %s452
          %458 = dma.hbm_to_vmem [thread:$0]  %s6, 512, %s453, [#allocation14], 128, 128, 8
        $region24: #{tpu_custom_call.1} parent=11 // pred_fallthru
          _
        // Predicated region
        $region25: #{tpu_custom_call.1} parent=11 // pred_check
          %p459 = pneg %p250
        $region26: #{tpu_custom_call.1} parent=11 // pred_check_branch
          %461 = sbr.rel (%p459) target = $region28
        $region27: #{tpu_custom_call.1} parent=11 // pred_region
          _
        $region28: #{tpu_custom_call.1} parent=11 // pred_fallthru
          _
        // Predicated region
        $region29: #{tpu_custom_call.1} parent=11 // pred_check
          %p462 = pneg %p271
        $region30: #{tpu_custom_call.1} parent=11 // pred_check_branch
          %464 = sbr.rel (%p462) target = $region32
        $region31: #{tpu_custom_call.1} parent=11 // pred_region
          %s466 = ssub.s32 512, 512
          %467 = vsyncadd [#allocation17], %s466
          %s468 = sshll.u32 [#allocation16], 4
          %s469 = int_to_ptr.vmem [resolvable:$true] %s468
          %474 = dma.hbm_to_vmem [thread:$0]  %s8, 512, %s469, [#allocation17], 128, 128, 8
        $region32: #{tpu_custom_call.1} parent=11 // pred_fallthru
          _
        // Predicated region
        $region33: #{tpu_custom_call.1} parent=11 // pred_check
          %p475 = pneg %p292
        $region34: #{tpu_custom_call.1} parent=11 // pred_check_branch
          %477 = sbr.rel (%p475) target = $region36
        $region35: #{tpu_custom_call.1} parent=11 // pred_region
          _
        $region36: #{tpu_custom_call.1} parent=11 // pred_fallthru
          _
        // Predicated region
        $region37: #{tpu_custom_call.1} parent=11 // pred_check
          %p478 = pneg %p313
        $region38: #{tpu_custom_call.1} parent=11 // pred_check_branch
          %480 = sbr.rel (%p478) target = $region40
        $region39: #{tpu_custom_call.1} parent=11 // pred_region
          %s482 = ssub.s32 512, 512
          %483 = vsyncadd [#allocation17], %s482
          %s484 = sshll.u32 [#allocation18], 4
          %s485 = int_to_ptr.vmem [resolvable:$true] %s484
          %490 = dma.hbm_to_vmem [thread:$0]  %s10, 512, %s485, [#allocation17], 128, 128, 8
        $region40: #{tpu_custom_call.1} parent=11 // pred_fallthru
          _
        // Predicated region
        $region41: #{tpu_custom_call.1} parent=11 // pred_check
          %p491 = pneg %p334
        $region42: #{tpu_custom_call.1} parent=11 // pred_check_branch
          %493 = sbr.rel (%p491) target = $region44
        $region43: #{tpu_custom_call.1} parent=11 // pred_region
          _
        $region44: #{tpu_custom_call.1} parent=11 // pred_fallthru
          _
        // Predicated region
        $region45: #{tpu_custom_call.1} parent=11 // pred_check
          %p494 = pneg %p355
        $region46: #{tpu_custom_call.1} parent=11 // pred_check_branch
          %496 = sbr.rel (%p494) target = $region48
        $region47: #{tpu_custom_call.1} parent=11 // pred_region
          %s498 = ssub.s32 512, 512
          %499 = vsyncadd [#allocation20], %s498
          %s500 = sshll.u32 [#allocation19], 4
          %s501 = int_to_ptr.vmem [resolvable:$true] %s500
          %506 = dma.hbm_to_vmem [thread:$0]  %s12, 512, %s501, [#allocation20], 128, 128, 8
        $region48: #{tpu_custom_call.1} parent=11 // pred_fallthru
          _
        // Predicated region
        $region49: #{tpu_custom_call.1} parent=11 // pred_check
          %p507 = pneg %p376
        $region50: #{tpu_custom_call.1} parent=11 // pred_check_branch
          %509 = sbr.rel (%p507) target = $region52
        $region51: #{tpu_custom_call.1} parent=11 // pred_region
          _
        $region52: #{tpu_custom_call.1} parent=11 // pred_fallthru
          _
        // Predicated region
        $region53: #{tpu_custom_call.1} parent=11 // pred_check
          %p510 = pneg %p397
        $region54: #{tpu_custom_call.1} parent=11 // pred_check_branch
          %512 = sbr.rel (%p510) target = $region56
        $region55: #{tpu_custom_call.1} parent=11 // pred_region
          %s514 = ssub.s32 512, 512
          %515 = vsyncadd [#allocation20], %s514
          %s516 = sshll.u32 [#allocation21], 4
          %s517 = int_to_ptr.vmem [resolvable:$true] %s516
          %522 = dma.hbm_to_vmem [thread:$0]  %s14, 512, %s517, [#allocation20], 128, 128, 8
        $region56: #{tpu_custom_call.1} parent=11 // pred_fallthru
          _
      $region12: #{tpu_custom_call.1} parent=5 // pred_fallthru
        _
      %p523 = scmp.lt.s32.totalorder %s35, 2
      // Predicated region
      $region57: #{tpu_custom_call.1} parent=5 // pred_check
        %p524 = pneg %p523
      $region58: #{tpu_custom_call.1} parent=5 // pred_check_branch
        %526 = sbr.rel (%p524) target = $region60
      $region59: #{tpu_custom_call.1} parent=5 // pred_region
        // Predicated region
        $region61: #{tpu_custom_call.1} parent=59 // pred_check
          %p527 = pneg %p76
        $region62: #{tpu_custom_call.1} parent=59 // pred_check_branch
          %529 = sbr.rel (%p527) target = $region64
        $region63: #{tpu_custom_call.1} parent=59 // pred_region
          %s530 = sand.u32 %s66, 1
          %s531 = scalar_lea.sflag [#allocation8], %s530
          %s532 = sand.u32 %s66, 1
          %s533 = smul.addr %s532, 8
          %s534 = scalar_lea.vmem [#allocation7], %s533
          %s536 = ssub.s32 128, 128
          %537 = vsyncadd %s531, %s536
          %s538 = sadd.s32 %s43, %s42
          %s539 = smul.addr %s538, 128
          %s540 = scalar_lea.hbm %s0, %s539
          %s542 = sshll.u32 %s534, 4
          %s543 = int_to_ptr.vmem [resolvable:$true] %s542
          %545 = dma.hbm_to_vmem [thread:$0]  %s540, 128, %s543, %s531
        $region64: #{tpu_custom_call.1} parent=59 // pred_fallthru
          _
        // Predicated region
        $region65: #{tpu_custom_call.1} parent=59 // pred_check
          %p546 = pneg %p104
        $region66: #{tpu_custom_call.1} parent=59 // pred_check_branch
          %548 = sbr.rel (%p546) target = $region68
        $region67: #{tpu_custom_call.1} parent=59 // pred_region
          %s549 = sand.u32 %s35, 1
          %s550 = scalar_lea.sflag [#allocation11], %s549
          %s551 = sand.u32 %s94, 1
          %s552 = smul.addr %s551, 8
          %s553 = scalar_lea.vmem [#allocation10], %s552
          %s555 = ssub.s32 128, 128
          %556 = vsyncadd %s550, %s555
          %s557 = sadd.s32 %s44, %s42
          %s558 = smul.addr %s557, 128
          %s559 = scalar_lea.hbm %s1, %s558
          %s561 = sshll.u32 %s553, 4
          %s562 = int_to_ptr.vmem [resolvable:$true] %s561
          %564 = dma.hbm_to_vmem [thread:$0]  %s559, 128, %s562, %s550
        $region68: #{tpu_custom_call.1} parent=59 // pred_fallthru
          _
        // Predicated region
        $region69: #{tpu_custom_call.1} parent=59 // pred_check
          %p565 = pneg %p132
        $region70: #{tpu_custom_call.1} parent=59 // pred_check_branch
          %567 = sbr.rel (%p565) target = $region72
        $region71: #{tpu_custom_call.1} parent=59 // pred_region
          %s568 = sand.u32 %s35, 1
          %s569 = scalar_lea.sflag [#allocation11], %s568
          %s570 = sand.u32 %s122, 1
          %s571 = smul.addr %s570, 8
          %s572 = scalar_lea.vmem [#allocation12], %s571
          %s574 = ssub.s32 128, 128
          %575 = vsyncadd %s569, %s574
          %s576 = sadd.s32 %s44, %s42
          %s577 = smul.addr %s576, 128
          %s578 = scalar_lea.hbm %s2, %s577
          %s580 = sshll.u32 %s572, 4
          %s581 = int_to_ptr.vmem [resolvable:$true] %s580
          %583 = dma.hbm_to_vmem [thread:$0]  %s578, 128, %s581, %s569
        $region72: #{tpu_custom_call.1} parent=59 // pred_fallthru
          _
        // Predicated region
        $region73: #{tpu_custom_call.1} parent=59 // pred_check
          %p584 = pneg %p160
        $region74: #{tpu_custom_call.1} parent=59 // pred_check_branch
          %586 = sbr.rel (%p584) target = $region76
        $region75: #{tpu_custom_call.1} parent=59 // pred_region
          %s587 = sand.u32 %s35, 1
          %s588 = scalar_lea.sflag [#allocation14], %s587
          %s589 = sand.u32 %s150, 1
          %s590 = smul.addr %s589, 8
          %s591 = scalar_lea.vmem [#allocation13], %s590
          %s593 = ssub.s32 128, 128
          %594 = vsyncadd %s588, %s593
          %s595 = sadd.s32 %s43, %s42
          %s596 = smul.addr %s595, 128
          %s597 = scalar_lea.hbm %s3, %s596
          %s599 = sshll.u32 %s591, 4
          %s600 = int_to_ptr.vmem [resolvable:$true] %s599
          %602 = dma.hbm_to_vmem [thread:$0]  %s597, 128, %s600, %s588
        $region76: #{tpu_custom_call.1} parent=59 // pred_fallthru
          _
      $region60: #{tpu_custom_call.1} parent=5 // pred_fallthru
        _
      %p603 = scmp.le.s32.totalorder 1, %s35
      %p604 = scmp.lt.s32.totalorder %s35, 3
      %p605 = pnand %p603, %p604
      %p606 = pneg %p605
      // Predicated region
      $region77: #{tpu_custom_call.1} parent=5 // pred_check
        _
      $region78: #{tpu_custom_call.1} parent=5 // pred_check_branch
        %608 = sbr.rel (%p605) target = $region80
      $region79: #{tpu_custom_call.1} parent=5 // pred_region
        %s609 = ssub.s32 %s35, 1
        %s610 = sand.u32 %s69, 1
        %s611 = scalar_lea.sflag [#allocation8], %s610
        %s612 = sand.u32 %s69, 1
        %s613 = smul.addr %s612, 8
        %s614 = scalar_lea.vmem [#allocation7], %s613
        // Predicated region
        $region81: #{tpu_custom_call.1} parent=79 // pred_check
          %p615 = pneg %p82
        $region82: #{tpu_custom_call.1} parent=79 // pred_check_branch
          %617 = sbr.rel (%p615) target = $region84
        $region83: #{tpu_custom_call.1} parent=79 // pred_region
          %618 = dma.done %s611, 128
        $region84: #{tpu_custom_call.1} parent=79 // pred_fallthru
          _
        %s619 = sand.u32 %s40, 1
        %s620 = scalar_lea.sflag [#allocation11], %s619
        %s621 = sand.u32 %s97, 1
        %s622 = smul.addr %s621, 8
        %s623 = scalar_lea.vmem [#allocation10], %s622
        // Predicated region
        $region85: #{tpu_custom_call.1} parent=79 // pred_check
          %p624 = pneg %p110
        $region86: #{tpu_custom_call.1} parent=79 // pred_check_branch
          %626 = sbr.rel (%p624) target = $region88
        $region87: #{tpu_custom_call.1} parent=79 // pred_region
          %627 = dma.done %s620, 128
        $region88: #{tpu_custom_call.1} parent=79 // pred_fallthru
          _
        %s628 = sand.u32 %s40, 1
        %s629 = scalar_lea.sflag [#allocation11], %s628
        %s630 = sand.u32 %s125, 1
        %s631 = smul.addr %s630, 8
        %s632 = scalar_lea.vmem [#allocation12], %s631
        // Predicated region
        $region89: #{tpu_custom_call.1} parent=79 // pred_check
          %p633 = pneg %p138
        $region90: #{tpu_custom_call.1} parent=79 // pred_check_branch
          %635 = sbr.rel (%p633) target = $region92
        $region91: #{tpu_custom_call.1} parent=79 // pred_region
          %636 = dma.done %s629, 128
        $region92: #{tpu_custom_call.1} parent=79 // pred_fallthru
          _
        %s637 = sand.u32 %s40, 1
        %s638 = scalar_lea.sflag [#allocation14], %s637
        %s639 = sand.u32 %s153, 1
        %s640 = smul.addr %s639, 8
        %s641 = scalar_lea.vmem [#allocation13], %s640
        // Predicated region
        $region93: #{tpu_custom_call.1} parent=79 // pred_check
          %p642 = pneg %p166
        $region94: #{tpu_custom_call.1} parent=79 // pred_check_branch
          %644 = sbr.rel (%p642) target = $region96
        $region95: #{tpu_custom_call.1} parent=79 // pred_region
          %645 = dma.done %s638, 128
        $region96: #{tpu_custom_call.1} parent=79 // pred_fallthru
          _
        // Predicated region
        $region97: #{tpu_custom_call.1} parent=79 // pred_check
          %p646 = pneg %p229
        $region98: #{tpu_custom_call.1} parent=79 // pred_check_branch
          %648 = sbr.rel (%p646) target = $region100
        $region99: #{tpu_custom_call.1} parent=79 // pred_region
          %649 = dma.done [#allocation14], 512
        $region100: #{tpu_custom_call.1} parent=79 // pred_fallthru
          _
        // Predicated region
        $region101: #{tpu_custom_call.1} parent=79 // pred_check
          %p650 = pneg %p271
        $region102: #{tpu_custom_call.1} parent=79 // pred_check_branch
          %652 = sbr.rel (%p650) target = $region104
        $region103: #{tpu_custom_call.1} parent=79 // pred_region
          %653 = dma.done [#allocation17], 512
        $region104: #{tpu_custom_call.1} parent=79 // pred_fallthru
          _
        // Predicated region
        $region105: #{tpu_custom_call.1} parent=79 // pred_check
          %p654 = pneg %p313
        $region106: #{tpu_custom_call.1} parent=79 // pred_check_branch
          %656 = sbr.rel (%p654) target = $region108
        $region107: #{tpu_custom_call.1} parent=79 // pred_region
          %657 = dma.done [#allocation17], 512
        $region108: #{tpu_custom_call.1} parent=79 // pred_fallthru
          _
        // Predicated region
        $region109: #{tpu_custom_call.1} parent=79 // pred_check
          %p658 = pneg %p355
        $region110: #{tpu_custom_call.1} parent=79 // pred_check_branch
          %660 = sbr.rel (%p658) target = $region112
        $region111: #{tpu_custom_call.1} parent=79 // pred_region
          %661 = dma.done [#allocation20], 512
        $region112: #{tpu_custom_call.1} parent=79 // pred_fallthru
          _
        // Predicated region
        $region113: #{tpu_custom_call.1} parent=79 // pred_check
          %p662 = pneg %p397
        $region114: #{tpu_custom_call.1} parent=79 // pred_check_branch
          %664 = sbr.rel (%p662) target = $region116
        $region115: #{tpu_custom_call.1} parent=79 // pred_region
          %665 = dma.done [#allocation20], 512
        $region116: #{tpu_custom_call.1} parent=79 // pred_fallthru
          _
        %s666 = sand.u32 %s69, 1
        %s667 = scalar_lea.sflag [#allocation8], %s666
        %s668 = sand.u32 %s69, 1
        %s669 = smul.addr %s668, 8
        %s670 = scalar_lea.vmem [#allocation7], %s669
        %p671 = pneg %p82
        %p672 = pneg %p79
        %s673 = sand.u32 %s40, 1
        %s674 = scalar_lea.sflag [#allocation11], %s673
        %s675 = sand.u32 %s97, 1
        %s676 = smul.addr %s675, 8
        %s677 = scalar_lea.vmem [#allocation10], %s676
        %p678 = pneg %p110
        %p679 = pneg %p107
        %s680 = sand.u32 %s40, 1
        %s681 = scalar_lea.sflag [#allocation11], %s680
        %s682 = sand.u32 %s125, 1
        %s683 = smul.addr %s682, 8
        %s684 = scalar_lea.vmem [#allocation12], %s683
        %p685 = pneg %p138
        %p686 = pneg %p135
        %s687 = sand.u32 %s40, 1
        %s688 = scalar_lea.sflag [#allocation14], %s687
        %s689 = sand.u32 %s153, 1
        %s690 = smul.addr %s689, 8
        %s691 = scalar_lea.vmem [#allocation13], %s690
        %p692 = pneg %p166
        %p693 = pneg %p163
        %p694 = pneg %p187
        %p695 = pneg %p184
        %p696 = pneg %p208
        %p697 = pneg %p205
        %p698 = pneg %p229
        %p699 = pneg %p226
        %p700 = pneg %p250
        %p701 = pneg %p247
        %p702 = pneg %p271
        %p703 = pneg %p268
        %p704 = pneg %p292
        %p705 = pneg %p289
        %p706 = pneg %p313
        %p707 = pneg %p310
        %p708 = pneg %p334
        %p709 = pneg %p331
        %p710 = pneg %p355
        %p711 = pneg %p352
        %p712 = pneg %p376
        %p713 = pneg %p373
        %p714 = pneg %p397
        %p715 = pneg %p394
        %p716 = pneg %p425
        %p717 = pneg %p422
        %s718 = sand.u32 %s412, 1
        %s719 = scalar_lea.sflag [#allocation9], %s718
        %s720 = sand.u32 %s412, 1
        %s721 = smul.addr %s720, 8
        %s722 = scalar_lea.vmem [#allocation22], %s721
        %p723 = scmp.eq.s32.totalorder %s47, 0
        // Predicated region
        $region117: #{tpu_custom_call.1} parent=79 // pred_check
          %p724 = pneg %p723
        $region118: #{tpu_custom_call.1} parent=79 // pred_check_branch
          %726 = sbr.rel (%p724) target = $region120
        $region119: #{tpu_custom_call.1} parent=79 // pred_region
          %v727 = vld [vmem:[%s614] sm:$0xff]
          %vm728 = vcmask 261120
          %v729 = vsel %vm728, %v727, 0.0
          %730 = vadd.xlane.f32.xlu0 %v729
          %v731 = vpop.xlane.xlu0 %730
          %v732 = vrcp.pop 32.0
          %v733 = vmul.f32 %v731, %v732
          %v734 = vsub.f32 %v727, %v733
          %v735 = vmul.f32 %v734, %v734
          %v736 = vsel %vm728, %v735, 0.0
          %737 = vadd.xlane.f32.xlu0 %v736
          %v738 = vpop.xlane.xlu0 %737
          %v739 = vmul.f32 %v738, %v732
          %v740 = vadd.f32 %v739, 1e-05
          %v741 = vrsqrt.pop %v740
          %v742 = vmul.f32 %v734, %v741
          %v743 = vld [vmem:[%s4] sm:$0x1]
          %v745 = vlaneseq
          %v746 = vshrl.u32 %v745, 7
          %v747 = vsub.s32 0, %v746
          %v748 = vrot.slane %v743, %v747
          %v750 = vmul.f32 %v742, %v748
          %v751 = vld [vmem:[%s5] sm:$0x1]
          %v753 = vlaneseq
          %v754 = vshrl.u32 %v753, 7
          %v755 = vsub.s32 0, %v754
          %v756 = vrot.slane %v751, %v755
          %v758 = vadd.f32 %v750, %v756
          %759 = vst.msk [vmem:[#allocation2] sm:$0xff] %vm728, %v758
          %v760 = vld [vmem:[#allocation15] sm:$0xff]
          %v761 = vld [vmem:[#allocation15 + $0x8] sm:$0xff]
          %v762 = vld [vmem:[#allocation15 + $0x10] sm:$0xff]
          %v763 = vld [vmem:[#allocation15 + $0x18] sm:$0xff]
          %v764 = vld [vmem:[%s7] sm:$0x1]
          %v766 = vlaneseq
          %v767 = vshrl.u32 %v766, 7
          %v768 = vsub.s32 0, %v767
          %v769 = vrot.slane %v764, %v768
          %v772 = vsel %vm728, %v758, 0
          %774 = vmatprep.subr.mxu0 0.0
          %775 = vmatpush1.msra.mxu0 0.0
          %776 = vmatprep.subr.mxu0 0.0
          %777 = vmatpush1.msra.mxu0 0.0
          %778 = vmatprep.subr.mxu0 0.0
          %779 = vmatpush1.msra.mxu0 0.0
          %780 = vmatprep.subr.mxu0 0.0
          %781 = vmatpush1.msra.mxu0 0.0
          %782 = vmatprep.subr.mxu0 0.0
          %783 = vmatpush1.msra.mxu0 0.0
          %784 = vmatprep.subr.mxu0 0.0
          %785 = vmatpush1.msra.mxu0 0.0
          %786 = vmatprep.subr.mxu0 0.0
          %787 = vmatpush1.msra.mxu0 0.0
          %788 = vmatprep.subr.mxu0 0.0
          %789 = vmatpush1.msra.mxu0 0.0
          %790 = vmatprep.subr.mxu0 0.0
          %791 = vmatpush1.msra.mxu0 0.0
          %792 = vmatprep.subr.mxu0 0.0
          %793 = vmatpush1.msra.mxu0 0.0
          %794 = vmatprep.subr.mxu0 0.0
          %795 = vmatpush1.msra.mxu0 0.0
          %796 = vmatprep.subr.mxu0 0.0
          %797 = vmatpush1.msra.mxu0 0.0
          %798 = vmatprep.subr.mxu0 0.0
          %799 = vmatpush1.msra.mxu0 %v763
          %800 = vmatprep.subr.mxu0 0.0
          %801 = vmatpush1.msra.mxu0 %v762
          %802 = vmatprep.subr.mxu0 0.0
          %803 = vmatpush1.msra.mxu0 %v761
          %804 = vmatprep.subr.mxu0 0.0
          %805 = vmatpush1.msra.mxu0 %v760
          %806 = vmatprep.subr.mxu0 0.0
          %807 = vmatpush2.msra.mxu0 0.0
          %808 = vmatprep.subr.mxu0 0.0
          %809 = vmatpush2.msra.mxu0 0.0
          %810 = vmatprep.subr.mxu0 0.0
          %811 = vmatpush2.msra.mxu0 0.0
          %812 = vmatprep.subr.mxu0 0.0
          %813 = vmatpush2.msra.mxu0 0.0
          %814 = vmatprep.subr.mxu0 0.0
          %815 = vmatpush2.msra.mxu0 0.0
          %816 = vmatprep.subr.mxu0 0.0
          %817 = vmatpush2.msra.mxu0 0.0
          %818 = vmatprep.subr.mxu0 0.0
          %819 = vmatpush2.msra.mxu0 0.0
          %820 = vmatprep.subr.mxu0 0.0
          %821 = vmatpush2.msra.mxu0 0.0
          %822 = vmatprep.subr.mxu0 0.0
          %823 = vmatpush2.msra.mxu0 0.0
          %824 = vmatprep.subr.mxu0 0.0
          %825 = vmatpush2.msra.mxu0 0.0
          %826 = vmatprep.subr.mxu0 0.0
          %827 = vmatpush2.msra.mxu0 0.0
          %828 = vmatprep.subr.mxu0 0.0
          %829 = vmatpush2.msra.mxu0 0.0
          %830 = vmatprep.subr.mxu0 0.0
          %831 = vmatpush2.msra.mxu0 0.0
          %832 = vmatprep.subr.mxu0 0.0
          %833 = vmatpush2.msra.mxu0 0.0
          %834 = vmatprep.subr.mxu0 0.0
          %835 = vmatpush2.msra.mxu0 0.0
          %836 = vmatprep.subr.mxu0 0.0
          %837 = vmatpush2.msra.mxu0 0.0
          %838 = vmatprep.mubr.f32.mxu0 0.0
          %839 = vmatmul.mubr.f32.gmra.mxu0 %v772
          %v840 = vpop.f32.mrf.mxu0
          %v841 = vadd.f32 %v769, %v840
          %v842 = vpop.f32.mrf.mxu0
          %843 = vdwg.mxu0
          %844 = vst.msk [vmem:[#allocation3] sm:$0xff] %vm728, %v841
          %vm845 = vcmask 7168
          %846 = vst.msk [vmem:[#allocation4] sm:$0xff] %vm845, -inf
          %847 = vst.msk [vmem:[#allocation4 + $0x8] sm:$0xff] %vm845, -inf
          %848 = vst.msk [vmem:[#allocation4 + $0x10] sm:$0xff] %vm845, -inf
          %849 = vst.msk [vmem:[#allocation4 + $0x18] sm:$0xff] %vm845, -inf
          %850 = vst.msk [vmem:[#allocation4 + $0x20] sm:$0xff] %vm845, -inf
          %851 = vst.msk [vmem:[#allocation4 + $0x28] sm:$0xff] %vm845, -inf
          %852 = vst.msk [vmem:[#allocation4 + $0x30] sm:$0xff] %vm845, -inf
          %853 = vst.msk [vmem:[#allocation4 + $0x38] sm:$0xff] %vm845, -inf
          %854 = vst.msk [vmem:[#allocation5] sm:$0xff] %vm845, 0.0
          %855 = vst.msk [vmem:[#allocation5 + $0x8] sm:$0xff] %vm845, 0.0
          %856 = vst.msk [vmem:[#allocation5 + $0x10] sm:$0xff] %vm845, 0.0
          %857 = vst.msk [vmem:[#allocation5 + $0x18] sm:$0xff] %vm845, 0.0
          %858 = vst.msk [vmem:[#allocation5 + $0x20] sm:$0xff] %vm845, 0.0
          %859 = vst.msk [vmem:[#allocation5 + $0x28] sm:$0xff] %vm845, 0.0
          %860 = vst.msk [vmem:[#allocation5 + $0x30] sm:$0xff] %vm845, 0.0
          %861 = vst.msk [vmem:[#allocation5 + $0x38] sm:$0xff] %vm845, 0.0
          %vm862 = vcmask 31744
          %863 = vst.msk [vmem:[#allocation6] sm:$0xff] %vm862, 0.0
          %864 = vst.msk [vmem:[#allocation6 + $0x8] sm:$0xff] %vm862, 0.0
          %865 = vst.msk [vmem:[#allocation6 + $0x10] sm:$0xff] %vm862, 0.0
          %866 = vst.msk [vmem:[#allocation6 + $0x18] sm:$0xff] %vm862, 0.0
          %867 = vst.msk [vmem:[#allocation6 + $0x20] sm:$0xff] %vm862, 0.0
          %868 = vst.msk [vmem:[#allocation6 + $0x28] sm:$0xff] %vm862, 0.0
          %869 = vst.msk [vmem:[#allocation6 + $0x30] sm:$0xff] %vm862, 0.0
          %870 = vst.msk [vmem:[#allocation6 + $0x38] sm:$0xff] %vm862, 0.0
        $region120: #{tpu_custom_call.1} parent=79 // pred_fallthru
          _
        %v871 = vld [vmem:[%s623] sm:$0xff]
        %v872 = vld [vmem:[#allocation16] sm:$0xff]
        %v873 = vld [vmem:[#allocation16 + $0x8] sm:$0xff]
        %v874 = vld [vmem:[#allocation16 + $0x10] sm:$0xff]
        %v875 = vld [vmem:[#allocation16 + $0x18] sm:$0xff]
        %v876 = vld [vmem:[%s9] sm:$0x1]
        %v878 = vlaneseq
        %v879 = vshrl.u32 %v878, 7
        %v880 = vsub.s32 0, %v879
        %v881 = vrot.slane %v876, %v880
        %vm883 = vcmask 261120
        %v885 = vsel %vm883, %v871, 0
        %887 = vmatprep.subr.mxu0 0.0
        %888 = vmatpush1.msra.mxu0 0.0
        %889 = vmatprep.subr.mxu0 0.0
        %890 = vmatpush1.msra.mxu0 0.0
        %891 = vmatprep.subr.mxu0 0.0
        %892 = vmatpush1.msra.mxu0 0.0
        %893 = vmatprep.subr.mxu0 0.0
        %894 = vmatpush1.msra.mxu0 0.0
        %895 = vmatprep.subr.mxu0 0.0
        %896 = vmatpush1.msra.mxu0 0.0
        %897 = vmatprep.subr.mxu0 0.0
        %898 = vmatpush1.msra.mxu0 0.0
        %899 = vmatprep.subr.mxu0 0.0
        %900 = vmatpush1.msra.mxu0 0.0
        %901 = vmatprep.subr.mxu0 0.0
        %902 = vmatpush1.msra.mxu0 0.0
        %903 = vmatprep.subr.mxu0 0.0
        %904 = vmatpush1.msra.mxu0 0.0
        %905 = vmatprep.subr.mxu0 0.0
        %906 = vmatpush1.msra.mxu0 0.0
        %907 = vmatprep.subr.mxu0 0.0
        %908 = vmatpush1.msra.mxu0 0.0
        %909 = vmatprep.subr.mxu0 0.0
        %910 = vmatpush1.msra.mxu0 0.0
        %911 = vmatprep.subr.mxu0 0.0
        %912 = vmatpush1.msra.mxu0 %v875
        %913 = vmatprep.subr.mxu0 0.0
        %914 = vmatpush1.msra.mxu0 %v874
        %915 = vmatprep.subr.mxu0 0.0
        %916 = vmatpush1.msra.mxu0 %v873
        %917 = vmatprep.subr.mxu0 0.0
        %918 = vmatpush1.msra.mxu0 %v872
        %919 = vmatprep.subr.mxu0 0.0
        %920 = vmatpush2.msra.mxu0 0.0
        %921 = vmatprep.subr.mxu0 0.0
        %922 = vmatpush2.msra.mxu0 0.0
        %923 = vmatprep.subr.mxu0 0.0
        %924 = vmatpush2.msra.mxu0 0.0
        %925 = vmatprep.subr.mxu0 0.0
        %926 = vmatpush2.msra.mxu0 0.0
        %927 = vmatprep.subr.mxu0 0.0
        %928 = vmatpush2.msra.mxu0 0.0
        %929 = vmatprep.subr.mxu0 0.0
        %930 = vmatpush2.msra.mxu0 0.0
        %931 = vmatprep.subr.mxu0 0.0
        %932 = vmatpush2.msra.mxu0 0.0
        %933 = vmatprep.subr.mxu0 0.0
        %934 = vmatpush2.msra.mxu0 0.0
        %935 = vmatprep.subr.mxu0 0.0
        %936 = vmatpush2.msra.mxu0 0.0
        %937 = vmatprep.subr.mxu0 0.0
        %938 = vmatpush2.msra.mxu0 0.0
        %939 = vmatprep.subr.mxu0 0.0
        %940 = vmatpush2.msra.mxu0 0.0
        %941 = vmatprep.subr.mxu0 0.0
        %942 = vmatpush2.msra.mxu0 0.0
        %943 = vmatprep.subr.mxu0 0.0
        %944 = vmatpush2.msra.mxu0 0.0
        %945 = vmatprep.subr.mxu0 0.0
        %946 = vmatpush2.msra.mxu0 0.0
        %947 = vmatprep.subr.mxu0 0.0
        %948 = vmatpush2.msra.mxu0 0.0
        %949 = vmatprep.subr.mxu0 0.0
        %950 = vmatpush2.msra.mxu0 0.0
        %951 = vmatprep.mubr.f32.mxu0 0.0
        %952 = vmatmul.mubr.f32.gmra.mxu0 %v885
        %v953 = vpop.f32.mrf.mxu0
        %v954 = vadd.f32 %v881, %v953
        %v955 = vpop.f32.mrf.mxu0
        %956 = vdwg.mxu0
        %v957 = vld [vmem:[%s632] sm:$0xff]
        %v958 = vld [vmem:[#allocation18] sm:$0xff]
        %v959 = vld [vmem:[#allocation18 + $0x8] sm:$0xff]
        %v960 = vld [vmem:[#allocation18 + $0x10] sm:$0xff]
        %v961 = vld [vmem:[#allocation18 + $0x18] sm:$0xff]
        %v962 = vld [vmem:[%s11] sm:$0x1]
        %v964 = vlaneseq
        %v965 = vshrl.u32 %v964, 7
        %v966 = vsub.s32 0, %v965
        %v967 = vrot.slane %v962, %v966
        %v970 = vsel %vm883, %v957, 0
        %972 = vmatprep.subr.mxu0 0.0
        %973 = vmatpush1.msra.mxu0 0.0
        %974 = vmatprep.subr.mxu0 0.0
        %975 = vmatpush1.msra.mxu0 0.0
        %976 = vmatprep.subr.mxu0 0.0
        %977 = vmatpush1.msra.mxu0 0.0
        %978 = vmatprep.subr.mxu0 0.0
        %979 = vmatpush1.msra.mxu0 0.0
        %980 = vmatprep.subr.mxu0 0.0
        %981 = vmatpush1.msra.mxu0 0.0
        %982 = vmatprep.subr.mxu0 0.0
        %983 = vmatpush1.msra.mxu0 0.0
        %984 = vmatprep.subr.mxu0 0.0
        %985 = vmatpush1.msra.mxu0 0.0
        %986 = vmatprep.subr.mxu0 0.0
        %987 = vmatpush1.msra.mxu0 0.0
        %988 = vmatprep.subr.mxu0 0.0
        %989 = vmatpush1.msra.mxu0 0.0
        %990 = vmatprep.subr.mxu0 0.0
        %991 = vmatpush1.msra.mxu0 0.0
        %992 = vmatprep.subr.mxu0 0.0
        %993 = vmatpush1.msra.mxu0 0.0
        %994 = vmatprep.subr.mxu0 0.0
        %995 = vmatpush1.msra.mxu0 0.0
        %996 = vmatprep.subr.mxu0 0.0
        %997 = vmatpush1.msra.mxu0 %v961
        %998 = vmatprep.subr.mxu0 0.0
        %999 = vmatpush1.msra.mxu0 %v960
        %1000 = vmatprep.subr.mxu0 0.0
        %1001 = vmatpush1.msra.mxu0 %v959
        %1002 = vmatprep.subr.mxu0 0.0
        %1003 = vmatpush1.msra.mxu0 %v958
        %1004 = vmatprep.subr.mxu0 0.0
        %1005 = vmatpush2.msra.mxu0 0.0
        %1006 = vmatprep.subr.mxu0 0.0
        %1007 = vmatpush2.msra.mxu0 0.0
        %1008 = vmatprep.subr.mxu0 0.0
        %1009 = vmatpush2.msra.mxu0 0.0
        %1010 = vmatprep.subr.mxu0 0.0
        %1011 = vmatpush2.msra.mxu0 0.0
        %1012 = vmatprep.subr.mxu0 0.0
        %1013 = vmatpush2.msra.mxu0 0.0
        %1014 = vmatprep.subr.mxu0 0.0
        %1015 = vmatpush2.msra.mxu0 0.0
        %1016 = vmatprep.subr.mxu0 0.0
        %1017 = vmatpush2.msra.mxu0 0.0
        %1018 = vmatprep.subr.mxu0 0.0
        %1019 = vmatpush2.msra.mxu0 0.0
        %1020 = vmatprep.subr.mxu0 0.0
        %1021 = vmatpush2.msra.mxu0 0.0
        %1022 = vmatprep.subr.mxu0 0.0
        %1023 = vmatpush2.msra.mxu0 0.0
        %1024 = vmatprep.subr.mxu0 0.0
        %1025 = vmatpush2.msra.mxu0 0.0
        %1026 = vmatprep.subr.mxu0 0.0
        %1027 = vmatpush2.msra.mxu0 0.0
        %1028 = vmatprep.subr.mxu0 0.0
        %1029 = vmatpush2.msra.mxu0 0.0
        %1030 = vmatprep.subr.mxu0 0.0
        %1031 = vmatpush2.msra.mxu0 0.0
        %1032 = vmatprep.subr.mxu0 0.0
        %1033 = vmatpush2.msra.mxu0 0.0
        %1034 = vmatprep.subr.mxu0 0.0
        %1035 = vmatpush2.msra.mxu0 0.0
        %1036 = vmatprep.mubr.f32.mxu0 0.0
        %1037 = vmatmul.mubr.f32.gmra.mxu0 %v970
        %v1038 = vpop.f32.mrf.mxu0
        %v1039 = vadd.f32 %v967, %v1038
        %v1040 = vpop.f32.mrf.mxu0
        %1041 = vdwg.mxu0
        %v1042 = vld [vmem:[#allocation3] sm:$0xff]
        %vm1043 = vcmask 31744
        %v1045 = vsel %vm1043, %v1042, 0
        %v1048 = vsel %vm1043, %v954, 0
        %1050 = vmatprep.subr.mxu0 0.0
        %1051 = vmatpush1.xpose.msra.mxu0 0.0
        %1052 = vmatprep.subr.mxu0 0.0
        %1053 = vmatpush1.xpose.msra.mxu0 0.0
        %1054 = vmatprep.subr.mxu0 0.0
        %1055 = vmatpush1.xpose.msra.mxu0 0.0
        %1056 = vmatprep.subr.mxu0 0.0
        %1057 = vmatpush1.xpose.msra.mxu0 0.0
        %1058 = vmatprep.subr.mxu0 0.0
        %1059 = vmatpush1.xpose.msra.mxu0 0.0
        %1060 = vmatprep.subr.mxu0 0.0
        %1061 = vmatpush1.xpose.msra.mxu0 0.0
        %1062 = vmatprep.subr.mxu0 0.0
        %1063 = vmatpush1.xpose.msra.mxu0 0.0
        %1064 = vmatprep.subr.mxu0 0.0
        %1065 = vmatpush1.xpose.msra.mxu0 0.0
        %1066 = vmatprep.subr.mxu0 0.0
        %1067 = vmatpush1.xpose.msra.mxu0 0.0
        %1068 = vmatprep.subr.mxu0 0.0
        %1069 = vmatpush1.xpose.msra.mxu0 0.0
        %1070 = vmatprep.subr.mxu0 0.0
        %1071 = vmatpush1.xpose.msra.mxu0 0.0
        %1072 = vmatprep.subr.mxu0 0.0
        %1073 = vmatpush1.xpose.msra.mxu0 0.0
        %1074 = vmatprep.subr.mxu0 0.0
        %1075 = vmatpush1.xpose.msra.mxu0 0.0
        %1076 = vmatprep.subr.mxu0 0.0
        %1077 = vmatpush1.xpose.msra.mxu0 0.0
        %1078 = vmatprep.subr.mxu0 0.0
        %1079 = vmatpush1.xpose.msra.mxu0 0.0
        %1080 = vmatprep.subr.mxu0 0.0
        %1081 = vmatpush1.xpose.msra.mxu0 %v1048
        %1082 = vmatprep.subr.mxu0 0.0
        %1083 = vmatpush2.xpose.msra.mxu0 0.0
        %1084 = vmatprep.subr.mxu0 0.0
        %1085 = vmatpush2.xpose.msra.mxu0 0.0
        %1086 = vmatprep.subr.mxu0 0.0
        %1087 = vmatpush2.xpose.msra.mxu0 0.0
        %1088 = vmatprep.subr.mxu0 0.0
        %1089 = vmatpush2.xpose.msra.mxu0 0.0
        %1090 = vmatprep.subr.mxu0 0.0
        %1091 = vmatpush2.xpose.msra.mxu0 0.0
        %1092 = vmatprep.subr.mxu0 0.0
        %1093 = vmatpush2.xpose.msra.mxu0 0.0
        %1094 = vmatprep.subr.mxu0 0.0
        %1095 = vmatpush2.xpose.msra.mxu0 0.0
        %1096 = vmatprep.subr.mxu0 0.0
        %1097 = vmatpush2.xpose.msra.mxu0 0.0
        %1098 = vmatprep.subr.mxu0 0.0
        %1099 = vmatpush2.xpose.msra.mxu0 0.0
        %1100 = vmatprep.subr.mxu0 0.0
        %1101 = vmatpush2.xpose.msra.mxu0 0.0
        %1102 = vmatprep.subr.mxu0 0.0
        %1103 = vmatpush2.xpose.msra.mxu0 0.0
        %1104 = vmatprep.subr.mxu0 0.0
        %1105 = vmatpush2.xpose.msra.mxu0 0.0
        %1106 = vmatprep.subr.mxu0 0.0
        %1107 = vmatpush2.xpose.msra.mxu0 0.0
        %1108 = vmatprep.subr.mxu0 0.0
        %1109 = vmatpush2.xpose.msra.mxu0 0.0
        %1110 = vmatprep.subr.mxu0 0.0
        %1111 = vmatpush2.xpose.msra.mxu0 0.0
        %1112 = vmatprep.subr.mxu0 0.0
        %1113 = vmatpush2.xpose.msra.mxu0 0.0
        %1114 = vmatprep.mubr.f32.mxu0 0.0
        %1115 = vmatmul.mubr.f32.gmra.mxu0 %v1045
        %v1116 = vpop.f32.mrf.mxu0
        %v1117 = vadd.f32 0.0, %v1116
        %v1118 = vpop.f32.mrf.mxu0
        %1119 = vdwg.mxu0
        %v1120 = vmul.f32 %v1117, 0.5
        %v1121 = vld [vmem:[#allocation4] sm:$0xff]
        %vm1122 = vcmask 64512
        %v1123 = vsel %vm1122, %v1120, -inf
        %1124 = vmax.xlane.f32.xlu0 %v1123
        %v1125 = vpop.xlane.xlu0 %1124
        %v1126 = vmax.f32 %v1121, %v1125
        %v1127 = vsub.f32 %v1121, %v1126
        %v1128 = vmul.f32 %v1127, 1.442695
        %v1129 = vpow.pop %v1128
        %1131 = vset.pattern.permute.xlu0 0
        %1132 = vperm.xlu0 %1131, %v1126
        %v1133 = vpop.permute.xlu0 %1132
        %v1135 = vsub.f32 %v1120, %v1133
        %v1136 = vmul.f32 %v1135, 1.442695
        %v1137 = vpow.pop %v1136
        %v1138 = vld [vmem:[#allocation5] sm:$0xff]
        %v1139 = vmul.f32 %v1129, %v1138
        %v1140 = vsel %vm1122, %v1137, 0.0
        %1141 = vadd.xlane.f32.xlu0 %v1140
        %v1142 = vpop.xlane.xlu0 %1141
        %v1143 = vadd.f32 %v1139, %v1142
        %vm1144 = vcmask 7168
        %1145 = vst.msk [vmem:[#allocation5] sm:$0xff] %vm1144, %v1143
        %v1146 = vld [vmem:[#allocation6] sm:$0xff]
        %1148 = vset.pattern.permute.xlu0 0
        %1149 = vperm.xlu0 %1148, %v1129
        %v1150 = vpop.permute.xlu0 %1149
        %v1152 = vmul.f32 %v1150, %v1146
        %v1154 = vsel %vm1122, %v1137, 0
        %1156 = vmatprep.subr.mxu0 0.0
        %1157 = vmatpush1.msra.mxu0 0.0
        %1158 = vmatprep.subr.mxu0 0.0
        %1159 = vmatpush1.msra.mxu0 0.0
        %1160 = vmatprep.subr.mxu0 0.0
        %1161 = vmatpush1.msra.mxu0 0.0
        %1162 = vmatprep.subr.mxu0 0.0
        %1163 = vmatpush1.msra.mxu0 0.0
        %1164 = vmatprep.subr.mxu0 0.0
        %1165 = vmatpush1.msra.mxu0 0.0
        %1166 = vmatprep.subr.mxu0 0.0
        %1167 = vmatpush1.msra.mxu0 0.0
        %1168 = vmatprep.subr.mxu0 0.0
        %1169 = vmatpush1.msra.mxu0 0.0
        %1170 = vmatprep.subr.mxu0 0.0
        %1171 = vmatpush1.msra.mxu0 0.0
        %1172 = vmatprep.subr.mxu0 0.0
        %1173 = vmatpush1.msra.mxu0 0.0
        %1174 = vmatprep.subr.mxu0 0.0
        %1175 = vmatpush1.msra.mxu0 0.0
        %1176 = vmatprep.subr.mxu0 0.0
        %1177 = vmatpush1.msra.mxu0 0.0
        %1178 = vmatprep.subr.mxu0 0.0
        %1179 = vmatpush1.msra.mxu0 0.0
        %1180 = vmatprep.subr.mxu0 0.0
        %1181 = vmatpush1.msra.mxu0 0.0
        %1182 = vmatprep.subr.mxu0 0.0
        %1183 = vmatpush1.msra.mxu0 0.0
        %1184 = vmatprep.subr.mxu0 0.0
        %1185 = vmatpush1.msra.mxu0 0.0
        %1186 = vmatprep.subr.mxu0 0.0
        %1187 = vmatpush1.msra.mxu0 %v1039
        %1188 = vmatprep.subr.mxu0 0.0
        %1189 = vmatpush2.msra.mxu0 0.0
        %1190 = vmatprep.subr.mxu0 0.0
        %1191 = vmatpush2.msra.mxu0 0.0
        %1192 = vmatprep.subr.mxu0 0.0
        %1193 = vmatpush2.msra.mxu0 0.0
        %1194 = vmatprep.subr.mxu0 0.0
        %1195 = vmatpush2.msra.mxu0 0.0
        %1196 = vmatprep.subr.mxu0 0.0
        %1197 = vmatpush2.msra.mxu0 0.0
        %1198 = vmatprep.subr.mxu0 0.0
        %1199 = vmatpush2.msra.mxu0 0.0
        %1200 = vmatprep.subr.mxu0 0.0
        %1201 = vmatpush2.msra.mxu0 0.0
        %1202 = vmatprep.subr.mxu0 0.0
        %1203 = vmatpush2.msra.mxu0 0.0
        %1204 = vmatprep.subr.mxu0 0.0
        %1205 = vmatpush2.msra.mxu0 0.0
        %1206 = vmatprep.subr.mxu0 0.0
        %1207 = vmatpush2.msra.mxu0 0.0
        %1208 = vmatprep.subr.mxu0 0.0
        %1209 = vmatpush2.msra.mxu0 0.0
        %1210 = vmatprep.subr.mxu0 0.0
        %1211 = vmatpush2.msra.mxu0 0.0
        %1212 = vmatprep.subr.mxu0 0.0
        %1213 = vmatpush2.msra.mxu0 0.0
        %1214 = vmatprep.subr.mxu0 0.0
        %1215 = vmatpush2.msra.mxu0 0.0
        %1216 = vmatprep.subr.mxu0 0.0
        %1217 = vmatpush2.msra.mxu0 0.0
        %1218 = vmatprep.subr.mxu0 0.0
        %1219 = vmatpush2.msra.mxu0 0.0
        %1220 = vmatprep.mubr.f32.mxu0 0.0
        %1221 = vmatmul.mubr.f32.gmra.mxu0 %v1154
        %v1222 = vpop.f32.mrf.mxu0
        %v1223 = vadd.f32 0.0, %v1222
        %v1224 = vpop.f32.mrf.mxu0
        %1225 = vdwg.mxu0
        %v1226 = vadd.f32 %v1152, %v1223
        %1227 = vst.msk [vmem:[#allocation6] sm:$0xff] %vm1043, %v1226
        %1228 = vst.msk [vmem:[#allocation4] sm:$0xff] %vm1144, %v1126
        %1229 = vrot.lane.b32.xlu0 %v1042, 124
        %v1230 = vpop.permute.xlu0 %1229
        %1231 = vrot.lane.b32.xlu0 %v954, 124
        %v1232 = vpop.permute.xlu0 %1231
        %v1233 = vsel %vm1043, %v1230, 0
        %v1235 = vsel %vm1043, %v1232, 0
        %1237 = vmatprep.subr.mxu0 0.0
        %1238 = vmatpush1.xpose.msra.mxu0 0.0
        %1239 = vmatprep.subr.mxu0 0.0
        %1240 = vmatpush1.xpose.msra.mxu0 0.0
        %1241 = vmatprep.subr.mxu0 0.0
        %1242 = vmatpush1.xpose.msra.mxu0 0.0
        %1243 = vmatprep.subr.mxu0 0.0
        %1244 = vmatpush1.xpose.msra.mxu0 0.0
        %1245 = vmatprep.subr.mxu0 0.0
        %1246 = vmatpush1.xpose.msra.mxu0 0.0
        %1247 = vmatprep.subr.mxu0 0.0
        %1248 = vmatpush1.xpose.msra.mxu0 0.0
        %1249 = vmatprep.subr.mxu0 0.0
        %1250 = vmatpush1.xpose.msra.mxu0 0.0
        %1251 = vmatprep.subr.mxu0 0.0
        %1252 = vmatpush1.xpose.msra.mxu0 0.0
        %1253 = vmatprep.subr.mxu0 0.0
        %1254 = vmatpush1.xpose.msra.mxu0 0.0
        %1255 = vmatprep.subr.mxu0 0.0
        %1256 = vmatpush1.xpose.msra.mxu0 0.0
        %1257 = vmatprep.subr.mxu0 0.0
        %1258 = vmatpush1.xpose.msra.mxu0 0.0
        %1259 = vmatprep.subr.mxu0 0.0
        %1260 = vmatpush1.xpose.msra.mxu0 0.0
        %1261 = vmatprep.subr.mxu0 0.0
        %1262 = vmatpush1.xpose.msra.mxu0 0.0
        %1263 = vmatprep.subr.mxu0 0.0
        %1264 = vmatpush1.xpose.msra.mxu0 0.0
        %1265 = vmatprep.subr.mxu0 0.0
        %1266 = vmatpush1.xpose.msra.mxu0 0.0
        %1267 = vmatprep.subr.mxu0 0.0
        %1268 = vmatpush1.xpose.msra.mxu0 %v1235
        %1269 = vmatprep.subr.mxu0 0.0
        %1270 = vmatpush2.xpose.msra.mxu0 0.0
        %1271 = vmatprep.subr.mxu0 0.0
        %1272 = vmatpush2.xpose.msra.mxu0 0.0
        %1273 = vmatprep.subr.mxu0 0.0
        %1274 = vmatpush2.xpose.msra.mxu0 0.0
        %1275 = vmatprep.subr.mxu0 0.0
        %1276 = vmatpush2.xpose.msra.mxu0 0.0
        %1277 = vmatprep.subr.mxu0 0.0
        %1278 = vmatpush2.xpose.msra.mxu0 0.0
        %1279 = vmatprep.subr.mxu0 0.0
        %1280 = vmatpush2.xpose.msra.mxu0 0.0
        %1281 = vmatprep.subr.mxu0 0.0
        %1282 = vmatpush2.xpose.msra.mxu0 0.0
        %1283 = vmatprep.subr.mxu0 0.0
        %1284 = vmatpush2.xpose.msra.mxu0 0.0
        %1285 = vmatprep.subr.mxu0 0.0
        %1286 = vmatpush2.xpose.msra.mxu0 0.0
        %1287 = vmatprep.subr.mxu0 0.0
        %1288 = vmatpush2.xpose.msra.mxu0 0.0
        %1289 = vmatprep.subr.mxu0 0.0
        %1290 = vmatpush2.xpose.msra.mxu0 0.0
        %1291 = vmatprep.subr.mxu0 0.0
        %1292 = vmatpush2.xpose.msra.mxu0 0.0
        %1293 = vmatprep.subr.mxu0 0.0
        %1294 = vmatpush2.xpose.msra.mxu0 0.0
        %1295 = vmatprep.subr.mxu0 0.0
        %1296 = vmatpush2.xpose.msra.mxu0 0.0
        %1297 = vmatprep.subr.mxu0 0.0
        %1298 = vmatpush2.xpose.msra.mxu0 0.0
        %1299 = vmatprep.subr.mxu0 0.0
        %1300 = vmatpush2.xpose.msra.mxu0 0.0
        %1301 = vmatprep.mubr.f32.mxu0 0.0
        %1302 = vmatmul.mubr.f32.gmra.mxu0 %v1233
        %v1303 = vpop.f32.mrf.mxu0
        %v1304 = vadd.f32 0.0, %v1303
        %v1305 = vpop.f32.mrf.mxu0
        %1306 = vdwg.mxu0
        %v1307 = vmul.f32 %v1304, 0.5
        %s1308 = scalar_lea.vmem [#allocation4], 8
        %v1309 = vld [vmem:[%s1308] sm:$0xff]
        %v1310 = vsel %vm1122, %v1307, -inf
        %1311 = vmax.xlane.f32.xlu0 %v1310
        %v1312 = vpop.xlane.xlu0 %1311
        %v1313 = vmax.f32 %v1309, %v1312
        %v1314 = vsub.f32 %v1309, %v1313
        %v1315 = vmul.f32 %v1314, 1.442695
        %v1316 = vpow.pop %v1315
        %1318 = vset.pattern.permute.xlu0 0
        %1319 = vperm.xlu0 %1318, %v1313
        %v1320 = vpop.permute.xlu0 %1319
        %v1322 = vsub.f32 %v1307, %v1320
        %v1323 = vmul.f32 %v1322, 1.442695
        %v1324 = vpow.pop %v1323
        %s1325 = scalar_lea.vmem [#allocation5], 8
        %v1326 = vld [vmem:[%s1325] sm:$0xff]
        %v1327 = vmul.f32 %v1316, %v1326
        %v1328 = vsel %vm1122, %v1324, 0.0
        %1329 = vadd.xlane.f32.xlu0 %v1328
        %v1330 = vpop.xlane.xlu0 %1329
        %v1331 = vadd.f32 %v1327, %v1330
        %1332 = vst.msk [vmem:[%s1325] sm:$0xff] %vm1144, %v1331
        %s1333 = scalar_lea.vmem [#allocation6], 8
        %v1334 = vld [vmem:[%s1333] sm:$0xff]
        %1336 = vset.pattern.permute.xlu0 0
        %1337 = vperm.xlu0 %1336, %v1316
        %v1338 = vpop.permute.xlu0 %1337
        %v1340 = vmul.f32 %v1338, %v1334
        %1342 = vrot.lane.b32.xlu0 %v1039, 124
        %v1343 = vpop.permute.xlu0 %1342
        %v1346 = vsel %vm1122, %v1324, 0
        %1348 = vmatprep.subr.mxu0 0.0
        %1349 = vmatpush1.msra.mxu0 0.0
        %1350 = vmatprep.subr.mxu0 0.0
        %1351 = vmatpush1.msra.mxu0 0.0
        %1352 = vmatprep.subr.mxu0 0.0
        %1353 = vmatpush1.msra.mxu0 0.0
        %1354 = vmatprep.subr.mxu0 0.0
        %1355 = vmatpush1.msra.mxu0 0.0
        %1356 = vmatprep.subr.mxu0 0.0
        %1357 = vmatpush1.msra.mxu0 0.0
        %1358 = vmatprep.subr.mxu0 0.0
        %1359 = vmatpush1.msra.mxu0 0.0
        %1360 = vmatprep.subr.mxu0 0.0
        %1361 = vmatpush1.msra.mxu0 0.0
        %1362 = vmatprep.subr.mxu0 0.0
        %1363 = vmatpush1.msra.mxu0 0.0
        %1364 = vmatprep.subr.mxu0 0.0
        %1365 = vmatpush1.msra.mxu0 0.0
        %1366 = vmatprep.subr.mxu0 0.0
        %1367 = vmatpush1.msra.mxu0 0.0
        %1368 = vmatprep.subr.mxu0 0.0
        %1369 = vmatpush1.msra.mxu0 0.0
        %1370 = vmatprep.subr.mxu0 0.0
        %1371 = vmatpush1.msra.mxu0 0.0
        %1372 = vmatprep.subr.mxu0 0.0
        %1373 = vmatpush1.msra.mxu0 0.0
        %1374 = vmatprep.subr.mxu0 0.0
        %1375 = vmatpush1.msra.mxu0 0.0
        %1376 = vmatprep.subr.mxu0 0.0
        %1377 = vmatpush1.msra.mxu0 0.0
        %1378 = vmatprep.subr.mxu0 0.0
        %1379 = vmatpush1.msra.mxu0 %v1343
        %1380 = vmatprep.subr.mxu0 0.0
        %1381 = vmatpush2.msra.mxu0 0.0
        %1382 = vmatprep.subr.mxu0 0.0
        %1383 = vmatpush2.msra.mxu0 0.0
        %1384 = vmatprep.subr.mxu0 0.0
        %1385 = vmatpush2.msra.mxu0 0.0
        %1386 = vmatprep.subr.mxu0 0.0
        %1387 = vmatpush2.msra.mxu0 0.0
        %1388 = vmatprep.subr.mxu0 0.0
        %1389 = vmatpush2.msra.mxu0 0.0
        %1390 = vmatprep.subr.mxu0 0.0
        %1391 = vmatpush2.msra.mxu0 0.0
        %1392 = vmatprep.subr.mxu0 0.0
        %1393 = vmatpush2.msra.mxu0 0.0
        %1394 = vmatprep.subr.mxu0 0.0
        %1395 = vmatpush2.msra.mxu0 0.0
        %1396 = vmatprep.subr.mxu0 0.0
        %1397 = vmatpush2.msra.mxu0 0.0
        %1398 = vmatprep.subr.mxu0 0.0
        %1399 = vmatpush2.msra.mxu0 0.0
        %1400 = vmatprep.subr.mxu0 0.0
        %1401 = vmatpush2.msra.mxu0 0.0
        %1402 = vmatprep.subr.mxu0 0.0
        %1403 = vmatpush2.msra.mxu0 0.0
        %1404 = vmatprep.subr.mxu0 0.0
        %1405 = vmatpush2.msra.mxu0 0.0
        %1406 = vmatprep.subr.mxu0 0.0
        %1407 = vmatpush2.msra.mxu0 0.0
        %1408 = vmatprep.subr.mxu0 0.0
        %1409 = vmatpush2.msra.mxu0 0.0
        %1410 = vmatprep.subr.mxu0 0.0
        %1411 = vmatpush2.msra.mxu0 0.0
        %1412 = vmatprep.mubr.f32.mxu0 0.0
        %1413 = vmatmul.mubr.f32.gmra.mxu0 %v1346
        %v1414 = vpop.f32.mrf.mxu0
        %v1415 = vadd.f32 0.0, %v1414
        %v1416 = vpop.f32.mrf.mxu0
        %1417 = vdwg.mxu0
        %v1418 = vadd.f32 %v1340, %v1415
        %1419 = vst.msk [vmem:[%s1333] sm:$0xff] %vm1043, %v1418
        %1420 = vst.msk [vmem:[%s1308] sm:$0xff] %vm1144, %v1313
        %1421 = vrot.lane.b32.xlu0 %v1042, 120
        %v1422 = vpop.permute.xlu0 %1421
        %1423 = vrot.lane.b32.xlu0 %v954, 120
        %v1424 = vpop.permute.xlu0 %1423
        %v1425 = vsel %vm1043, %v1422, 0
        %v1427 = vsel %vm1043, %v1424, 0
        %1429 = vmatprep.subr.mxu0 0.0
        %1430 = vmatpush1.xpose.msra.mxu0 0.0
        %1431 = vmatprep.subr.mxu0 0.0
        %1432 = vmatpush1.xpose.msra.mxu0 0.0
        %1433 = vmatprep.subr.mxu0 0.0
        %1434 = vmatpush1.xpose.msra.mxu0 0.0
        %1435 = vmatprep.subr.mxu0 0.0
        %1436 = vmatpush1.xpose.msra.mxu0 0.0
        %1437 = vmatprep.subr.mxu0 0.0
        %1438 = vmatpush1.xpose.msra.mxu0 0.0
        %1439 = vmatprep.subr.mxu0 0.0
        %1440 = vmatpush1.xpose.msra.mxu0 0.0
        %1441 = vmatprep.subr.mxu0 0.0
        %1442 = vmatpush1.xpose.msra.mxu0 0.0
        %1443 = vmatprep.subr.mxu0 0.0
        %1444 = vmatpush1.xpose.msra.mxu0 0.0
        %1445 = vmatprep.subr.mxu0 0.0
        %1446 = vmatpush1.xpose.msra.mxu0 0.0
        %1447 = vmatprep.subr.mxu0 0.0
        %1448 = vmatpush1.xpose.msra.mxu0 0.0
        %1449 = vmatprep.subr.mxu0 0.0
        %1450 = vmatpush1.xpose.msra.mxu0 0.0
        %1451 = vmatprep.subr.mxu0 0.0
        %1452 = vmatpush1.xpose.msra.mxu0 0.0
        %1453 = vmatprep.subr.mxu0 0.0
        %1454 = vmatpush1.xpose.msra.mxu0 0.0
        %1455 = vmatprep.subr.mxu0 0.0
        %1456 = vmatpush1.xpose.msra.mxu0 0.0
        %1457 = vmatprep.subr.mxu0 0.0
        %1458 = vmatpush1.xpose.msra.mxu0 0.0
        %1459 = vmatprep.subr.mxu0 0.0
        %1460 = vmatpush1.xpose.msra.mxu0 %v1427
        %1461 = vmatprep.subr.mxu0 0.0
        %1462 = vmatpush2.xpose.msra.mxu0 0.0
        %1463 = vmatprep.subr.mxu0 0.0
        %1464 = vmatpush2.xpose.msra.mxu0 0.0
        %1465 = vmatprep.subr.mxu0 0.0
        %1466 = vmatpush2.xpose.msra.mxu0 0.0
        %1467 = vmatprep.subr.mxu0 0.0
        %1468 = vmatpush2.xpose.msra.mxu0 0.0
        %1469 = vmatprep.subr.mxu0 0.0
        %1470 = vmatpush2.xpose.msra.mxu0 0.0
        %1471 = vmatprep.subr.mxu0 0.0
        %1472 = vmatpush2.xpose.msra.mxu0 0.0
        %1473 = vmatprep.subr.mxu0 0.0
        %1474 = vmatpush2.xpose.msra.mxu0 0.0
        %1475 = vmatprep.subr.mxu0 0.0
        %1476 = vmatpush2.xpose.msra.mxu0 0.0
        %1477 = vmatprep.subr.mxu0 0.0
        %1478 = vmatpush2.xpose.msra.mxu0 0.0
        %1479 = vmatprep.subr.mxu0 0.0
        %1480 = vmatpush2.xpose.msra.mxu0 0.0
        %1481 = vmatprep.subr.mxu0 0.0
        %1482 = vmatpush2.xpose.msra.mxu0 0.0
        %1483 = vmatprep.subr.mxu0 0.0
        %1484 = vmatpush2.xpose.msra.mxu0 0.0
        %1485 = vmatprep.subr.mxu0 0.0
        %1486 = vmatpush2.xpose.msra.mxu0 0.0
        %1487 = vmatprep.subr.mxu0 0.0
        %1488 = vmatpush2.xpose.msra.mxu0 0.0
        %1489 = vmatprep.subr.mxu0 0.0
        %1490 = vmatpush2.xpose.msra.mxu0 0.0
        %1491 = vmatprep.subr.mxu0 0.0
        %1492 = vmatpush2.xpose.msra.mxu0 0.0
        %1493 = vmatprep.mubr.f32.mxu0 0.0
        %1494 = vmatmul.mubr.f32.gmra.mxu0 %v1425
        %v1495 = vpop.f32.mrf.mxu0
        %v1496 = vadd.f32 0.0, %v1495
        %v1497 = vpop.f32.mrf.mxu0
        %1498 = vdwg.mxu0
        %v1499 = vmul.f32 %v1496, 0.5
        %s1500 = scalar_lea.vmem [#allocation4], 16
        %v1501 = vld [vmem:[%s1500] sm:$0xff]
        %v1502 = vsel %vm1122, %v1499, -inf
        %1503 = vmax.xlane.f32.xlu0 %v1502
        %v1504 = vpop.xlane.xlu0 %1503
        %v1505 = vmax.f32 %v1501, %v1504
        %v1506 = vsub.f32 %v1501, %v1505
        %v1507 = vmul.f32 %v1506, 1.442695
        %v1508 = vpow.pop %v1507
        %1510 = vset.pattern.permute.xlu0 0
        %1511 = vperm.xlu0 %1510, %v1505
        %v1512 = vpop.permute.xlu0 %1511
        %v1514 = vsub.f32 %v1499, %v1512
        %v1515 = vmul.f32 %v1514, 1.442695
        %v1516 = vpow.pop %v1515
        %s1517 = scalar_lea.vmem [#allocation5], 16
        %v1518 = vld [vmem:[%s1517] sm:$0xff]
        %v1519 = vmul.f32 %v1508, %v1518
        %v1520 = vsel %vm1122, %v1516, 0.0
        %1521 = vadd.xlane.f32.xlu0 %v1520
        %v1522 = vpop.xlane.xlu0 %1521
        %v1523 = vadd.f32 %v1519, %v1522
        %1524 = vst.msk [vmem:[%s1517] sm:$0xff] %vm1144, %v1523
        %s1525 = scalar_lea.vmem [#allocation6], 16
        %v1526 = vld [vmem:[%s1525] sm:$0xff]
        %1528 = vset.pattern.permute.xlu0 0
        %1529 = vperm.xlu0 %1528, %v1508
        %v1530 = vpop.permute.xlu0 %1529
        %v1532 = vmul.f32 %v1530, %v1526
        %1533 = vrot.lane.b32.xlu0 %v1039, 120
        %v1534 = vpop.permute.xlu0 %1533
        %v1537 = vsel %vm1122, %v1516, 0
        %1539 = vmatprep.subr.mxu0 0.0
        %1540 = vmatpush1.msra.mxu0 0.0
        %1541 = vmatprep.subr.mxu0 0.0
        %1542 = vmatpush1.msra.mxu0 0.0
        %1543 = vmatprep.subr.mxu0 0.0
        %1544 = vmatpush1.msra.mxu0 0.0
        %1545 = vmatprep.subr.mxu0 0.0
        %1546 = vmatpush1.msra.mxu0 0.0
        %1547 = vmatprep.subr.mxu0 0.0
        %1548 = vmatpush1.msra.mxu0 0.0
        %1549 = vmatprep.subr.mxu0 0.0
        %1550 = vmatpush1.msra.mxu0 0.0
        %1551 = vmatprep.subr.mxu0 0.0
        %1552 = vmatpush1.msra.mxu0 0.0
        %1553 = vmatprep.subr.mxu0 0.0
        %1554 = vmatpush1.msra.mxu0 0.0
        %1555 = vmatprep.subr.mxu0 0.0
        %1556 = vmatpush1.msra.mxu0 0.0
        %1557 = vmatprep.subr.mxu0 0.0
        %1558 = vmatpush1.msra.mxu0 0.0
        %1559 = vmatprep.subr.mxu0 0.0
        %1560 = vmatpush1.msra.mxu0 0.0
        %1561 = vmatprep.subr.mxu0 0.0
        %1562 = vmatpush1.msra.mxu0 0.0
        %1563 = vmatprep.subr.mxu0 0.0
        %1564 = vmatpush1.msra.mxu0 0.0
        %1565 = vmatprep.subr.mxu0 0.0
        %1566 = vmatpush1.msra.mxu0 0.0
        %1567 = vmatprep.subr.mxu0 0.0
        %1568 = vmatpush1.msra.mxu0 0.0
        %1569 = vmatprep.subr.mxu0 0.0
        %1570 = vmatpush1.msra.mxu0 %v1534
        %1571 = vmatprep.subr.mxu0 0.0
        %1572 = vmatpush2.msra.mxu0 0.0
        %1573 = vmatprep.subr.mxu0 0.0
        %1574 = vmatpush2.msra.mxu0 0.0
        %1575 = vmatprep.subr.mxu0 0.0
        %1576 = vmatpush2.msra.mxu0 0.0
        %1577 = vmatprep.subr.mxu0 0.0
        %1578 = vmatpush2.msra.mxu0 0.0
        %1579 = vmatprep.subr.mxu0 0.0
        %1580 = vmatpush2.msra.mxu0 0.0
        %1581 = vmatprep.subr.mxu0 0.0
        %1582 = vmatpush2.msra.mxu0 0.0
        %1583 = vmatprep.subr.mxu0 0.0
        %1584 = vmatpush2.msra.mxu0 0.0
        %1585 = vmatprep.subr.mxu0 0.0
        %1586 = vmatpush2.msra.mxu0 0.0
        %1587 = vmatprep.subr.mxu0 0.0
        %1588 = vmatpush2.msra.mxu0 0.0
        %1589 = vmatprep.subr.mxu0 0.0
        %1590 = vmatpush2.msra.mxu0 0.0
        %1591 = vmatprep.subr.mxu0 0.0
        %1592 = vmatpush2.msra.mxu0 0.0
        %1593 = vmatprep.subr.mxu0 0.0
        %1594 = vmatpush2.msra.mxu0 0.0
        %1595 = vmatprep.subr.mxu0 0.0
        %1596 = vmatpush2.msra.mxu0 0.0
        %1597 = vmatprep.subr.mxu0 0.0
        %1598 = vmatpush2.msra.mxu0 0.0
        %1599 = vmatprep.subr.mxu0 0.0
        %1600 = vmatpush2.msra.mxu0 0.0
        %1601 = vmatprep.subr.mxu0 0.0
        %1602 = vmatpush2.msra.mxu0 0.0
        %1603 = vmatprep.mubr.f32.mxu0 0.0
        %1604 = vmatmul.mubr.f32.gmra.mxu0 %v1537
        %v1605 = vpop.f32.mrf.mxu0
        %v1606 = vadd.f32 0.0, %v1605
        %v1607 = vpop.f32.mrf.mxu0
        %1608 = vdwg.mxu0
        %v1609 = vadd.f32 %v1532, %v1606
        %1610 = vst.msk [vmem:[%s1525] sm:$0xff] %vm1043, %v1609
        %1611 = vst.msk [vmem:[%s1500] sm:$0xff] %vm1144, %v1505
        %1612 = vrot.lane.b32.xlu0 %v1042, 116
        %v1613 = vpop.permute.xlu0 %1612
        %1614 = vrot.lane.b32.xlu0 %v954, 116
        %v1615 = vpop.permute.xlu0 %1614
        %v1616 = vsel %vm1043, %v1613, 0
        %v1618 = vsel %vm1043, %v1615, 0
        %1620 = vmatprep.subr.mxu0 0.0
        %1621 = vmatpush1.xpose.msra.mxu0 0.0
        %1622 = vmatprep.subr.mxu0 0.0
        %1623 = vmatpush1.xpose.msra.mxu0 0.0
        %1624 = vmatprep.subr.mxu0 0.0
        %1625 = vmatpush1.xpose.msra.mxu0 0.0
        %1626 = vmatprep.subr.mxu0 0.0
        %1627 = vmatpush1.xpose.msra.mxu0 0.0
        %1628 = vmatprep.subr.mxu0 0.0
        %1629 = vmatpush1.xpose.msra.mxu0 0.0
        %1630 = vmatprep.subr.mxu0 0.0
        %1631 = vmatpush1.xpose.msra.mxu0 0.0
        %1632 = vmatprep.subr.mxu0 0.0
        %1633 = vmatpush1.xpose.msra.mxu0 0.0
        %1634 = vmatprep.subr.mxu0 0.0
        %1635 = vmatpush1.xpose.msra.mxu0 0.0
        %1636 = vmatprep.subr.mxu0 0.0
        %1637 = vmatpush1.xpose.msra.mxu0 0.0
        %1638 = vmatprep.subr.mxu0 0.0
        %1639 = vmatpush1.xpose.msra.mxu0 0.0
        %1640 = vmatprep.subr.mxu0 0.0
        %1641 = vmatpush1.xpose.msra.mxu0 0.0
        %1642 = vmatprep.subr.mxu0 0.0
        %1643 = vmatpush1.xpose.msra.mxu0 0.0
        %1644 = vmatprep.subr.mxu0 0.0
        %1645 = vmatpush1.xpose.msra.mxu0 0.0
        %1646 = vmatprep.subr.mxu0 0.0
        %1647 = vmatpush1.xpose.msra.mxu0 0.0
        %1648 = vmatprep.subr.mxu0 0.0
        %1649 = vmatpush1.xpose.msra.mxu0 0.0
        %1650 = vmatprep.subr.mxu0 0.0
        %1651 = vmatpush1.xpose.msra.mxu0 %v1618
        %1652 = vmatprep.subr.mxu0 0.0
        %1653 = vmatpush2.xpose.msra.mxu0 0.0
        %1654 = vmatprep.subr.mxu0 0.0
        %1655 = vmatpush2.xpose.msra.mxu0 0.0
        %1656 = vmatprep.subr.mxu0 0.0
        %1657 = vmatpush2.xpose.msra.mxu0 0.0
        %1658 = vmatprep.subr.mxu0 0.0
        %1659 = vmatpush2.xpose.msra.mxu0 0.0
        %1660 = vmatprep.subr.mxu0 0.0
        %1661 = vmatpush2.xpose.msra.mxu0 0.0
        %1662 = vmatprep.subr.mxu0 0.0
        %1663 = vmatpush2.xpose.msra.mxu0 0.0
        %1664 = vmatprep.subr.mxu0 0.0
        %1665 = vmatpush2.xpose.msra.mxu0 0.0
        %1666 = vmatprep.subr.mxu0 0.0
        %1667 = vmatpush2.xpose.msra.mxu0 0.0
        %1668 = vmatprep.subr.mxu0 0.0
        %1669 = vmatpush2.xpose.msra.mxu0 0.0
        %1670 = vmatprep.subr.mxu0 0.0
        %1671 = vmatpush2.xpose.msra.mxu0 0.0
        %1672 = vmatprep.subr.mxu0 0.0
        %1673 = vmatpush2.xpose.msra.mxu0 0.0
        %1674 = vmatprep.subr.mxu0 0.0
        %1675 = vmatpush2.xpose.msra.mxu0 0.0
        %1676 = vmatprep.subr.mxu0 0.0
        %1677 = vmatpush2.xpose.msra.mxu0 0.0
        %1678 = vmatprep.subr.mxu0 0.0
        %1679 = vmatpush2.xpose.msra.mxu0 0.0
        %1680 = vmatprep.subr.mxu0 0.0
        %1681 = vmatpush2.xpose.msra.mxu0 0.0
        %1682 = vmatprep.subr.mxu0 0.0
        %1683 = vmatpush2.xpose.msra.mxu0 0.0
        %1684 = vmatprep.mubr.f32.mxu0 0.0
        %1685 = vmatmul.mubr.f32.gmra.mxu0 %v1616
        %v1686 = vpop.f32.mrf.mxu0
        %v1687 = vadd.f32 0.0, %v1686
        %v1688 = vpop.f32.mrf.mxu0
        %1689 = vdwg.mxu0
        %v1690 = vmul.f32 %v1687, 0.5
        %s1691 = scalar_lea.vmem [#allocation4], 24
        %v1692 = vld [vmem:[%s1691] sm:$0xff]
        %v1693 = vsel %vm1122, %v1690, -inf
        %1694 = vmax.xlane.f32.xlu0 %v1693
        %v1695 = vpop.xlane.xlu0 %1694
        %v1696 = vmax.f32 %v1692, %v1695
        %v1697 = vsub.f32 %v1692, %v1696
        %v1698 = vmul.f32 %v1697, 1.442695
        %v1699 = vpow.pop %v1698
        %1701 = vset.pattern.permute.xlu0 0
        %1702 = vperm.xlu0 %1701, %v1696
        %v1703 = vpop.permute.xlu0 %1702
        %v1705 = vsub.f32 %v1690, %v1703
        %v1706 = vmul.f32 %v1705, 1.442695
        %v1707 = vpow.pop %v1706
        %s1708 = scalar_lea.vmem [#allocation5], 24
        %v1709 = vld [vmem:[%s1708] sm:$0xff]
        %v1710 = vmul.f32 %v1699, %v1709
        %v1711 = vsel %vm1122, %v1707, 0.0
        %1712 = vadd.xlane.f32.xlu0 %v1711
        %v1713 = vpop.xlane.xlu0 %1712
        %v1714 = vadd.f32 %v1710, %v1713
        %1715 = vst.msk [vmem:[%s1708] sm:$0xff] %vm1144, %v1714
        %s1716 = scalar_lea.vmem [#allocation6], 24
        %v1717 = vld [vmem:[%s1716] sm:$0xff]
        %1719 = vset.pattern.permute.xlu0 0
        %1720 = vperm.xlu0 %1719, %v1699
        %v1721 = vpop.permute.xlu0 %1720
        %v1723 = vmul.f32 %v1721, %v1717
        %1724 = vrot.lane.b32.xlu0 %v1039, 116
        %v1725 = vpop.permute.xlu0 %1724
        %v1728 = vsel %vm1122, %v1707, 0
        %1730 = vmatprep.subr.mxu0 0.0
        %1731 = vmatpush1.msra.mxu0 0.0
        %1732 = vmatprep.subr.mxu0 0.0
        %1733 = vmatpush1.msra.mxu0 0.0
        %1734 = vmatprep.subr.mxu0 0.0
        %1735 = vmatpush1.msra.mxu0 0.0
        %1736 = vmatprep.subr.mxu0 0.0
        %1737 = vmatpush1.msra.mxu0 0.0
        %1738 = vmatprep.subr.mxu0 0.0
        %1739 = vmatpush1.msra.mxu0 0.0
        %1740 = vmatprep.subr.mxu0 0.0
        %1741 = vmatpush1.msra.mxu0 0.0
        %1742 = vmatprep.subr.mxu0 0.0
        %1743 = vmatpush1.msra.mxu0 0.0
        %1744 = vmatprep.subr.mxu0 0.0
        %1745 = vmatpush1.msra.mxu0 0.0
        %1746 = vmatprep.subr.mxu0 0.0
        %1747 = vmatpush1.msra.mxu0 0.0
        %1748 = vmatprep.subr.mxu0 0.0
        %1749 = vmatpush1.msra.mxu0 0.0
        %1750 = vmatprep.subr.mxu0 0.0
        %1751 = vmatpush1.msra.mxu0 0.0
        %1752 = vmatprep.subr.mxu0 0.0
        %1753 = vmatpush1.msra.mxu0 0.0
        %1754 = vmatprep.subr.mxu0 0.0
        %1755 = vmatpush1.msra.mxu0 0.0
        %1756 = vmatprep.subr.mxu0 0.0
        %1757 = vmatpush1.msra.mxu0 0.0
        %1758 = vmatprep.subr.mxu0 0.0
        %1759 = vmatpush1.msra.mxu0 0.0
        %1760 = vmatprep.subr.mxu0 0.0
        %1761 = vmatpush1.msra.mxu0 %v1725
        %1762 = vmatprep.subr.mxu0 0.0
        %1763 = vmatpush2.msra.mxu0 0.0
        %1764 = vmatprep.subr.mxu0 0.0
        %1765 = vmatpush2.msra.mxu0 0.0
        %1766 = vmatprep.subr.mxu0 0.0
        %1767 = vmatpush2.msra.mxu0 0.0
        %1768 = vmatprep.subr.mxu0 0.0
        %1769 = vmatpush2.msra.mxu0 0.0
        %1770 = vmatprep.subr.mxu0 0.0
        %1771 = vmatpush2.msra.mxu0 0.0
        %1772 = vmatprep.subr.mxu0 0.0
        %1773 = vmatpush2.msra.mxu0 0.0
        %1774 = vmatprep.subr.mxu0 0.0
        %1775 = vmatpush2.msra.mxu0 0.0
        %1776 = vmatprep.subr.mxu0 0.0
        %1777 = vmatpush2.msra.mxu0 0.0
        %1778 = vmatprep.subr.mxu0 0.0
        %1779 = vmatpush2.msra.mxu0 0.0
        %1780 = vmatprep.subr.mxu0 0.0
        %1781 = vmatpush2.msra.mxu0 0.0
        %1782 = vmatprep.subr.mxu0 0.0
        %1783 = vmatpush2.msra.mxu0 0.0
        %1784 = vmatprep.subr.mxu0 0.0
        %1785 = vmatpush2.msra.mxu0 0.0
        %1786 = vmatprep.subr.mxu0 0.0
        %1787 = vmatpush2.msra.mxu0 0.0
        %1788 = vmatprep.subr.mxu0 0.0
        %1789 = vmatpush2.msra.mxu0 0.0
        %1790 = vmatprep.subr.mxu0 0.0
        %1791 = vmatpush2.msra.mxu0 0.0
        %1792 = vmatprep.subr.mxu0 0.0
        %1793 = vmatpush2.msra.mxu0 0.0
        %1794 = vmatprep.mubr.f32.mxu0 0.0
        %1795 = vmatmul.mubr.f32.gmra.mxu0 %v1728
        %v1796 = vpop.f32.mrf.mxu0
        %v1797 = vadd.f32 0.0, %v1796
        %v1798 = vpop.f32.mrf.mxu0
        %1799 = vdwg.mxu0
        %v1800 = vadd.f32 %v1723, %v1797
        %1801 = vst.msk [vmem:[%s1716] sm:$0xff] %vm1043, %v1800
        %1802 = vst.msk [vmem:[%s1691] sm:$0xff] %vm1144, %v1696
        %1803 = vrot.lane.b32.xlu0 %v1042, 112
        %v1804 = vpop.permute.xlu0 %1803
        %1805 = vrot.lane.b32.xlu0 %v954, 112
        %v1806 = vpop.permute.xlu0 %1805
        %v1807 = vsel %vm1043, %v1804, 0
        %v1809 = vsel %vm1043, %v1806, 0
        %1811 = vmatprep.subr.mxu0 0.0
        %1812 = vmatpush1.xpose.msra.mxu0 0.0
        %1813 = vmatprep.subr.mxu0 0.0
        %1814 = vmatpush1.xpose.msra.mxu0 0.0
        %1815 = vmatprep.subr.mxu0 0.0
        %1816 = vmatpush1.xpose.msra.mxu0 0.0
        %1817 = vmatprep.subr.mxu0 0.0
        %1818 = vmatpush1.xpose.msra.mxu0 0.0
        %1819 = vmatprep.subr.mxu0 0.0
        %1820 = vmatpush1.xpose.msra.mxu0 0.0
        %1821 = vmatprep.subr.mxu0 0.0
        %1822 = vmatpush1.xpose.msra.mxu0 0.0
        %1823 = vmatprep.subr.mxu0 0.0
        %1824 = vmatpush1.xpose.msra.mxu0 0.0
        %1825 = vmatprep.subr.mxu0 0.0
        %1826 = vmatpush1.xpose.msra.mxu0 0.0
        %1827 = vmatprep.subr.mxu0 0.0
        %1828 = vmatpush1.xpose.msra.mxu0 0.0
        %1829 = vmatprep.subr.mxu0 0.0
        %1830 = vmatpush1.xpose.msra.mxu0 0.0
        %1831 = vmatprep.subr.mxu0 0.0
        %1832 = vmatpush1.xpose.msra.mxu0 0.0
        %1833 = vmatprep.subr.mxu0 0.0
        %1834 = vmatpush1.xpose.msra.mxu0 0.0
        %1835 = vmatprep.subr.mxu0 0.0
        %1836 = vmatpush1.xpose.msra.mxu0 0.0
        %1837 = vmatprep.subr.mxu0 0.0
        %1838 = vmatpush1.xpose.msra.mxu0 0.0
        %1839 = vmatprep.subr.mxu0 0.0
        %1840 = vmatpush1.xpose.msra.mxu0 0.0
        %1841 = vmatprep.subr.mxu0 0.0
        %1842 = vmatpush1.xpose.msra.mxu0 %v1809
        %1843 = vmatprep.subr.mxu0 0.0
        %1844 = vmatpush2.xpose.msra.mxu0 0.0
        %1845 = vmatprep.subr.mxu0 0.0
        %1846 = vmatpush2.xpose.msra.mxu0 0.0
        %1847 = vmatprep.subr.mxu0 0.0
        %1848 = vmatpush2.xpose.msra.mxu0 0.0
        %1849 = vmatprep.subr.mxu0 0.0
        %1850 = vmatpush2.xpose.msra.mxu0 0.0
        %1851 = vmatprep.subr.mxu0 0.0
        %1852 = vmatpush2.xpose.msra.mxu0 0.0
        %1853 = vmatprep.subr.mxu0 0.0
        %1854 = vmatpush2.xpose.msra.mxu0 0.0
        %1855 = vmatprep.subr.mxu0 0.0
        %1856 = vmatpush2.xpose.msra.mxu0 0.0
        %1857 = vmatprep.subr.mxu0 0.0
        %1858 = vmatpush2.xpose.msra.mxu0 0.0
        %1859 = vmatprep.subr.mxu0 0.0
        %1860 = vmatpush2.xpose.msra.mxu0 0.0
        %1861 = vmatprep.subr.mxu0 0.0
        %1862 = vmatpush2.xpose.msra.mxu0 0.0
        %1863 = vmatprep.subr.mxu0 0.0
        %1864 = vmatpush2.xpose.msra.mxu0 0.0
        %1865 = vmatprep.subr.mxu0 0.0
        %1866 = vmatpush2.xpose.msra.mxu0 0.0
        %1867 = vmatprep.subr.mxu0 0.0
        %1868 = vmatpush2.xpose.msra.mxu0 0.0
        %1869 = vmatprep.subr.mxu0 0.0
        %1870 = vmatpush2.xpose.msra.mxu0 0.0
        %1871 = vmatprep.subr.mxu0 0.0
        %1872 = vmatpush2.xpose.msra.mxu0 0.0
        %1873 = vmatprep.subr.mxu0 0.0
        %1874 = vmatpush2.xpose.msra.mxu0 0.0
        %1875 = vmatprep.mubr.f32.mxu0 0.0
        %1876 = vmatmul.mubr.f32.gmra.mxu0 %v1807
        %v1877 = vpop.f32.mrf.mxu0
        %v1878 = vadd.f32 0.0, %v1877
        %v1879 = vpop.f32.mrf.mxu0
        %1880 = vdwg.mxu0
        %v1881 = vmul.f32 %v1878, 0.5
        %s1882 = scalar_lea.vmem [#allocation4], 32
        %v1883 = vld [vmem:[%s1882] sm:$0xff]
        %v1884 = vsel %vm1122, %v1881, -inf
        %1885 = vmax.xlane.f32.xlu0 %v1884
        %v1886 = vpop.xlane.xlu0 %1885
        %v1887 = vmax.f32 %v1883, %v1886
        %v1888 = vsub.f32 %v1883, %v1887
        %v1889 = vmul.f32 %v1888, 1.442695
        %v1890 = vpow.pop %v1889
        %1892 = vset.pattern.permute.xlu0 0
        %1893 = vperm.xlu0 %1892, %v1887
        %v1894 = vpop.permute.xlu0 %1893
        %v1896 = vsub.f32 %v1881, %v1894
        %v1897 = vmul.f32 %v1896, 1.442695
        %v1898 = vpow.pop %v1897
        %s1899 = scalar_lea.vmem [#allocation5], 32
        %v1900 = vld [vmem:[%s1899] sm:$0xff]
        %v1901 = vmul.f32 %v1890, %v1900
        %v1902 = vsel %vm1122, %v1898, 0.0
        %1903 = vadd.xlane.f32.xlu0 %v1902
        %v1904 = vpop.xlane.xlu0 %1903
        %v1905 = vadd.f32 %v1901, %v1904
        %1906 = vst.msk [vmem:[%s1899] sm:$0xff] %vm1144, %v1905
        %s1907 = scalar_lea.vmem [#allocation6], 32
        %v1908 = vld [vmem:[%s1907] sm:$0xff]
        %1910 = vset.pattern.permute.xlu0 0
        %1911 = vperm.xlu0 %1910, %v1890
        %v1912 = vpop.permute.xlu0 %1911
        %v1914 = vmul.f32 %v1912, %v1908
        %1915 = vrot.lane.b32.xlu0 %v1039, 112
        %v1916 = vpop.permute.xlu0 %1915
        %v1919 = vsel %vm1122, %v1898, 0
        %1921 = vmatprep.subr.mxu0 0.0
        %1922 = vmatpush1.msra.mxu0 0.0
        %1923 = vmatprep.subr.mxu0 0.0
        %1924 = vmatpush1.msra.mxu0 0.0
        %1925 = vmatprep.subr.mxu0 0.0
        %1926 = vmatpush1.msra.mxu0 0.0
        %1927 = vmatprep.subr.mxu0 0.0
        %1928 = vmatpush1.msra.mxu0 0.0
        %1929 = vmatprep.subr.mxu0 0.0
        %1930 = vmatpush1.msra.mxu0 0.0
        %1931 = vmatprep.subr.mxu0 0.0
        %1932 = vmatpush1.msra.mxu0 0.0
        %1933 = vmatprep.subr.mxu0 0.0
        %1934 = vmatpush1.msra.mxu0 0.0
        %1935 = vmatprep.subr.mxu0 0.0
        %1936 = vmatpush1.msra.mxu0 0.0
        %1937 = vmatprep.subr.mxu0 0.0
        %1938 = vmatpush1.msra.mxu0 0.0
        %1939 = vmatprep.subr.mxu0 0.0
        %1940 = vmatpush1.msra.mxu0 0.0
        %1941 = vmatprep.subr.mxu0 0.0
        %1942 = vmatpush1.msra.mxu0 0.0
        %1943 = vmatprep.subr.mxu0 0.0
        %1944 = vmatpush1.msra.mxu0 0.0
        %1945 = vmatprep.subr.mxu0 0.0
        %1946 = vmatpush1.msra.mxu0 0.0
        %1947 = vmatprep.subr.mxu0 0.0
        %1948 = vmatpush1.msra.mxu0 0.0
        %1949 = vmatprep.subr.mxu0 0.0
        %1950 = vmatpush1.msra.mxu0 0.0
        %1951 = vmatprep.subr.mxu0 0.0
        %1952 = vmatpush1.msra.mxu0 %v1916
        %1953 = vmatprep.subr.mxu0 0.0
        %1954 = vmatpush2.msra.mxu0 0.0
        %1955 = vmatprep.subr.mxu0 0.0
        %1956 = vmatpush2.msra.mxu0 0.0
        %1957 = vmatprep.subr.mxu0 0.0
        %1958 = vmatpush2.msra.mxu0 0.0
        %1959 = vmatprep.subr.mxu0 0.0
        %1960 = vmatpush2.msra.mxu0 0.0
        %1961 = vmatprep.subr.mxu0 0.0
        %1962 = vmatpush2.msra.mxu0 0.0
        %1963 = vmatprep.subr.mxu0 0.0
        %1964 = vmatpush2.msra.mxu0 0.0
        %1965 = vmatprep.subr.mxu0 0.0
        %1966 = vmatpush2.msra.mxu0 0.0
        %1967 = vmatprep.subr.mxu0 0.0
        %1968 = vmatpush2.msra.mxu0 0.0
        %1969 = vmatprep.subr.mxu0 0.0
        %1970 = vmatpush2.msra.mxu0 0.0
        %1971 = vmatprep.subr.mxu0 0.0
        %1972 = vmatpush2.msra.mxu0 0.0
        %1973 = vmatprep.subr.mxu0 0.0
        %1974 = vmatpush2.msra.mxu0 0.0
        %1975 = vmatprep.subr.mxu0 0.0
        %1976 = vmatpush2.msra.mxu0 0.0
        %1977 = vmatprep.subr.mxu0 0.0
        %1978 = vmatpush2.msra.mxu0 0.0
        %1979 = vmatprep.subr.mxu0 0.0
        %1980 = vmatpush2.msra.mxu0 0.0
        %1981 = vmatprep.subr.mxu0 0.0
        %1982 = vmatpush2.msra.mxu0 0.0
        %1983 = vmatprep.subr.mxu0 0.0
        %1984 = vmatpush2.msra.mxu0 0.0
        %1985 = vmatprep.mubr.f32.mxu0 0.0
        %1986 = vmatmul.mubr.f32.gmra.mxu0 %v1919
        %v1987 = vpop.f32.mrf.mxu0
        %v1988 = vadd.f32 0.0, %v1987
        %v1989 = vpop.f32.mrf.mxu0
        %1990 = vdwg.mxu0
        %v1991 = vadd.f32 %v1914, %v1988
        %1992 = vst.msk [vmem:[%s1907] sm:$0xff] %vm1043, %v1991
        %1993 = vst.msk [vmem:[%s1882] sm:$0xff] %vm1144, %v1887
        %1994 = vrot.lane.b32.xlu0 %v1042, 108
        %v1995 = vpop.permute.xlu0 %1994
        %1996 = vrot.lane.b32.xlu0 %v954, 108
        %v1997 = vpop.permute.xlu0 %1996
        %v1998 = vsel %vm1043, %v1995, 0
        %v2000 = vsel %vm1043, %v1997, 0
        %2002 = vmatprep.subr.mxu0 0.0
        %2003 = vmatpush1.xpose.msra.mxu0 0.0
        %2004 = vmatprep.subr.mxu0 0.0
        %2005 = vmatpush1.xpose.msra.mxu0 0.0
        %2006 = vmatprep.subr.mxu0 0.0
        %2007 = vmatpush1.xpose.msra.mxu0 0.0
        %2008 = vmatprep.subr.mxu0 0.0
        %2009 = vmatpush1.xpose.msra.mxu0 0.0
        %2010 = vmatprep.subr.mxu0 0.0
        %2011 = vmatpush1.xpose.msra.mxu0 0.0
        %2012 = vmatprep.subr.mxu0 0.0
        %2013 = vmatpush1.xpose.msra.mxu0 0.0
        %2014 = vmatprep.subr.mxu0 0.0
        %2015 = vmatpush1.xpose.msra.mxu0 0.0
        %2016 = vmatprep.subr.mxu0 0.0
        %2017 = vmatpush1.xpose.msra.mxu0 0.0
        %2018 = vmatprep.subr.mxu0 0.0
        %2019 = vmatpush1.xpose.msra.mxu0 0.0
        %2020 = vmatprep.subr.mxu0 0.0
        %2021 = vmatpush1.xpose.msra.mxu0 0.0
        %2022 = vmatprep.subr.mxu0 0.0
        %2023 = vmatpush1.xpose.msra.mxu0 0.0
        %2024 = vmatprep.subr.mxu0 0.0
        %2025 = vmatpush1.xpose.msra.mxu0 0.0
        %2026 = vmatprep.subr.mxu0 0.0
        %2027 = vmatpush1.xpose.msra.mxu0 0.0
        %2028 = vmatprep.subr.mxu0 0.0
        %2029 = vmatpush1.xpose.msra.mxu0 0.0
        %2030 = vmatprep.subr.mxu0 0.0
        %2031 = vmatpush1.xpose.msra.mxu0 0.0
        %2032 = vmatprep.subr.mxu0 0.0
        %2033 = vmatpush1.xpose.msra.mxu0 %v2000
        %2034 = vmatprep.subr.mxu0 0.0
        %2035 = vmatpush2.xpose.msra.mxu0 0.0
        %2036 = vmatprep.subr.mxu0 0.0
        %2037 = vmatpush2.xpose.msra.mxu0 0.0
        %2038 = vmatprep.subr.mxu0 0.0
        %2039 = vmatpush2.xpose.msra.mxu0 0.0
        %2040 = vmatprep.subr.mxu0 0.0
        %2041 = vmatpush2.xpose.msra.mxu0 0.0
        %2042 = vmatprep.subr.mxu0 0.0
        %2043 = vmatpush2.xpose.msra.mxu0 0.0
        %2044 = vmatprep.subr.mxu0 0.0
        %2045 = vmatpush2.xpose.msra.mxu0 0.0
        %2046 = vmatprep.subr.mxu0 0.0
        %2047 = vmatpush2.xpose.msra.mxu0 0.0
        %2048 = vmatprep.subr.mxu0 0.0
        %2049 = vmatpush2.xpose.msra.mxu0 0.0
        %2050 = vmatprep.subr.mxu0 0.0
        %2051 = vmatpush2.xpose.msra.mxu0 0.0
        %2052 = vmatprep.subr.mxu0 0.0
        %2053 = vmatpush2.xpose.msra.mxu0 0.0
        %2054 = vmatprep.subr.mxu0 0.0
        %2055 = vmatpush2.xpose.msra.mxu0 0.0
        %2056 = vmatprep.subr.mxu0 0.0
        %2057 = vmatpush2.xpose.msra.mxu0 0.0
        %2058 = vmatprep.subr.mxu0 0.0
        %2059 = vmatpush2.xpose.msra.mxu0 0.0
        %2060 = vmatprep.subr.mxu0 0.0
        %2061 = vmatpush2.xpose.msra.mxu0 0.0
        %2062 = vmatprep.subr.mxu0 0.0
        %2063 = vmatpush2.xpose.msra.mxu0 0.0
        %2064 = vmatprep.subr.mxu0 0.0
        %2065 = vmatpush2.xpose.msra.mxu0 0.0
        %2066 = vmatprep.mubr.f32.mxu0 0.0
        %2067 = vmatmul.mubr.f32.gmra.mxu0 %v1998
        %v2068 = vpop.f32.mrf.mxu0
        %v2069 = vadd.f32 0.0, %v2068
        %v2070 = vpop.f32.mrf.mxu0
        %2071 = vdwg.mxu0
        %v2072 = vmul.f32 %v2069, 0.5
        %s2073 = scalar_lea.vmem [#allocation4], 40
        %v2074 = vld [vmem:[%s2073] sm:$0xff]
        %v2075 = vsel %vm1122, %v2072, -inf
        %2076 = vmax.xlane.f32.xlu0 %v2075
        %v2077 = vpop.xlane.xlu0 %2076
        %v2078 = vmax.f32 %v2074, %v2077
        %v2079 = vsub.f32 %v2074, %v2078
        %v2080 = vmul.f32 %v2079, 1.442695
        %v2081 = vpow.pop %v2080
        %2083 = vset.pattern.permute.xlu0 0
        %2084 = vperm.xlu0 %2083, %v2078
        %v2085 = vpop.permute.xlu0 %2084
        %v2087 = vsub.f32 %v2072, %v2085
        %v2088 = vmul.f32 %v2087, 1.442695
        %v2089 = vpow.pop %v2088
        %s2090 = scalar_lea.vmem [#allocation5], 40
        %v2091 = vld [vmem:[%s2090] sm:$0xff]
        %v2092 = vmul.f32 %v2081, %v2091
        %v2093 = vsel %vm1122, %v2089, 0.0
        %2094 = vadd.xlane.f32.xlu0 %v2093
        %v2095 = vpop.xlane.xlu0 %2094
        %v2096 = vadd.f32 %v2092, %v2095
        %2097 = vst.msk [vmem:[%s2090] sm:$0xff] %vm1144, %v2096
        %s2098 = scalar_lea.vmem [#allocation6], 40
        %v2099 = vld [vmem:[%s2098] sm:$0xff]
        %2101 = vset.pattern.permute.xlu0 0
        %2102 = vperm.xlu0 %2101, %v2081
        %v2103 = vpop.permute.xlu0 %2102
        %v2105 = vmul.f32 %v2103, %v2099
        %2106 = vrot.lane.b32.xlu0 %v1039, 108
        %v2107 = vpop.permute.xlu0 %2106
        %v2110 = vsel %vm1122, %v2089, 0
        %2112 = vmatprep.subr.mxu0 0.0
        %2113 = vmatpush1.msra.mxu0 0.0
        %2114 = vmatprep.subr.mxu0 0.0
        %2115 = vmatpush1.msra.mxu0 0.0
        %2116 = vmatprep.subr.mxu0 0.0
        %2117 = vmatpush1.msra.mxu0 0.0
        %2118 = vmatprep.subr.mxu0 0.0
        %2119 = vmatpush1.msra.mxu0 0.0
        %2120 = vmatprep.subr.mxu0 0.0
        %2121 = vmatpush1.msra.mxu0 0.0
        %2122 = vmatprep.subr.mxu0 0.0
        %2123 = vmatpush1.msra.mxu0 0.0
        %2124 = vmatprep.subr.mxu0 0.0
        %2125 = vmatpush1.msra.mxu0 0.0
        %2126 = vmatprep.subr.mxu0 0.0
        %2127 = vmatpush1.msra.mxu0 0.0
        %2128 = vmatprep.subr.mxu0 0.0
        %2129 = vmatpush1.msra.mxu0 0.0
        %2130 = vmatprep.subr.mxu0 0.0
        %2131 = vmatpush1.msra.mxu0 0.0
        %2132 = vmatprep.subr.mxu0 0.0
        %2133 = vmatpush1.msra.mxu0 0.0
        %2134 = vmatprep.subr.mxu0 0.0
        %2135 = vmatpush1.msra.mxu0 0.0
        %2136 = vmatprep.subr.mxu0 0.0
        %2137 = vmatpush1.msra.mxu0 0.0
        %2138 = vmatprep.subr.mxu0 0.0
        %2139 = vmatpush1.msra.mxu0 0.0
        %2140 = vmatprep.subr.mxu0 0.0
        %2141 = vmatpush1.msra.mxu0 0.0
        %2142 = vmatprep.subr.mxu0 0.0
        %2143 = vmatpush1.msra.mxu0 %v2107
        %2144 = vmatprep.subr.mxu0 0.0
        %2145 = vmatpush2.msra.mxu0 0.0
        %2146 = vmatprep.subr.mxu0 0.0
        %2147 = vmatpush2.msra.mxu0 0.0
        %2148 = vmatprep.subr.mxu0 0.0
        %2149 = vmatpush2.msra.mxu0 0.0
        %2150 = vmatprep.subr.mxu0 0.0
        %2151 = vmatpush2.msra.mxu0 0.0
        %2152 = vmatprep.subr.mxu0 0.0
        %2153 = vmatpush2.msra.mxu0 0.0
        %2154 = vmatprep.subr.mxu0 0.0
        %2155 = vmatpush2.msra.mxu0 0.0
        %2156 = vmatprep.subr.mxu0 0.0
        %2157 = vmatpush2.msra.mxu0 0.0
        %2158 = vmatprep.subr.mxu0 0.0
        %2159 = vmatpush2.msra.mxu0 0.0
        %2160 = vmatprep.subr.mxu0 0.0
        %2161 = vmatpush2.msra.mxu0 0.0
        %2162 = vmatprep.subr.mxu0 0.0
        %2163 = vmatpush2.msra.mxu0 0.0
        %2164 = vmatprep.subr.mxu0 0.0
        %2165 = vmatpush2.msra.mxu0 0.0
        %2166 = vmatprep.subr.mxu0 0.0
        %2167 = vmatpush2.msra.mxu0 0.0
        %2168 = vmatprep.subr.mxu0 0.0
        %2169 = vmatpush2.msra.mxu0 0.0
        %2170 = vmatprep.subr.mxu0 0.0
        %2171 = vmatpush2.msra.mxu0 0.0
        %2172 = vmatprep.subr.mxu0 0.0
        %2173 = vmatpush2.msra.mxu0 0.0
        %2174 = vmatprep.subr.mxu0 0.0
        %2175 = vmatpush2.msra.mxu0 0.0
        %2176 = vmatprep.mubr.f32.mxu0 0.0
        %2177 = vmatmul.mubr.f32.gmra.mxu0 %v2110
        %v2178 = vpop.f32.mrf.mxu0
        %v2179 = vadd.f32 0.0, %v2178
        %v2180 = vpop.f32.mrf.mxu0
        %2181 = vdwg.mxu0
        %v2182 = vadd.f32 %v2105, %v2179
        %2183 = vst.msk [vmem:[%s2098] sm:$0xff] %vm1043, %v2182
        %2184 = vst.msk [vmem:[%s2073] sm:$0xff] %vm1144, %v2078
        %2185 = vrot.lane.b32.xlu0 %v1042, 104
        %v2186 = vpop.permute.xlu0 %2185
        %2187 = vrot.lane.b32.xlu0 %v954, 104
        %v2188 = vpop.permute.xlu0 %2187
        %v2189 = vsel %vm1043, %v2186, 0
        %v2191 = vsel %vm1043, %v2188, 0
        %2193 = vmatprep.subr.mxu0 0.0
        %2194 = vmatpush1.xpose.msra.mxu0 0.0
        %2195 = vmatprep.subr.mxu0 0.0
        %2196 = vmatpush1.xpose.msra.mxu0 0.0
        %2197 = vmatprep.subr.mxu0 0.0
        %2198 = vmatpush1.xpose.msra.mxu0 0.0
        %2199 = vmatprep.subr.mxu0 0.0
        %2200 = vmatpush1.xpose.msra.mxu0 0.0
        %2201 = vmatprep.subr.mxu0 0.0
        %2202 = vmatpush1.xpose.msra.mxu0 0.0
        %2203 = vmatprep.subr.mxu0 0.0
        %2204 = vmatpush1.xpose.msra.mxu0 0.0
        %2205 = vmatprep.subr.mxu0 0.0
        %2206 = vmatpush1.xpose.msra.mxu0 0.0
        %2207 = vmatprep.subr.mxu0 0.0
        %2208 = vmatpush1.xpose.msra.mxu0 0.0
        %2209 = vmatprep.subr.mxu0 0.0
        %2210 = vmatpush1.xpose.msra.mxu0 0.0
        %2211 = vmatprep.subr.mxu0 0.0
        %2212 = vmatpush1.xpose.msra.mxu0 0.0
        %2213 = vmatprep.subr.mxu0 0.0
        %2214 = vmatpush1.xpose.msra.mxu0 0.0
        %2215 = vmatprep.subr.mxu0 0.0
        %2216 = vmatpush1.xpose.msra.mxu0 0.0
        %2217 = vmatprep.subr.mxu0 0.0
        %2218 = vmatpush1.xpose.msra.mxu0 0.0
        %2219 = vmatprep.subr.mxu0 0.0
        %2220 = vmatpush1.xpose.msra.mxu0 0.0
        %2221 = vmatprep.subr.mxu0 0.0
        %2222 = vmatpush1.xpose.msra.mxu0 0.0
        %2223 = vmatprep.subr.mxu0 0.0
        %2224 = vmatpush1.xpose.msra.mxu0 %v2191
        %2225 = vmatprep.subr.mxu0 0.0
        %2226 = vmatpush2.xpose.msra.mxu0 0.0
        %2227 = vmatprep.subr.mxu0 0.0
        %2228 = vmatpush2.xpose.msra.mxu0 0.0
        %2229 = vmatprep.subr.mxu0 0.0
        %2230 = vmatpush2.xpose.msra.mxu0 0.0
        %2231 = vmatprep.subr.mxu0 0.0
        %2232 = vmatpush2.xpose.msra.mxu0 0.0
        %2233 = vmatprep.subr.mxu0 0.0
        %2234 = vmatpush2.xpose.msra.mxu0 0.0
        %2235 = vmatprep.subr.mxu0 0.0
        %2236 = vmatpush2.xpose.msra.mxu0 0.0
        %2237 = vmatprep.subr.mxu0 0.0
        %2238 = vmatpush2.xpose.msra.mxu0 0.0
        %2239 = vmatprep.subr.mxu0 0.0
        %2240 = vmatpush2.xpose.msra.mxu0 0.0
        %2241 = vmatprep.subr.mxu0 0.0
        %2242 = vmatpush2.xpose.msra.mxu0 0.0
        %2243 = vmatprep.subr.mxu0 0.0
        %2244 = vmatpush2.xpose.msra.mxu0 0.0
        %2245 = vmatprep.subr.mxu0 0.0
        %2246 = vmatpush2.xpose.msra.mxu0 0.0
        %2247 = vmatprep.subr.mxu0 0.0
        %2248 = vmatpush2.xpose.msra.mxu0 0.0
        %2249 = vmatprep.subr.mxu0 0.0
        %2250 = vmatpush2.xpose.msra.mxu0 0.0
        %2251 = vmatprep.subr.mxu0 0.0
        %2252 = vmatpush2.xpose.msra.mxu0 0.0
        %2253 = vmatprep.subr.mxu0 0.0
        %2254 = vmatpush2.xpose.msra.mxu0 0.0
        %2255 = vmatprep.subr.mxu0 0.0
        %2256 = vmatpush2.xpose.msra.mxu0 0.0
        %2257 = vmatprep.mubr.f32.mxu0 0.0
        %2258 = vmatmul.mubr.f32.gmra.mxu0 %v2189
        %v2259 = vpop.f32.mrf.mxu0
        %v2260 = vadd.f32 0.0, %v2259
        %v2261 = vpop.f32.mrf.mxu0
        %2262 = vdwg.mxu0
        %v2263 = vmul.f32 %v2260, 0.5
        %s2264 = scalar_lea.vmem [#allocation4], 48
        %v2265 = vld [vmem:[%s2264] sm:$0xff]
        %v2266 = vsel %vm1122, %v2263, -inf
        %2267 = vmax.xlane.f32.xlu0 %v2266
        %v2268 = vpop.xlane.xlu0 %2267
        %v2269 = vmax.f32 %v2265, %v2268
        %v2270 = vsub.f32 %v2265, %v2269
        %v2271 = vmul.f32 %v2270, 1.442695
        %v2272 = vpow.pop %v2271
        %2274 = vset.pattern.permute.xlu0 0
        %2275 = vperm.xlu0 %2274, %v2269
        %v2276 = vpop.permute.xlu0 %2275
        %v2278 = vsub.f32 %v2263, %v2276
        %v2279 = vmul.f32 %v2278, 1.442695
        %v2280 = vpow.pop %v2279
        %s2281 = scalar_lea.vmem [#allocation5], 48
        %v2282 = vld [vmem:[%s2281] sm:$0xff]
        %v2283 = vmul.f32 %v2272, %v2282
        %v2284 = vsel %vm1122, %v2280, 0.0
        %2285 = vadd.xlane.f32.xlu0 %v2284
        %v2286 = vpop.xlane.xlu0 %2285
        %v2287 = vadd.f32 %v2283, %v2286
        %2288 = vst.msk [vmem:[%s2281] sm:$0xff] %vm1144, %v2287
        %s2289 = scalar_lea.vmem [#allocation6], 48
        %v2290 = vld [vmem:[%s2289] sm:$0xff]
        %2292 = vset.pattern.permute.xlu0 0
        %2293 = vperm.xlu0 %2292, %v2272
        %v2294 = vpop.permute.xlu0 %2293
        %v2296 = vmul.f32 %v2294, %v2290
        %2297 = vrot.lane.b32.xlu0 %v1039, 104
        %v2298 = vpop.permute.xlu0 %2297
        %v2301 = vsel %vm1122, %v2280, 0
        %2303 = vmatprep.subr.mxu0 0.0
        %2304 = vmatpush1.msra.mxu0 0.0
        %2305 = vmatprep.subr.mxu0 0.0
        %2306 = vmatpush1.msra.mxu0 0.0
        %2307 = vmatprep.subr.mxu0 0.0
        %2308 = vmatpush1.msra.mxu0 0.0
        %2309 = vmatprep.subr.mxu0 0.0
        %2310 = vmatpush1.msra.mxu0 0.0
        %2311 = vmatprep.subr.mxu0 0.0
        %2312 = vmatpush1.msra.mxu0 0.0
        %2313 = vmatprep.subr.mxu0 0.0
        %2314 = vmatpush1.msra.mxu0 0.0
        %2315 = vmatprep.subr.mxu0 0.0
        %2316 = vmatpush1.msra.mxu0 0.0
        %2317 = vmatprep.subr.mxu0 0.0
        %2318 = vmatpush1.msra.mxu0 0.0
        %2319 = vmatprep.subr.mxu0 0.0
        %2320 = vmatpush1.msra.mxu0 0.0
        %2321 = vmatprep.subr.mxu0 0.0
        %2322 = vmatpush1.msra.mxu0 0.0
        %2323 = vmatprep.subr.mxu0 0.0
        %2324 = vmatpush1.msra.mxu0 0.0
        %2325 = vmatprep.subr.mxu0 0.0
        %2326 = vmatpush1.msra.mxu0 0.0
        %2327 = vmatprep.subr.mxu0 0.0
        %2328 = vmatpush1.msra.mxu0 0.0
        %2329 = vmatprep.subr.mxu0 0.0
        %2330 = vmatpush1.msra.mxu0 0.0
        %2331 = vmatprep.subr.mxu0 0.0
        %2332 = vmatpush1.msra.mxu0 0.0
        %2333 = vmatprep.subr.mxu0 0.0
        %2334 = vmatpush1.msra.mxu0 %v2298
        %2335 = vmatprep.subr.mxu0 0.0
        %2336 = vmatpush2.msra.mxu0 0.0
        %2337 = vmatprep.subr.mxu0 0.0
        %2338 = vmatpush2.msra.mxu0 0.0
        %2339 = vmatprep.subr.mxu0 0.0
        %2340 = vmatpush2.msra.mxu0 0.0
        %2341 = vmatprep.subr.mxu0 0.0
        %2342 = vmatpush2.msra.mxu0 0.0
        %2343 = vmatprep.subr.mxu0 0.0
        %2344 = vmatpush2.msra.mxu0 0.0
        %2345 = vmatprep.subr.mxu0 0.0
        %2346 = vmatpush2.msra.mxu0 0.0
        %2347 = vmatprep.subr.mxu0 0.0
        %2348 = vmatpush2.msra.mxu0 0.0
        %2349 = vmatprep.subr.mxu0 0.0
        %2350 = vmatpush2.msra.mxu0 0.0
        %2351 = vmatprep.subr.mxu0 0.0
        %2352 = vmatpush2.msra.mxu0 0.0
        %2353 = vmatprep.subr.mxu0 0.0
        %2354 = vmatpush2.msra.mxu0 0.0
        %2355 = vmatprep.subr.mxu0 0.0
        %2356 = vmatpush2.msra.mxu0 0.0
        %2357 = vmatprep.subr.mxu0 0.0
        %2358 = vmatpush2.msra.mxu0 0.0
        %2359 = vmatprep.subr.mxu0 0.0
        %2360 = vmatpush2.msra.mxu0 0.0
        %2361 = vmatprep.subr.mxu0 0.0
        %2362 = vmatpush2.msra.mxu0 0.0
        %2363 = vmatprep.subr.mxu0 0.0
        %2364 = vmatpush2.msra.mxu0 0.0
        %2365 = vmatprep.subr.mxu0 0.0
        %2366 = vmatpush2.msra.mxu0 0.0
        %2367 = vmatprep.mubr.f32.mxu0 0.0
        %2368 = vmatmul.mubr.f32.gmra.mxu0 %v2301
        %v2369 = vpop.f32.mrf.mxu0
        %v2370 = vadd.f32 0.0, %v2369
        %v2371 = vpop.f32.mrf.mxu0
        %2372 = vdwg.mxu0
        %v2373 = vadd.f32 %v2296, %v2370
        %2374 = vst.msk [vmem:[%s2289] sm:$0xff] %vm1043, %v2373
        %2375 = vst.msk [vmem:[%s2264] sm:$0xff] %vm1144, %v2269
        %2376 = vrot.lane.b32.xlu0 %v1042, 100
        %v2377 = vpop.permute.xlu0 %2376
        %2378 = vrot.lane.b32.xlu0 %v954, 100
        %v2379 = vpop.permute.xlu0 %2378
        %v2380 = vsel %vm1043, %v2377, 0
        %v2382 = vsel %vm1043, %v2379, 0
        %2384 = vmatprep.subr.mxu0 0.0
        %2385 = vmatpush1.xpose.msra.mxu0 0.0
        %2386 = vmatprep.subr.mxu0 0.0
        %2387 = vmatpush1.xpose.msra.mxu0 0.0
        %2388 = vmatprep.subr.mxu0 0.0
        %2389 = vmatpush1.xpose.msra.mxu0 0.0
        %2390 = vmatprep.subr.mxu0 0.0
        %2391 = vmatpush1.xpose.msra.mxu0 0.0
        %2392 = vmatprep.subr.mxu0 0.0
        %2393 = vmatpush1.xpose.msra.mxu0 0.0
        %2394 = vmatprep.subr.mxu0 0.0
        %2395 = vmatpush1.xpose.msra.mxu0 0.0
        %2396 = vmatprep.subr.mxu0 0.0
        %2397 = vmatpush1.xpose.msra.mxu0 0.0
        %2398 = vmatprep.subr.mxu0 0.0
        %2399 = vmatpush1.xpose.msra.mxu0 0.0
        %2400 = vmatprep.subr.mxu0 0.0
        %2401 = vmatpush1.xpose.msra.mxu0 0.0
        %2402 = vmatprep.subr.mxu0 0.0
        %2403 = vmatpush1.xpose.msra.mxu0 0.0
        %2404 = vmatprep.subr.mxu0 0.0
        %2405 = vmatpush1.xpose.msra.mxu0 0.0
        %2406 = vmatprep.subr.mxu0 0.0
        %2407 = vmatpush1.xpose.msra.mxu0 0.0
        %2408 = vmatprep.subr.mxu0 0.0
        %2409 = vmatpush1.xpose.msra.mxu0 0.0
        %2410 = vmatprep.subr.mxu0 0.0
        %2411 = vmatpush1.xpose.msra.mxu0 0.0
        %2412 = vmatprep.subr.mxu0 0.0
        %2413 = vmatpush1.xpose.msra.mxu0 0.0
        %2414 = vmatprep.subr.mxu0 0.0
        %2415 = vmatpush1.xpose.msra.mxu0 %v2382
        %2416 = vmatprep.subr.mxu0 0.0
        %2417 = vmatpush2.xpose.msra.mxu0 0.0
        %2418 = vmatprep.subr.mxu0 0.0
        %2419 = vmatpush2.xpose.msra.mxu0 0.0
        %2420 = vmatprep.subr.mxu0 0.0
        %2421 = vmatpush2.xpose.msra.mxu0 0.0
        %2422 = vmatprep.subr.mxu0 0.0
        %2423 = vmatpush2.xpose.msra.mxu0 0.0
        %2424 = vmatprep.subr.mxu0 0.0
        %2425 = vmatpush2.xpose.msra.mxu0 0.0
        %2426 = vmatprep.subr.mxu0 0.0
        %2427 = vmatpush2.xpose.msra.mxu0 0.0
        %2428 = vmatprep.subr.mxu0 0.0
        %2429 = vmatpush2.xpose.msra.mxu0 0.0
        %2430 = vmatprep.subr.mxu0 0.0
        %2431 = vmatpush2.xpose.msra.mxu0 0.0
        %2432 = vmatprep.subr.mxu0 0.0
        %2433 = vmatpush2.xpose.msra.mxu0 0.0
        %2434 = vmatprep.subr.mxu0 0.0
        %2435 = vmatpush2.xpose.msra.mxu0 0.0
        %2436 = vmatprep.subr.mxu0 0.0
        %2437 = vmatpush2.xpose.msra.mxu0 0.0
        %2438 = vmatprep.subr.mxu0 0.0
        %2439 = vmatpush2.xpose.msra.mxu0 0.0
        %2440 = vmatprep.subr.mxu0 0.0
        %2441 = vmatpush2.xpose.msra.mxu0 0.0
        %2442 = vmatprep.subr.mxu0 0.0
        %2443 = vmatpush2.xpose.msra.mxu0 0.0
        %2444 = vmatprep.subr.mxu0 0.0
        %2445 = vmatpush2.xpose.msra.mxu0 0.0
        %2446 = vmatprep.subr.mxu0 0.0
        %2447 = vmatpush2.xpose.msra.mxu0 0.0
        %2448 = vmatprep.mubr.f32.mxu0 0.0
        %2449 = vmatmul.mubr.f32.gmra.mxu0 %v2380
        %v2450 = vpop.f32.mrf.mxu0
        %v2451 = vadd.f32 0.0, %v2450
        %v2452 = vpop.f32.mrf.mxu0
        %2453 = vdwg.mxu0
        %v2454 = vmul.f32 %v2451, 0.5
        %s2455 = scalar_lea.vmem [#allocation4], 56
        %v2456 = vld [vmem:[%s2455] sm:$0xff]
        %v2457 = vsel %vm1122, %v2454, -inf
        %2458 = vmax.xlane.f32.xlu0 %v2457
        %v2459 = vpop.xlane.xlu0 %2458
        %v2460 = vmax.f32 %v2456, %v2459
        %v2461 = vsub.f32 %v2456, %v2460
        %v2462 = vmul.f32 %v2461, 1.442695
        %v2463 = vpow.pop %v2462
        %2465 = vset.pattern.permute.xlu0 0
        %2466 = vperm.xlu0 %2465, %v2460
        %v2467 = vpop.permute.xlu0 %2466
        %v2469 = vsub.f32 %v2454, %v2467
        %v2470 = vmul.f32 %v2469, 1.442695
        %v2471 = vpow.pop %v2470
        %s2472 = scalar_lea.vmem [#allocation5], 56
        %v2473 = vld [vmem:[%s2472] sm:$0xff]
        %v2474 = vmul.f32 %v2463, %v2473
        %v2475 = vsel %vm1122, %v2471, 0.0
        %2476 = vadd.xlane.f32.xlu0 %v2475
        %v2477 = vpop.xlane.xlu0 %2476
        %v2478 = vadd.f32 %v2474, %v2477
        %2479 = vst.msk [vmem:[%s2472] sm:$0xff] %vm1144, %v2478
        %s2480 = scalar_lea.vmem [#allocation6], 56
        %v2481 = vld [vmem:[%s2480] sm:$0xff]
        %2483 = vset.pattern.permute.xlu0 0
        %2484 = vperm.xlu0 %2483, %v2463
        %v2485 = vpop.permute.xlu0 %2484
        %v2487 = vmul.f32 %v2485, %v2481
        %2488 = vrot.lane.b32.xlu0 %v1039, 100
        %v2489 = vpop.permute.xlu0 %2488
        %v2492 = vsel %vm1122, %v2471, 0
        %2494 = vmatprep.subr.mxu0 0.0
        %2495 = vmatpush1.msra.mxu0 0.0
        %2496 = vmatprep.subr.mxu0 0.0
        %2497 = vmatpush1.msra.mxu0 0.0
        %2498 = vmatprep.subr.mxu0 0.0
        %2499 = vmatpush1.msra.mxu0 0.0
        %2500 = vmatprep.subr.mxu0 0.0
        %2501 = vmatpush1.msra.mxu0 0.0
        %2502 = vmatprep.subr.mxu0 0.0
        %2503 = vmatpush1.msra.mxu0 0.0
        %2504 = vmatprep.subr.mxu0 0.0
        %2505 = vmatpush1.msra.mxu0 0.0
        %2506 = vmatprep.subr.mxu0 0.0
        %2507 = vmatpush1.msra.mxu0 0.0
        %2508 = vmatprep.subr.mxu0 0.0
        %2509 = vmatpush1.msra.mxu0 0.0
        %2510 = vmatprep.subr.mxu0 0.0
        %2511 = vmatpush1.msra.mxu0 0.0
        %2512 = vmatprep.subr.mxu0 0.0
        %2513 = vmatpush1.msra.mxu0 0.0
        %2514 = vmatprep.subr.mxu0 0.0
        %2515 = vmatpush1.msra.mxu0 0.0
        %2516 = vmatprep.subr.mxu0 0.0
        %2517 = vmatpush1.msra.mxu0 0.0
        %2518 = vmatprep.subr.mxu0 0.0
        %2519 = vmatpush1.msra.mxu0 0.0
        %2520 = vmatprep.subr.mxu0 0.0
        %2521 = vmatpush1.msra.mxu0 0.0
        %2522 = vmatprep.subr.mxu0 0.0
        %2523 = vmatpush1.msra.mxu0 0.0
        %2524 = vmatprep.subr.mxu0 0.0
        %2525 = vmatpush1.msra.mxu0 %v2489
        %2526 = vmatprep.subr.mxu0 0.0
        %2527 = vmatpush2.msra.mxu0 0.0
        %2528 = vmatprep.subr.mxu0 0.0
        %2529 = vmatpush2.msra.mxu0 0.0
        %2530 = vmatprep.subr.mxu0 0.0
        %2531 = vmatpush2.msra.mxu0 0.0
        %2532 = vmatprep.subr.mxu0 0.0
        %2533 = vmatpush2.msra.mxu0 0.0
        %2534 = vmatprep.subr.mxu0 0.0
        %2535 = vmatpush2.msra.mxu0 0.0
        %2536 = vmatprep.subr.mxu0 0.0
        %2537 = vmatpush2.msra.mxu0 0.0
        %2538 = vmatprep.subr.mxu0 0.0
        %2539 = vmatpush2.msra.mxu0 0.0
        %2540 = vmatprep.subr.mxu0 0.0
        %2541 = vmatpush2.msra.mxu0 0.0
        %2542 = vmatprep.subr.mxu0 0.0
        %2543 = vmatpush2.msra.mxu0 0.0
        %2544 = vmatprep.subr.mxu0 0.0
        %2545 = vmatpush2.msra.mxu0 0.0
        %2546 = vmatprep.subr.mxu0 0.0
        %2547 = vmatpush2.msra.mxu0 0.0
        %2548 = vmatprep.subr.mxu0 0.0
        %2549 = vmatpush2.msra.mxu0 0.0
        %2550 = vmatprep.subr.mxu0 0.0
        %2551 = vmatpush2.msra.mxu0 0.0
        %2552 = vmatprep.subr.mxu0 0.0
        %2553 = vmatpush2.msra.mxu0 0.0
        %2554 = vmatprep.subr.mxu0 0.0
        %2555 = vmatpush2.msra.mxu0 0.0
        %2556 = vmatprep.subr.mxu0 0.0
        %2557 = vmatpush2.msra.mxu0 0.0
        %2558 = vmatprep.mubr.f32.mxu0 0.0
        %2559 = vmatmul.mubr.f32.gmra.mxu0 %v2492
        %v2560 = vpop.f32.mrf.mxu0
        %v2561 = vadd.f32 0.0, %v2560
        %v2562 = vpop.f32.mrf.mxu0
        %2563 = vdwg.mxu0
        %v2564 = vadd.f32 %v2487, %v2561
        %2565 = vst.msk [vmem:[%s2480] sm:$0xff] %vm1043, %v2564
        %2566 = vst.msk [vmem:[%s2455] sm:$0xff] %vm1144, %v2460
        // Predicated region
        $region121: #{tpu_custom_call.1} parent=79 // pred_check
          %p2567 = pneg %p723
        $region122: #{tpu_custom_call.1} parent=79 // pred_check_branch
          %2569 = sbr.rel (%p2567) target = $region124
        $region123: #{tpu_custom_call.1} parent=79 // pred_region
          %v2570 = vld [vmem:[#allocation2] sm:$0xff]
          %v2571 = vld [vmem:[#allocation21] sm:$0xff]
          %v2572 = vld [vmem:[#allocation21 + $0x8] sm:$0xff]
          %v2573 = vld [vmem:[#allocation21 + $0x10] sm:$0xff]
          %v2574 = vld [vmem:[#allocation21 + $0x18] sm:$0xff]
          %v2575 = vld [vmem:[#allocation6] sm:$0xff]
          %v2576 = vld [vmem:[#allocation5] sm:$0xff]
          %v2577 = vrcp.pop %v2576
          %2579 = vset.pattern.permute.xlu0 0
          %2580 = vperm.xlu0 %2579, %v2577
          %v2581 = vpop.permute.xlu0 %2580
          %v2583 = vmul.f32 %v2575, %v2581
          %v2584 = vld [vmem:[#allocation19] sm:$0xf]
          %v2586 = vsel %vm1043, %v2583, 0
          %vm2588 = vcmask 1043456
          %v2590 = vsel %vm2588, %v2584, 0
          %2592 = vmatprep.subr.mxu0 0.0
          %2593 = vmatpush1.msra.mxu0 0.0
          %2594 = vmatprep.subr.mxu0 0.0
          %2595 = vmatpush1.msra.mxu0 0.0
          %2596 = vmatprep.subr.mxu0 0.0
          %2597 = vmatpush1.msra.mxu0 0.0
          %2598 = vmatprep.subr.mxu0 0.0
          %2599 = vmatpush1.msra.mxu0 0.0
          %2600 = vmatprep.subr.mxu0 0.0
          %2601 = vmatpush1.msra.mxu0 0.0
          %2602 = vmatprep.subr.mxu0 0.0
          %2603 = vmatpush1.msra.mxu0 0.0
          %2604 = vmatprep.subr.mxu0 0.0
          %2605 = vmatpush1.msra.mxu0 0.0
          %2606 = vmatprep.subr.mxu0 0.0
          %2607 = vmatpush1.msra.mxu0 0.0
          %2608 = vmatprep.subr.mxu0 0.0
          %2609 = vmatpush1.msra.mxu0 0.0
          %2610 = vmatprep.subr.mxu0 0.0
          %2611 = vmatpush1.msra.mxu0 0.0
          %2612 = vmatprep.subr.mxu0 0.0
          %2613 = vmatpush1.msra.mxu0 0.0
          %2614 = vmatprep.subr.mxu0 0.0
          %2615 = vmatpush1.msra.mxu0 0.0
          %2616 = vmatprep.subr.mxu0 0.0
          %2617 = vmatpush1.msra.mxu0 0.0
          %2618 = vmatprep.subr.mxu0 0.0
          %2619 = vmatpush1.msra.mxu0 0.0
          %2620 = vmatprep.subr.mxu0 0.0
          %2621 = vmatpush1.msra.mxu0 0.0
          %2622 = vmatprep.subr.mxu0 0.0
          %2623 = vmatpush1.msra.mxu0 %v2590
          %2624 = vmatprep.subr.mxu0 0.0
          %2625 = vmatpush2.msra.mxu0 0.0
          %2626 = vmatprep.subr.mxu0 0.0
          %2627 = vmatpush2.msra.mxu0 0.0
          %2628 = vmatprep.subr.mxu0 0.0
          %2629 = vmatpush2.msra.mxu0 0.0
          %2630 = vmatprep.subr.mxu0 0.0
          %2631 = vmatpush2.msra.mxu0 0.0
          %2632 = vmatprep.subr.mxu0 0.0
          %2633 = vmatpush2.msra.mxu0 0.0
          %2634 = vmatprep.subr.mxu0 0.0
          %2635 = vmatpush2.msra.mxu0 0.0
          %2636 = vmatprep.subr.mxu0 0.0
          %2637 = vmatpush2.msra.mxu0 0.0
          %2638 = vmatprep.subr.mxu0 0.0
          %2639 = vmatpush2.msra.mxu0 0.0
          %2640 = vmatprep.subr.mxu0 0.0
          %2641 = vmatpush2.msra.mxu0 0.0
          %2642 = vmatprep.subr.mxu0 0.0
          %2643 = vmatpush2.msra.mxu0 0.0
          %2644 = vmatprep.subr.mxu0 0.0
          %2645 = vmatpush2.msra.mxu0 0.0
          %2646 = vmatprep.subr.mxu0 0.0
          %2647 = vmatpush2.msra.mxu0 0.0
          %2648 = vmatprep.subr.mxu0 0.0
          %2649 = vmatpush2.msra.mxu0 0.0
          %2650 = vmatprep.subr.mxu0 0.0
          %2651 = vmatpush2.msra.mxu0 0.0
          %2652 = vmatprep.subr.mxu0 0.0
          %2653 = vmatpush2.msra.mxu0 0.0
          %2654 = vmatprep.subr.mxu0 0.0
          %2655 = vmatpush2.msra.mxu0 0.0
          %2656 = vmatprep.mubr.f32.mxu0 0.0
          %2657 = vmatmul.mubr.f32.gmra.mxu0 %v2586
          %v2658 = vpop.f32.mrf.mxu0
          %v2659 = vadd.f32 0.0, %v2658
          %v2660 = vpop.f32.mrf.mxu0
          %2661 = vdwg.mxu0
          %v2663 = vsel %vm883, %v2570, 0
          %2665 = vmatprep.subr.mxu0 0.0
          %2666 = vmatpush1.msra.mxu0 0.0
          %2667 = vmatprep.subr.mxu0 0.0
          %2668 = vmatpush1.msra.mxu0 0.0
          %2669 = vmatprep.subr.mxu0 0.0
          %2670 = vmatpush1.msra.mxu0 0.0
          %2671 = vmatprep.subr.mxu0 0.0
          %2672 = vmatpush1.msra.mxu0 0.0
          %2673 = vmatprep.subr.mxu0 0.0
          %2674 = vmatpush1.msra.mxu0 0.0
          %2675 = vmatprep.subr.mxu0 0.0
          %2676 = vmatpush1.msra.mxu0 0.0
          %2677 = vmatprep.subr.mxu0 0.0
          %2678 = vmatpush1.msra.mxu0 0.0
          %2679 = vmatprep.subr.mxu0 0.0
          %2680 = vmatpush1.msra.mxu0 0.0
          %2681 = vmatprep.subr.mxu0 0.0
          %2682 = vmatpush1.msra.mxu0 0.0
          %2683 = vmatprep.subr.mxu0 0.0
          %2684 = vmatpush1.msra.mxu0 0.0
          %2685 = vmatprep.subr.mxu0 0.0
          %2686 = vmatpush1.msra.mxu0 0.0
          %2687 = vmatprep.subr.mxu0 0.0
          %2688 = vmatpush1.msra.mxu0 0.0
          %2689 = vmatprep.subr.mxu0 0.0
          %2690 = vmatpush1.msra.mxu0 %v2574
          %2691 = vmatprep.subr.mxu0 0.0
          %2692 = vmatpush1.msra.mxu0 %v2573
          %2693 = vmatprep.subr.mxu0 0.0
          %2694 = vmatpush1.msra.mxu0 %v2572
          %2695 = vmatprep.subr.mxu0 0.0
          %2696 = vmatpush1.msra.mxu0 %v2571
          %2697 = vmatprep.subr.mxu0 0.0
          %2698 = vmatpush2.msra.mxu0 0.0
          %2699 = vmatprep.subr.mxu0 0.0
          %2700 = vmatpush2.msra.mxu0 0.0
          %2701 = vmatprep.subr.mxu0 0.0
          %2702 = vmatpush2.msra.mxu0 0.0
          %2703 = vmatprep.subr.mxu0 0.0
          %2704 = vmatpush2.msra.mxu0 0.0
          %2705 = vmatprep.subr.mxu0 0.0
          %2706 = vmatpush2.msra.mxu0 0.0
          %2707 = vmatprep.subr.mxu0 0.0
          %2708 = vmatpush2.msra.mxu0 0.0
          %2709 = vmatprep.subr.mxu0 0.0
          %2710 = vmatpush2.msra.mxu0 0.0
          %2711 = vmatprep.subr.mxu0 0.0
          %2712 = vmatpush2.msra.mxu0 0.0
          %2713 = vmatprep.subr.mxu0 0.0
          %2714 = vmatpush2.msra.mxu0 0.0
          %2715 = vmatprep.subr.mxu0 0.0
          %2716 = vmatpush2.msra.mxu0 0.0
          %2717 = vmatprep.subr.mxu0 0.0
          %2718 = vmatpush2.msra.mxu0 0.0
          %2719 = vmatprep.subr.mxu0 0.0
          %2720 = vmatpush2.msra.mxu0 0.0
          %2721 = vmatprep.subr.mxu0 0.0
          %2722 = vmatpush2.msra.mxu0 0.0
          %2723 = vmatprep.subr.mxu0 0.0
          %2724 = vmatpush2.msra.mxu0 0.0
          %2725 = vmatprep.subr.mxu0 0.0
          %2726 = vmatpush2.msra.mxu0 0.0
          %2727 = vmatprep.subr.mxu0 0.0
          %2728 = vmatpush2.msra.mxu0 0.0
          %2729 = vmatprep.mubr.f32.mxu0 0.0
          %2730 = vmatmul.mubr.f32.gmra.mxu0 %v2663
          %v2731 = vpop.f32.mrf.mxu0
          %v2732 = vadd.f32 %v2659, %v2731
          %v2733 = vpop.f32.mrf.mxu0
          %2734 = vdwg.mxu0
          %v2735 = vld [vmem:[%s1333] sm:$0xff]
          %v2736 = vld [vmem:[%s1325] sm:$0xff]
          %v2737 = vrcp.pop %v2736
          %2739 = vset.pattern.permute.xlu0 0
          %2740 = vperm.xlu0 %2739, %v2737
          %v2741 = vpop.permute.xlu0 %2740
          %v2743 = vmul.f32 %v2735, %v2741
          %v2744 = vld [vmem:[#allocation19 + $0x4] sm:$0xf]
          %v2746 = vsel %vm1043, %v2743, 0
          %v2749 = vsel %vm2588, %v2744, 0
          %2751 = vmatprep.subr.mxu0 0.0
          %2752 = vmatpush1.msra.mxu0 0.0
          %2753 = vmatprep.subr.mxu0 0.0
          %2754 = vmatpush1.msra.mxu0 0.0
          %2755 = vmatprep.subr.mxu0 0.0
          %2756 = vmatpush1.msra.mxu0 0.0
          %2757 = vmatprep.subr.mxu0 0.0
          %2758 = vmatpush1.msra.mxu0 0.0
          %2759 = vmatprep.subr.mxu0 0.0
          %2760 = vmatpush1.msra.mxu0 0.0
          %2761 = vmatprep.subr.mxu0 0.0
          %2762 = vmatpush1.msra.mxu0 0.0
          %2763 = vmatprep.subr.mxu0 0.0
          %2764 = vmatpush1.msra.mxu0 0.0
          %2765 = vmatprep.subr.mxu0 0.0
          %2766 = vmatpush1.msra.mxu0 0.0
          %2767 = vmatprep.subr.mxu0 0.0
          %2768 = vmatpush1.msra.mxu0 0.0
          %2769 = vmatprep.subr.mxu0 0.0
          %2770 = vmatpush1.msra.mxu0 0.0
          %2771 = vmatprep.subr.mxu0 0.0
          %2772 = vmatpush1.msra.mxu0 0.0
          %2773 = vmatprep.subr.mxu0 0.0
          %2774 = vmatpush1.msra.mxu0 0.0
          %2775 = vmatprep.subr.mxu0 0.0
          %2776 = vmatpush1.msra.mxu0 0.0
          %2777 = vmatprep.subr.mxu0 0.0
          %2778 = vmatpush1.msra.mxu0 0.0
          %2779 = vmatprep.subr.mxu0 0.0
          %2780 = vmatpush1.msra.mxu0 0.0
          %2781 = vmatprep.subr.mxu0 0.0
          %2782 = vmatpush1.msra.mxu0 %v2749
          %2783 = vmatprep.subr.mxu0 0.0
          %2784 = vmatpush2.msra.mxu0 0.0
          %2785 = vmatprep.subr.mxu0 0.0
          %2786 = vmatpush2.msra.mxu0 0.0
          %2787 = vmatprep.subr.mxu0 0.0
          %2788 = vmatpush2.msra.mxu0 0.0
          %2789 = vmatprep.subr.mxu0 0.0
          %2790 = vmatpush2.msra.mxu0 0.0
          %2791 = vmatprep.subr.mxu0 0.0
          %2792 = vmatpush2.msra.mxu0 0.0
          %2793 = vmatprep.subr.mxu0 0.0
          %2794 = vmatpush2.msra.mxu0 0.0
          %2795 = vmatprep.subr.mxu0 0.0
          %2796 = vmatpush2.msra.mxu0 0.0
          %2797 = vmatprep.subr.mxu0 0.0
          %2798 = vmatpush2.msra.mxu0 0.0
          %2799 = vmatprep.subr.mxu0 0.0
          %2800 = vmatpush2.msra.mxu0 0.0
          %2801 = vmatprep.subr.mxu0 0.0
          %2802 = vmatpush2.msra.mxu0 0.0
          %2803 = vmatprep.subr.mxu0 0.0
          %2804 = vmatpush2.msra.mxu0 0.0
          %2805 = vmatprep.subr.mxu0 0.0
          %2806 = vmatpush2.msra.mxu0 0.0
          %2807 = vmatprep.subr.mxu0 0.0
          %2808 = vmatpush2.msra.mxu0 0.0
          %2809 = vmatprep.subr.mxu0 0.0
          %2810 = vmatpush2.msra.mxu0 0.0
          %2811 = vmatprep.subr.mxu0 0.0
          %2812 = vmatpush2.msra.mxu0 0.0
          %2813 = vmatprep.subr.mxu0 0.0
          %2814 = vmatpush2.msra.mxu0 0.0
          %2815 = vmatprep.mubr.f32.mxu0 0.0
          %2816 = vmatmul.mubr.f32.gmra.mxu0 %v2746
          %v2817 = vpop.f32.mrf.mxu0
          %v2818 = vadd.f32 0.0, %v2817
          %v2819 = vpop.f32.mrf.mxu0
          %2820 = vdwg.mxu0
          %v2821 = vadd.f32 %v2732, %v2818
          %v2822 = vld [vmem:[%s1525] sm:$0xff]
          %v2823 = vld [vmem:[%s1517] sm:$0xff]
          %v2824 = vrcp.pop %v2823
          %2826 = vset.pattern.permute.xlu0 0
          %2827 = vperm.xlu0 %2826, %v2824
          %v2828 = vpop.permute.xlu0 %2827
          %v2830 = vmul.f32 %v2822, %v2828
          %v2831 = vld [vmem:[#allocation19 + $0x8] sm:$0xf]
          %v2833 = vsel %vm1043, %v2830, 0
          %v2836 = vsel %vm2588, %v2831, 0
          %2838 = vmatprep.subr.mxu0 0.0
          %2839 = vmatpush1.msra.mxu0 0.0
          %2840 = vmatprep.subr.mxu0 0.0
          %2841 = vmatpush1.msra.mxu0 0.0
          %2842 = vmatprep.subr.mxu0 0.0
          %2843 = vmatpush1.msra.mxu0 0.0
          %2844 = vmatprep.subr.mxu0 0.0
          %2845 = vmatpush1.msra.mxu0 0.0
          %2846 = vmatprep.subr.mxu0 0.0
          %2847 = vmatpush1.msra.mxu0 0.0
          %2848 = vmatprep.subr.mxu0 0.0
          %2849 = vmatpush1.msra.mxu0 0.0
          %2850 = vmatprep.subr.mxu0 0.0
          %2851 = vmatpush1.msra.mxu0 0.0
          %2852 = vmatprep.subr.mxu0 0.0
          %2853 = vmatpush1.msra.mxu0 0.0
          %2854 = vmatprep.subr.mxu0 0.0
          %2855 = vmatpush1.msra.mxu0 0.0
          %2856 = vmatprep.subr.mxu0 0.0
          %2857 = vmatpush1.msra.mxu0 0.0
          %2858 = vmatprep.subr.mxu0 0.0
          %2859 = vmatpush1.msra.mxu0 0.0
          %2860 = vmatprep.subr.mxu0 0.0
          %2861 = vmatpush1.msra.mxu0 0.0
          %2862 = vmatprep.subr.mxu0 0.0
          %2863 = vmatpush1.msra.mxu0 0.0
          %2864 = vmatprep.subr.mxu0 0.0
          %2865 = vmatpush1.msra.mxu0 0.0
          %2866 = vmatprep.subr.mxu0 0.0
          %2867 = vmatpush1.msra.mxu0 0.0
          %2868 = vmatprep.subr.mxu0 0.0
          %2869 = vmatpush1.msra.mxu0 %v2836
          %2870 = vmatprep.subr.mxu0 0.0
          %2871 = vmatpush2.msra.mxu0 0.0
          %2872 = vmatprep.subr.mxu0 0.0
          %2873 = vmatpush2.msra.mxu0 0.0
          %2874 = vmatprep.subr.mxu0 0.0
          %2875 = vmatpush2.msra.mxu0 0.0
          %2876 = vmatprep.subr.mxu0 0.0
          %2877 = vmatpush2.msra.mxu0 0.0
          %2878 = vmatprep.subr.mxu0 0.0
          %2879 = vmatpush2.msra.mxu0 0.0
          %2880 = vmatprep.subr.mxu0 0.0
          %2881 = vmatpush2.msra.mxu0 0.0
          %2882 = vmatprep.subr.mxu0 0.0
          %2883 = vmatpush2.msra.mxu0 0.0
          %2884 = vmatprep.subr.mxu0 0.0
          %2885 = vmatpush2.msra.mxu0 0.0
          %2886 = vmatprep.subr.mxu0 0.0
          %2887 = vmatpush2.msra.mxu0 0.0
          %2888 = vmatprep.subr.mxu0 0.0
          %2889 = vmatpush2.msra.mxu0 0.0
          %2890 = vmatprep.subr.mxu0 0.0
          %2891 = vmatpush2.msra.mxu0 0.0
          %2892 = vmatprep.subr.mxu0 0.0
          %2893 = vmatpush2.msra.mxu0 0.0
          %2894 = vmatprep.subr.mxu0 0.0
          %2895 = vmatpush2.msra.mxu0 0.0
          %2896 = vmatprep.subr.mxu0 0.0
          %2897 = vmatpush2.msra.mxu0 0.0
          %2898 = vmatprep.subr.mxu0 0.0
          %2899 = vmatpush2.msra.mxu0 0.0
          %2900 = vmatprep.subr.mxu0 0.0
          %2901 = vmatpush2.msra.mxu0 0.0
          %2902 = vmatprep.mubr.f32.mxu0 0.0
          %2903 = vmatmul.mubr.f32.gmra.mxu0 %v2833
          %v2904 = vpop.f32.mrf.mxu0
          %v2905 = vadd.f32 0.0, %v2904
          %v2906 = vpop.f32.mrf.mxu0
          %2907 = vdwg.mxu0
          %v2908 = vadd.f32 %v2821, %v2905
          %v2909 = vld [vmem:[%s1716] sm:$0xff]
          %v2910 = vld [vmem:[%s1708] sm:$0xff]
          %v2911 = vrcp.pop %v2910
          %2913 = vset.pattern.permute.xlu0 0
          %2914 = vperm.xlu0 %2913, %v2911
          %v2915 = vpop.permute.xlu0 %2914
          %v2917 = vmul.f32 %v2909, %v2915
          %v2918 = vld [vmem:[#allocation19 + $0xc] sm:$0xf]
          %v2920 = vsel %vm1043, %v2917, 0
          %v2923 = vsel %vm2588, %v2918, 0
          %2925 = vmatprep.subr.mxu0 0.0
          %2926 = vmatpush1.msra.mxu0 0.0
          %2927 = vmatprep.subr.mxu0 0.0
          %2928 = vmatpush1.msra.mxu0 0.0
          %2929 = vmatprep.subr.mxu0 0.0
          %2930 = vmatpush1.msra.mxu0 0.0
          %2931 = vmatprep.subr.mxu0 0.0
          %2932 = vmatpush1.msra.mxu0 0.0
          %2933 = vmatprep.subr.mxu0 0.0
          %2934 = vmatpush1.msra.mxu0 0.0
          %2935 = vmatprep.subr.mxu0 0.0
          %2936 = vmatpush1.msra.mxu0 0.0
          %2937 = vmatprep.subr.mxu0 0.0
          %2938 = vmatpush1.msra.mxu0 0.0
          %2939 = vmatprep.subr.mxu0 0.0
          %2940 = vmatpush1.msra.mxu0 0.0
          %2941 = vmatprep.subr.mxu0 0.0
          %2942 = vmatpush1.msra.mxu0 0.0
          %2943 = vmatprep.subr.mxu0 0.0
          %2944 = vmatpush1.msra.mxu0 0.0
          %2945 = vmatprep.subr.mxu0 0.0
          %2946 = vmatpush1.msra.mxu0 0.0
          %2947 = vmatprep.subr.mxu0 0.0
          %2948 = vmatpush1.msra.mxu0 0.0
          %2949 = vmatprep.subr.mxu0 0.0
          %2950 = vmatpush1.msra.mxu0 0.0
          %2951 = vmatprep.subr.mxu0 0.0
          %2952 = vmatpush1.msra.mxu0 0.0
          %2953 = vmatprep.subr.mxu0 0.0
          %2954 = vmatpush1.msra.mxu0 0.0
          %2955 = vmatprep.subr.mxu0 0.0
          %2956 = vmatpush1.msra.mxu0 %v2923
          %2957 = vmatprep.subr.mxu0 0.0
          %2958 = vmatpush2.msra.mxu0 0.0
          %2959 = vmatprep.subr.mxu0 0.0
          %2960 = vmatpush2.msra.mxu0 0.0
          %2961 = vmatprep.subr.mxu0 0.0
          %2962 = vmatpush2.msra.mxu0 0.0
          %2963 = vmatprep.subr.mxu0 0.0
          %2964 = vmatpush2.msra.mxu0 0.0
          %2965 = vmatprep.subr.mxu0 0.0
          %2966 = vmatpush2.msra.mxu0 0.0
          %2967 = vmatprep.subr.mxu0 0.0
          %2968 = vmatpush2.msra.mxu0 0.0
          %2969 = vmatprep.subr.mxu0 0.0
          %2970 = vmatpush2.msra.mxu0 0.0
          %2971 = vmatprep.subr.mxu0 0.0
          %2972 = vmatpush2.msra.mxu0 0.0
          %2973 = vmatprep.subr.mxu0 0.0
          %2974 = vmatpush2.msra.mxu0 0.0
          %2975 = vmatprep.subr.mxu0 0.0
          %2976 = vmatpush2.msra.mxu0 0.0
          %2977 = vmatprep.subr.mxu0 0.0
          %2978 = vmatpush2.msra.mxu0 0.0
          %2979 = vmatprep.subr.mxu0 0.0
          %2980 = vmatpush2.msra.mxu0 0.0
          %2981 = vmatprep.subr.mxu0 0.0
          %2982 = vmatpush2.msra.mxu0 0.0
          %2983 = vmatprep.subr.mxu0 0.0
          %2984 = vmatpush2.msra.mxu0 0.0
          %2985 = vmatprep.subr.mxu0 0.0
          %2986 = vmatpush2.msra.mxu0 0.0
          %2987 = vmatprep.subr.mxu0 0.0
          %2988 = vmatpush2.msra.mxu0 0.0
          %2989 = vmatprep.mubr.f32.mxu0 0.0
          %2990 = vmatmul.mubr.f32.gmra.mxu0 %v2920
          %v2991 = vpop.f32.mrf.mxu0
          %v2992 = vadd.f32 0.0, %v2991
          %v2993 = vpop.f32.mrf.mxu0
          %2994 = vdwg.mxu0
          %v2995 = vadd.f32 %v2908, %v2992
          %v2996 = vld [vmem:[%s1907] sm:$0xff]
          %v2997 = vld [vmem:[%s1899] sm:$0xff]
          %v2998 = vrcp.pop %v2997
          %3000 = vset.pattern.permute.xlu0 0
          %3001 = vperm.xlu0 %3000, %v2998
          %v3002 = vpop.permute.xlu0 %3001
          %v3004 = vmul.f32 %v2996, %v3002
          %v3005 = vld [vmem:[#allocation19 + $0x10] sm:$0xf]
          %v3007 = vsel %vm1043, %v3004, 0
          %v3010 = vsel %vm2588, %v3005, 0
          %3012 = vmatprep.subr.mxu0 0.0
          %3013 = vmatpush1.msra.mxu0 0.0
          %3014 = vmatprep.subr.mxu0 0.0
          %3015 = vmatpush1.msra.mxu0 0.0
          %3016 = vmatprep.subr.mxu0 0.0
          %3017 = vmatpush1.msra.mxu0 0.0
          %3018 = vmatprep.subr.mxu0 0.0
          %3019 = vmatpush1.msra.mxu0 0.0
          %3020 = vmatprep.subr.mxu0 0.0
          %3021 = vmatpush1.msra.mxu0 0.0
          %3022 = vmatprep.subr.mxu0 0.0
          %3023 = vmatpush1.msra.mxu0 0.0
          %3024 = vmatprep.subr.mxu0 0.0
          %3025 = vmatpush1.msra.mxu0 0.0
          %3026 = vmatprep.subr.mxu0 0.0
          %3027 = vmatpush1.msra.mxu0 0.0
          %3028 = vmatprep.subr.mxu0 0.0
          %3029 = vmatpush1.msra.mxu0 0.0
          %3030 = vmatprep.subr.mxu0 0.0
          %3031 = vmatpush1.msra.mxu0 0.0
          %3032 = vmatprep.subr.mxu0 0.0
          %3033 = vmatpush1.msra.mxu0 0.0
          %3034 = vmatprep.subr.mxu0 0.0
          %3035 = vmatpush1.msra.mxu0 0.0
          %3036 = vmatprep.subr.mxu0 0.0
          %3037 = vmatpush1.msra.mxu0 0.0
          %3038 = vmatprep.subr.mxu0 0.0
          %3039 = vmatpush1.msra.mxu0 0.0
          %3040 = vmatprep.subr.mxu0 0.0
          %3041 = vmatpush1.msra.mxu0 0.0
          %3042 = vmatprep.subr.mxu0 0.0
          %3043 = vmatpush1.msra.mxu0 %v3010
          %3044 = vmatprep.subr.mxu0 0.0
          %3045 = vmatpush2.msra.mxu0 0.0
          %3046 = vmatprep.subr.mxu0 0.0
          %3047 = vmatpush2.msra.mxu0 0.0
          %3048 = vmatprep.subr.mxu0 0.0
          %3049 = vmatpush2.msra.mxu0 0.0
          %3050 = vmatprep.subr.mxu0 0.0
          %3051 = vmatpush2.msra.mxu0 0.0
          %3052 = vmatprep.subr.mxu0 0.0
          %3053 = vmatpush2.msra.mxu0 0.0
          %3054 = vmatprep.subr.mxu0 0.0
          %3055 = vmatpush2.msra.mxu0 0.0
          %3056 = vmatprep.subr.mxu0 0.0
          %3057 = vmatpush2.msra.mxu0 0.0
          %3058 = vmatprep.subr.mxu0 0.0
          %3059 = vmatpush2.msra.mxu0 0.0
          %3060 = vmatprep.subr.mxu0 0.0
          %3061 = vmatpush2.msra.mxu0 0.0
          %3062 = vmatprep.subr.mxu0 0.0
          %3063 = vmatpush2.msra.mxu0 0.0
          %3064 = vmatprep.subr.mxu0 0.0
          %3065 = vmatpush2.msra.mxu0 0.0
          %3066 = vmatprep.subr.mxu0 0.0
          %3067 = vmatpush2.msra.mxu0 0.0
          %3068 = vmatprep.subr.mxu0 0.0
          %3069 = vmatpush2.msra.mxu0 0.0
          %3070 = vmatprep.subr.mxu0 0.0
          %3071 = vmatpush2.msra.mxu0 0.0
          %3072 = vmatprep.subr.mxu0 0.0
          %3073 = vmatpush2.msra.mxu0 0.0
          %3074 = vmatprep.subr.mxu0 0.0
          %3075 = vmatpush2.msra.mxu0 0.0
          %3076 = vmatprep.mubr.f32.mxu0 0.0
          %3077 = vmatmul.mubr.f32.gmra.mxu0 %v3007
          %v3078 = vpop.f32.mrf.mxu0
          %v3079 = vadd.f32 0.0, %v3078
          %v3080 = vpop.f32.mrf.mxu0
          %3081 = vdwg.mxu0
          %v3082 = vadd.f32 %v2995, %v3079
          %v3083 = vld [vmem:[%s2098] sm:$0xff]
          %v3084 = vld [vmem:[%s2090] sm:$0xff]
          %v3085 = vrcp.pop %v3084
          %3087 = vset.pattern.permute.xlu0 0
          %3088 = vperm.xlu0 %3087, %v3085
          %v3089 = vpop.permute.xlu0 %3088
          %v3091 = vmul.f32 %v3083, %v3089
          %v3092 = vld [vmem:[#allocation19 + $0x14] sm:$0xf]
          %v3094 = vsel %vm1043, %v3091, 0
          %v3097 = vsel %vm2588, %v3092, 0
          %3099 = vmatprep.subr.mxu0 0.0
          %3100 = vmatpush1.msra.mxu0 0.0
          %3101 = vmatprep.subr.mxu0 0.0
          %3102 = vmatpush1.msra.mxu0 0.0
          %3103 = vmatprep.subr.mxu0 0.0
          %3104 = vmatpush1.msra.mxu0 0.0
          %3105 = vmatprep.subr.mxu0 0.0
          %3106 = vmatpush1.msra.mxu0 0.0
          %3107 = vmatprep.subr.mxu0 0.0
          %3108 = vmatpush1.msra.mxu0 0.0
          %3109 = vmatprep.subr.mxu0 0.0
          %3110 = vmatpush1.msra.mxu0 0.0
          %3111 = vmatprep.subr.mxu0 0.0
          %3112 = vmatpush1.msra.mxu0 0.0
          %3113 = vmatprep.subr.mxu0 0.0
          %3114 = vmatpush1.msra.mxu0 0.0
          %3115 = vmatprep.subr.mxu0 0.0
          %3116 = vmatpush1.msra.mxu0 0.0
          %3117 = vmatprep.subr.mxu0 0.0
          %3118 = vmatpush1.msra.mxu0 0.0
          %3119 = vmatprep.subr.mxu0 0.0
          %3120 = vmatpush1.msra.mxu0 0.0
          %3121 = vmatprep.subr.mxu0 0.0
          %3122 = vmatpush1.msra.mxu0 0.0
          %3123 = vmatprep.subr.mxu0 0.0
          %3124 = vmatpush1.msra.mxu0 0.0
          %3125 = vmatprep.subr.mxu0 0.0
          %3126 = vmatpush1.msra.mxu0 0.0
          %3127 = vmatprep.subr.mxu0 0.0
          %3128 = vmatpush1.msra.mxu0 0.0
          %3129 = vmatprep.subr.mxu0 0.0
          %3130 = vmatpush1.msra.mxu0 %v3097
          %3131 = vmatprep.subr.mxu0 0.0
          %3132 = vmatpush2.msra.mxu0 0.0
          %3133 = vmatprep.subr.mxu0 0.0
          %3134 = vmatpush2.msra.mxu0 0.0
          %3135 = vmatprep.subr.mxu0 0.0
          %3136 = vmatpush2.msra.mxu0 0.0
          %3137 = vmatprep.subr.mxu0 0.0
          %3138 = vmatpush2.msra.mxu0 0.0
          %3139 = vmatprep.subr.mxu0 0.0
          %3140 = vmatpush2.msra.mxu0 0.0
          %3141 = vmatprep.subr.mxu0 0.0
          %3142 = vmatpush2.msra.mxu0 0.0
          %3143 = vmatprep.subr.mxu0 0.0
          %3144 = vmatpush2.msra.mxu0 0.0
          %3145 = vmatprep.subr.mxu0 0.0
          %3146 = vmatpush2.msra.mxu0 0.0
          %3147 = vmatprep.subr.mxu0 0.0
          %3148 = vmatpush2.msra.mxu0 0.0
          %3149 = vmatprep.subr.mxu0 0.0
          %3150 = vmatpush2.msra.mxu0 0.0
          %3151 = vmatprep.subr.mxu0 0.0
          %3152 = vmatpush2.msra.mxu0 0.0
          %3153 = vmatprep.subr.mxu0 0.0
          %3154 = vmatpush2.msra.mxu0 0.0
          %3155 = vmatprep.subr.mxu0 0.0
          %3156 = vmatpush2.msra.mxu0 0.0
          %3157 = vmatprep.subr.mxu0 0.0
          %3158 = vmatpush2.msra.mxu0 0.0
          %3159 = vmatprep.subr.mxu0 0.0
          %3160 = vmatpush2.msra.mxu0 0.0
          %3161 = vmatprep.subr.mxu0 0.0
          %3162 = vmatpush2.msra.mxu0 0.0
          %3163 = vmatprep.mubr.f32.mxu0 0.0
          %3164 = vmatmul.mubr.f32.gmra.mxu0 %v3094
          %v3165 = vpop.f32.mrf.mxu0
          %v3166 = vadd.f32 0.0, %v3165
          %v3167 = vpop.f32.mrf.mxu0
          %3168 = vdwg.mxu0
          %v3169 = vadd.f32 %v3082, %v3166
          %v3170 = vld [vmem:[%s2289] sm:$0xff]
          %v3171 = vld [vmem:[%s2281] sm:$0xff]
          %v3172 = vrcp.pop %v3171
          %3174 = vset.pattern.permute.xlu0 0
          %3175 = vperm.xlu0 %3174, %v3172
          %v3176 = vpop.permute.xlu0 %3175
          %v3178 = vmul.f32 %v3170, %v3176
          %v3179 = vld [vmem:[#allocation19 + $0x18] sm:$0xf]
          %v3181 = vsel %vm1043, %v3178, 0
          %v3184 = vsel %vm2588, %v3179, 0
          %3186 = vmatprep.subr.mxu0 0.0
          %3187 = vmatpush1.msra.mxu0 0.0
          %3188 = vmatprep.subr.mxu0 0.0
          %3189 = vmatpush1.msra.mxu0 0.0
          %3190 = vmatprep.subr.mxu0 0.0
          %3191 = vmatpush1.msra.mxu0 0.0
          %3192 = vmatprep.subr.mxu0 0.0
          %3193 = vmatpush1.msra.mxu0 0.0
          %3194 = vmatprep.subr.mxu0 0.0
          %3195 = vmatpush1.msra.mxu0 0.0
          %3196 = vmatprep.subr.mxu0 0.0
          %3197 = vmatpush1.msra.mxu0 0.0
          %3198 = vmatprep.subr.mxu0 0.0
          %3199 = vmatpush1.msra.mxu0 0.0
          %3200 = vmatprep.subr.mxu0 0.0
          %3201 = vmatpush1.msra.mxu0 0.0
          %3202 = vmatprep.subr.mxu0 0.0
          %3203 = vmatpush1.msra.mxu0 0.0
          %3204 = vmatprep.subr.mxu0 0.0
          %3205 = vmatpush1.msra.mxu0 0.0
          %3206 = vmatprep.subr.mxu0 0.0
          %3207 = vmatpush1.msra.mxu0 0.0
          %3208 = vmatprep.subr.mxu0 0.0
          %3209 = vmatpush1.msra.mxu0 0.0
          %3210 = vmatprep.subr.mxu0 0.0
          %3211 = vmatpush1.msra.mxu0 0.0
          %3212 = vmatprep.subr.mxu0 0.0
          %3213 = vmatpush1.msra.mxu0 0.0
          %3214 = vmatprep.subr.mxu0 0.0
          %3215 = vmatpush1.msra.mxu0 0.0
          %3216 = vmatprep.subr.mxu0 0.0
          %3217 = vmatpush1.msra.mxu0 %v3184
          %3218 = vmatprep.subr.mxu0 0.0
          %3219 = vmatpush2.msra.mxu0 0.0
          %3220 = vmatprep.subr.mxu0 0.0
          %3221 = vmatpush2.msra.mxu0 0.0
          %3222 = vmatprep.subr.mxu0 0.0
          %3223 = vmatpush2.msra.mxu0 0.0
          %3224 = vmatprep.subr.mxu0 0.0
          %3225 = vmatpush2.msra.mxu0 0.0
          %3226 = vmatprep.subr.mxu0 0.0
          %3227 = vmatpush2.msra.mxu0 0.0
          %3228 = vmatprep.subr.mxu0 0.0
          %3229 = vmatpush2.msra.mxu0 0.0
          %3230 = vmatprep.subr.mxu0 0.0
          %3231 = vmatpush2.msra.mxu0 0.0
          %3232 = vmatprep.subr.mxu0 0.0
          %3233 = vmatpush2.msra.mxu0 0.0
          %3234 = vmatprep.subr.mxu0 0.0
          %3235 = vmatpush2.msra.mxu0 0.0
          %3236 = vmatprep.subr.mxu0 0.0
          %3237 = vmatpush2.msra.mxu0 0.0
          %3238 = vmatprep.subr.mxu0 0.0
          %3239 = vmatpush2.msra.mxu0 0.0
          %3240 = vmatprep.subr.mxu0 0.0
          %3241 = vmatpush2.msra.mxu0 0.0
          %3242 = vmatprep.subr.mxu0 0.0
          %3243 = vmatpush2.msra.mxu0 0.0
          %3244 = vmatprep.subr.mxu0 0.0
          %3245 = vmatpush2.msra.mxu0 0.0
          %3246 = vmatprep.subr.mxu0 0.0
          %3247 = vmatpush2.msra.mxu0 0.0
          %3248 = vmatprep.subr.mxu0 0.0
          %3249 = vmatpush2.msra.mxu0 0.0
          %3250 = vmatprep.mubr.f32.mxu0 0.0
          %3251 = vmatmul.mubr.f32.gmra.mxu0 %v3181
          %v3252 = vpop.f32.mrf.mxu0
          %v3253 = vadd.f32 0.0, %v3252
          %v3254 = vpop.f32.mrf.mxu0
          %3255 = vdwg.mxu0
          %v3256 = vadd.f32 %v3169, %v3253
          %v3257 = vld [vmem:[%s2480] sm:$0xff]
          %v3258 = vld [vmem:[%s2472] sm:$0xff]
          %v3259 = vrcp.pop %v3258
          %3261 = vset.pattern.permute.xlu0 0
          %3262 = vperm.xlu0 %3261, %v3259
          %v3263 = vpop.permute.xlu0 %3262
          %v3265 = vmul.f32 %v3257, %v3263
          %v3266 = vld [vmem:[#allocation19 + $0x1c] sm:$0xf]
          %v3268 = vsel %vm1043, %v3265, 0
          %v3271 = vsel %vm2588, %v3266, 0
          %3273 = vmatprep.subr.mxu0 0.0
          %3274 = vmatpush1.msra.mxu0 0.0
          %3275 = vmatprep.subr.mxu0 0.0
          %3276 = vmatpush1.msra.mxu0 0.0
          %3277 = vmatprep.subr.mxu0 0.0
          %3278 = vmatpush1.msra.mxu0 0.0
          %3279 = vmatprep.subr.mxu0 0.0
          %3280 = vmatpush1.msra.mxu0 0.0
          %3281 = vmatprep.subr.mxu0 0.0
          %3282 = vmatpush1.msra.mxu0 0.0
          %3283 = vmatprep.subr.mxu0 0.0
          %3284 = vmatpush1.msra.mxu0 0.0
          %3285 = vmatprep.subr.mxu0 0.0
          %3286 = vmatpush1.msra.mxu0 0.0
          %3287 = vmatprep.subr.mxu0 0.0
          %3288 = vmatpush1.msra.mxu0 0.0
          %3289 = vmatprep.subr.mxu0 0.0
          %3290 = vmatpush1.msra.mxu0 0.0
          %3291 = vmatprep.subr.mxu0 0.0
          %3292 = vmatpush1.msra.mxu0 0.0
          %3293 = vmatprep.subr.mxu0 0.0
          %3294 = vmatpush1.msra.mxu0 0.0
          %3295 = vmatprep.subr.mxu0 0.0
          %3296 = vmatpush1.msra.mxu0 0.0
          %3297 = vmatprep.subr.mxu0 0.0
          %3298 = vmatpush1.msra.mxu0 0.0
          %3299 = vmatprep.subr.mxu0 0.0
          %3300 = vmatpush1.msra.mxu0 0.0
          %3301 = vmatprep.subr.mxu0 0.0
          %3302 = vmatpush1.msra.mxu0 0.0
          %3303 = vmatprep.subr.mxu0 0.0
          %3304 = vmatpush1.msra.mxu0 %v3271
          %3305 = vmatprep.subr.mxu0 0.0
          %3306 = vmatpush2.msra.mxu0 0.0
          %3307 = vmatprep.subr.mxu0 0.0
          %3308 = vmatpush2.msra.mxu0 0.0
          %3309 = vmatprep.subr.mxu0 0.0
          %3310 = vmatpush2.msra.mxu0 0.0
          %3311 = vmatprep.subr.mxu0 0.0
          %3312 = vmatpush2.msra.mxu0 0.0
          %3313 = vmatprep.subr.mxu0 0.0
          %3314 = vmatpush2.msra.mxu0 0.0
          %3315 = vmatprep.subr.mxu0 0.0
          %3316 = vmatpush2.msra.mxu0 0.0
          %3317 = vmatprep.subr.mxu0 0.0
          %3318 = vmatpush2.msra.mxu0 0.0
          %3319 = vmatprep.subr.mxu0 0.0
          %3320 = vmatpush2.msra.mxu0 0.0
          %3321 = vmatprep.subr.mxu0 0.0
          %3322 = vmatpush2.msra.mxu0 0.0
          %3323 = vmatprep.subr.mxu0 0.0
          %3324 = vmatpush2.msra.mxu0 0.0
          %3325 = vmatprep.subr.mxu0 0.0
          %3326 = vmatpush2.msra.mxu0 0.0
          %3327 = vmatprep.subr.mxu0 0.0
          %3328 = vmatpush2.msra.mxu0 0.0
          %3329 = vmatprep.subr.mxu0 0.0
          %3330 = vmatpush2.msra.mxu0 0.0
          %3331 = vmatprep.subr.mxu0 0.0
          %3332 = vmatpush2.msra.mxu0 0.0
          %3333 = vmatprep.subr.mxu0 0.0
          %3334 = vmatpush2.msra.mxu0 0.0
          %3335 = vmatprep.subr.mxu0 0.0
          %3336 = vmatpush2.msra.mxu0 0.0
          %3337 = vmatprep.mubr.f32.mxu0 0.0
          %3338 = vmatmul.mubr.f32.gmra.mxu0 %v3268
          %v3339 = vpop.f32.mrf.mxu0
          %v3340 = vadd.f32 0.0, %v3339
          %v3341 = vpop.f32.mrf.mxu0
          %3342 = vdwg.mxu0
          %v3343 = vadd.f32 %v3256, %v3340
          %v3344 = vld [vmem:[%s13] sm:$0x1]
          %v3346 = vlaneseq
          %v3347 = vshrl.u32 %v3346, 7
          %v3348 = vsub.s32 0, %v3347
          %v3349 = vrot.slane %v3344, %v3348
          %v3351 = vadd.f32 %v3343, %v3349
          %v3352 = vld [vmem:[%s641] sm:$0xff]
          %v3353 = vadd.f32 %v3351, %v3352
          %3354 = vst.msk [vmem:[%s722] sm:$0xff] %vm883, %v3353
        $region124: #{tpu_custom_call.1} parent=79 // pred_fallthru
          _
        %s3355 = sand.u32 %s412, 1
        %s3356 = scalar_lea.sflag [#allocation9], %s3355
        %s3357 = sand.u32 %s412, 1
        %s3358 = smul.addr %s3357, 8
        %s3359 = scalar_lea.vmem [#allocation22], %s3358
        // Predicated region
        $region125: #{tpu_custom_call.1} parent=79 // pred_check
          %p3360 = pneg %p422
        $region126: #{tpu_custom_call.1} parent=79 // pred_check_branch
          %3362 = sbr.rel (%p3360) target = $region128
        $region127: #{tpu_custom_call.1} parent=79 // pred_region
          %s3364 = ssub.s32 128, 128
          %3365 = vsyncadd %s3356, %s3364
          %s3366 = sadd.s32 %s46, %s45
          %s3367 = smul.addr %s3366, 128
          %s3368 = scalar_lea.hbm %s15, %s3367
          %s3370 = sshll.u32 %s3359, 4
          %s3371 = int_to_ptr.vmem [resolvable:$true] %s3370
          %3373 = dma.vmem_to_hbm [thread:$0]  %s3371, 128, %s3368, %s3356
        $region128: #{tpu_custom_call.1} parent=79 // pred_fallthru
          _
      $region80: #{tpu_custom_call.1} parent=5 // pred_fallthru
        _
      %p3374 = scmp.le.s32.totalorder 2, %s35
      // Predicated region
      $region129: #{tpu_custom_call.1} parent=5 // pred_check
        %p3375 = pneg %p3374
      $region130: #{tpu_custom_call.1} parent=5 // pred_check_branch
        %3377 = sbr.rel (%p3375) target = $region132
      $region131: #{tpu_custom_call.1} parent=5 // pred_region
        %s3378 = ssub.s32 %s35, 2
        // Predicated region
        $region133: #{tpu_custom_call.1} parent=131 // pred_check
          %p3379 = pneg %p428
        $region134: #{tpu_custom_call.1} parent=131 // pred_check_branch
          %3381 = sbr.rel (%p3379) target = $region136
        $region135: #{tpu_custom_call.1} parent=131 // pred_region
          %s3382 = sand.u32 %s413, 1
          %s3383 = scalar_lea.sflag [#allocation9], %s3382
          %s3384 = sand.u32 %s413, 1
          %s3385 = smul.addr %s3384, 8
          %s3386 = scalar_lea.vmem [#allocation22], %s3385
          %3387 = dma.done %s3383, 128
        $region136: #{tpu_custom_call.1} parent=131 // pred_fallthru
          _
      $region132: #{tpu_custom_call.1} parent=5 // pred_fallthru
        _
    $region6: #{tpu_custom_call.1} parent=1 // loop_footer
      %s39 = sadd.s32 1, %s35
    $region7: #{tpu_custom_call.1} parent=1 // loop_footer_branch
      %34 = sbr.rel target = $region3
    $region8: #{tpu_custom_call.1} parent=1 // loop_exit
      _
    %3388 = vsyncpa [#allocation8], 1
    %s3389 = scalar_lea.sflag [#allocation8], 1
    %3390 = vsyncpa %s3389, 1
    %3391 = vsyncpa [#allocation11], 1
    %s3392 = scalar_lea.sflag [#allocation11], 1
    %3393 = vsyncpa %s3392, 1
    %3394 = vsyncpa [#allocation14], 1
    %s3395 = scalar_lea.sflag [#allocation14], 1
    %3396 = vsyncpa %s3395, 1
    %3397 = vsyncpa [#allocation17], 1
    %3398 = vsyncpa [#allocation20], 1
    %3399 = vsyncpa [#allocation9], 1
    %s3400 = scalar_lea.sflag [#allocation9], 1
    %3401 = vsyncpa %s3400, 1

</llo_original>
